<compile_context>
chip_gen: v5e
topology: v5e:2x2
jax: 0.10.0
libtpu: 0.0.40
codegen_flags: <defaults>
</compile_context>

<pallas_src>
import functools

import jax
import jax.numpy as jnp
from jax import lax
from jax.experimental import pallas as pl
from jax.experimental.pallas import tpu as pltpu

# Small, TPU-friendly versions of the module's constants.
N_EMBEDDING = 128          # C  (module uses 384; kept small & 128-aligned here)
BLOCK_SIZE = 256           # max sequence length (tril buffer size in the module)
N_HEADS = 4
HEAD_SIZE = N_EMBEDDING // N_HEADS   # concat of heads must equal N_EMBEDDING


def _multihead_kernel(x_ref, wqkv_ref, wp_ref, bp_ref, out_ref, acc_ref,
                      *, q_chunk, n_heads):
    """One batch row per grid step.

    x_ref:    (1, T, C)    bf16   full sequence of one batch row
    wqkv_ref: (C, 3C)      bf16   fused [Wq * C**-0.5 | Wk | Wv]
    wp_ref:   (C, C)       bf16   output projection weight (right-multiply layout)
    bp_ref:   (1, C)       f32    output projection bias
    out_ref:  (1, T, C)           result row
    acc_ref:  (q_chunk, C) f32    VMEM scratch accumulator (head-folded projection)
    """
    T = x_ref.shape[1]
    C = x_ref.shape[2]
    hs = C // n_heads
    n_chunks = T // q_chunk

    x = x_ref[0]                                         # (T, C) bf16

    # Fused full-row projection: Q|K|V for every position, computed exactly once per row.
    qkv = jnp.dot(x, wqkv_ref[...],
                  preferred_element_type=jnp.float32).astype(jnp.bfloat16)   # (T, 3C)
    q_all = qkv[:, :C]                                   # (T, C)  (scale already folded in)
    k_all = qkv[:, C:2 * C]                              # (T, C)
    v_all = qkv[:, 2 * C:]                               # (T, C)

    wp_all = wp_ref[...]                                 # (C, C) bf16
    bias = bp_ref[...]                                   # (1, C) f32

    for ci in range(n_chunks):                           # static, unrolled
        q0 = ci * q_chunk
        kv_len = (ci + 1) * q_chunk                      # causal: only this prefix matters

        # Tiny iotas only; the (q_chunk, kv_len) boolean mask is formed inside the
        # per-head jnp.where (mask compares are cheap; no persistent f32 bias buffer).
        row = q0 + lax.broadcasted_iota(jnp.int32, (q_chunk, 1), 0)
        col = lax.broadcasted_iota(jnp.int32, (1, kv_len), 1)

        acc_ref[...] = jnp.zeros_like(acc_ref)
        for h in range(n_heads):                         # static, unrolled
            s, e = h * hs, (h + 1) * hs
            qh = q_all[q0:q0 + q_chunk, s:e]             # (q_chunk, hs)
            kh = k_all[:kv_len, s:e]                     # (kv_len, hs)
            vh = v_all[:kv_len, s:e]                     # (kv_len, hs)

            # scores over the causal prefix only (score scale folded into Wq)
            wei = lax.dot_general(qh, kh, (((1,), (1,)), ((), ())),
                                  preferred_element_type=jnp.float32)   # (q_chunk, kv_len)
            wei = jnp.where(col <= row, wei, -1e30)

            # softmax in f32; divide via EUP approx reciprocal (free slot)
            m = jnp.max(wei, axis=-1, keepdims=True)
            p = jnp.exp(wei - m)
            denom = jnp.sum(p, axis=-1, keepdims=True)
            p = (p * pl.reciprocal(denom, approx=True)).astype(jnp.bfloat16)

            head_out = jnp.dot(p, vh, preferred_element_type=jnp.float32)  # (q_chunk, hs)

            # Fold the output projection; accumulate into the lane-dense VMEM scratch.
            acc_ref[...] += jnp.dot(head_out.astype(jnp.bfloat16), wp_all[s:e, :],
                                    preferred_element_type=jnp.float32)

        out_ref[0, q0:q0 + q_chunk, :] = (acc_ref[...] + bias).astype(out_ref.dtype)


@jax.jit
def multihead_forward(x, wq, wk, wv, wp, bp):
    """x: (B, T, C) f32; wq/wk/wv: (H, C, hs); wp: (C, C); bp: (1, C). Returns (B, T, C)."""
    B, T, C = x.shape
    assert C == N_EMBEDDING and T <= BLOCK_SIZE
    q_chunk = min(T, 128)
    assert T % q_chunk == 0

    # --- wrapper-side layout plumbing (free): fuse & pre-scale weights --------
    scale = jnp.float32(C) ** -0.5                       # module scales scores by C**-0.5
    wq_f = jnp.transpose(wq, (1, 0, 2)).reshape(C, C) * scale
    wk_f = jnp.transpose(wk, (1, 0, 2)).reshape(C, C)
    wv_f = jnp.transpose(wv, (1, 0, 2)).reshape(C, C)
    wqkv_bf = jnp.concatenate([wq_f, wk_f, wv_f], axis=-1).astype(jnp.bfloat16)   # (C, 3C)

    x_bf = x.astype(jnp.bfloat16)
    wp_bf = wp.astype(jnp.bfloat16)
    bp_f32 = bp.astype(jnp.float32)

    kernel = functools.partial(_multihead_kernel, q_chunk=q_chunk, n_heads=N_HEADS)

    return pl.pallas_call(
        kernel,
        out_shape=jax.ShapeDtypeStruct((B, T, C), x.dtype),
        grid_spec=pltpu.PrefetchScalarGridSpec(
            num_scalar_prefetch=0,
            grid=(B,),
            in_specs=[
                pl.BlockSpec((1, T, C), lambda b: (b, 0, 0)),      # x (one batch row)
                pl.BlockSpec((C, 3 * C), lambda b: (0, 0)),        # Wq|Wk|Wv (fused, scaled)
                pl.BlockSpec((C, C), lambda b: (0, 0)),            # Wp
                pl.BlockSpec((1, C), lambda b: (0, 0)),            # bp
            ],
            out_specs=pl.BlockSpec((1, T, C), lambda b: (b, 0, 0)),
            scratch_shapes=[pltpu.VMEM((q_chunk, C), jnp.float32)],
        ),
        compiler_params=pltpu.CompilerParams(
            dimension_semantics=("parallel",)),
    )(x_bf, wqkv_bf, wp_bf, bp_f32)


def reference_forward(x, wq, wk, wv, wp, bp):
    """Pure-JAX f32 reference mirroring the PyTorch module (eval mode)."""
    B, T, C = x.shape
    scale = jnp.float32(C) ** -0.5
    causal = jnp.tril(jnp.ones((T, T), dtype=bool))
    outs = []
    for h in range(N_HEADS):
        q = x @ wq[h]
        k = x @ wk[h]
        v = x @ wv[h]
        wei = (q @ jnp.swapaxes(k, -1, -2)) * scale
        wei = jnp.where(causal[None], wei, -jnp.inf)
        wei = jax.nn.softmax(wei, axis=-1)
        outs.append(wei @ v)
    concat = jnp.concatenate(outs, axis=-1)
    return concat @ wp + bp[0]


if __name__ == "__main__":
    key = jax.random.PRNGKey(0)
    B, T = 4, 256

    k_x, k_q, k_k, k_v, k_p, k_b = jax.random.split(key, 6)
    x = jax.random.normal(k_x, (B, T, N_EMBEDDING), dtype=jnp.float32)

    # Deterministic parameter init (matching the shapes nn.Linear would create,
    # stored pre-transposed for right-multiplication).
    w_scale = 1.0 / (N_EMBEDDING ** 0.5)
    wq = jax.random.normal(k_q, (N_HEADS, N_EMBEDDING, HEAD_SIZE), jnp.float32) * w_scale
    wk = jax.random.normal(k_k, (N_HEADS, N_EMBEDDING, HEAD_SIZE), jnp.float32) * w_scale
    wv = jax.random.normal(k_v, (N_HEADS, N_EMBEDDING, HEAD_SIZE), jnp.float32) * w_scale
    wp = jax.random.normal(k_p, (N_EMBEDDING, N_EMBEDDING), jnp.float32) * w_scale
    bp = jax.random.normal(k_b, (1, N_EMBEDDING), jnp.float32) * 0.01

    out = multihead_forward(x, wq, wk, wv, wp, bp)
    out = jax.block_until_ready(out)

    ref = reference_forward(x, wq, wk, wv, wp, bp)
    assert out.shape == (B, T, N_EMBEDDING)
    # bf16 matmul operands + approx reciprocal => loosened tolerance vs f32 ref.
    assert jnp.allclose(out, ref, atol=5e-2, rtol=5e-2), "mismatch vs JAX reference"

    print("KERNEL_OK")
</pallas_src>

<mosaic_0001>
module attributes {stable_mosaic.version = 11 : i64} {
  func.func @_multihead_kernel(%arg0: i32, %arg1: memref<1x256x128xbf16, #tpu.memory_space<vmem>>, %arg2: memref<128x384xbf16, #tpu.memory_space<vmem>>, %arg3: memref<128x128xbf16, #tpu.memory_space<vmem>>, %arg4: memref<1x128xf32, #tpu.memory_space<vmem>>, %arg5: memref<1x256x128xf32, #tpu.memory_space<vmem>>, %arg6: memref<128x128xf32, #tpu.memory_space<vmem>>) attributes {dimension_semantics = [#tpu.dimension_semantics<parallel>], iteration_bounds = array<i64: 4>, scalar_prefetch = 0 : i64, scratch_operands = 1 : i64, tpu.core_type = #tpu.core_type<tc>, window_params = [{transform_indices = @transform_0, window_bounds = array<i64: 1, 256, 128>}, {pipeline_mode = #tpu.pipeline_mode<synchronous>, transform_indices = @transform_1, window_bounds = array<i64: 128, 384>}, {pipeline_mode = #tpu.pipeline_mode<synchronous>, transform_indices = @transform_2, window_bounds = array<i64: 128, 128>}, {pipeline_mode = #tpu.pipeline_mode<synchronous>, transform_indices = @transform_3, window_bounds = array<i64: 1, 128>}, {transform_indices = @transform_4, window_bounds = array<i64: 1, 256, 128>}]} {
    %c0 = arith.constant 0 : index
    %c0_0 = arith.constant 0 : index
    %c0_1 = arith.constant 0 : index
    %0 = vector.load %arg1[%c0, %c0_0, %c0_1] : memref<1x256x128xbf16, #tpu.memory_space<vmem>>, vector<1x256x128xbf16>
    %1 = vector.shape_cast %0 : vector<1x256x128xbf16> to vector<256x128xbf16>
    %c0_2 = arith.constant 0 : index
    %c0_3 = arith.constant 0 : index
    %2 = vector.load %arg2[%c0_2, %c0_3] : memref<128x384xbf16, #tpu.memory_space<vmem>>, vector<128x384xbf16>
    %cst = arith.constant dense<0.000000e+00> : vector<256x384xf32>
    %3 = tpu.matmul %1, %2, %cst {dimension_numbers = #tpu.dot_dimension_numbers<[1], [0], [0], [1], [0, 0, 1, 1], [], []>} : vector<256x128xbf16>, vector<128x384xbf16>, vector<256x384xf32> -> vector<256x384xf32>
    %4 = arith.truncf %3 : vector<256x384xf32> to vector<256x384xbf16>
    %5 = vector.extract_strided_slice %4 {offsets = [0, 0], sizes = [256, 128], strides = [1, 1]} : vector<256x384xbf16> to vector<256x128xbf16>
    %6 = vector.extract_strided_slice %4 {offsets = [0, 128], sizes = [256, 128], strides = [1, 1]} : vector<256x384xbf16> to vector<256x128xbf16>
    %7 = vector.extract_strided_slice %4 {offsets = [0, 256], sizes = [256, 128], strides = [1, 1]} : vector<256x384xbf16> to vector<256x128xbf16>
    %c0_4 = arith.constant 0 : index
    %c0_5 = arith.constant 0 : index
    %8 = vector.load %arg3[%c0_4, %c0_5] : memref<128x128xbf16, #tpu.memory_space<vmem>>, vector<128x128xbf16>
    %c0_6 = arith.constant 0 : index
    %c0_7 = arith.constant 0 : index
    %9 = vector.load %arg4[%c0_6, %c0_7] : memref<1x128xf32, #tpu.memory_space<vmem>>, vector<1x128xf32>
    %10 = tpu.iota {dimensions = array<i32: 0>} : vector<128x1xi32>
    %c0_i32 = arith.constant 0 : i32
    %11 = vector.broadcast %c0_i32 : i32 to vector<128x1xi32>
    %12 = arith.addi %11, %10 : vector<128x1xi32>
    %13 = tpu.iota {dimensions = array<i32: 1>} : vector<1x128xi32>
    %cst_8 = arith.constant 0.000000e+00 : f32
    %14 = vector.broadcast %cst_8 : f32 to vector<128x128xf32>
    %c0_9 = arith.constant 0 : index
    %c0_10 = arith.constant 0 : index
    %15 = vector.load %arg6[%c0_9, %c0_10] : memref<128x128xf32, #tpu.memory_space<vmem>>, vector<128x128xf32>
    tpu.vector_store %arg6[%c0_9, %c0_10], %14 {strides = array<i32>} : memref<128x128xf32, #tpu.memory_space<vmem>>, vector<128x128xf32>,
    %16 = vector.extract_strided_slice %5 {offsets = [0, 0], sizes = [128, 32], strides = [1, 1]} : vector<256x128xbf16> to vector<128x32xbf16>
    %17 = vector.extract_strided_slice %6 {offsets = [0, 0], sizes = [128, 32], strides = [1, 1]} : vector<256x128xbf16> to vector<128x32xbf16>
    %18 = vector.extract_strided_slice %7 {offsets = [0, 0], sizes = [128, 32], strides = [1, 1]} : vector<256x128xbf16> to vector<128x32xbf16>
    %cst_11 = arith.constant dense<0.000000e+00> : vector<128x128xf32>
    %19 = tpu.matmul %16, %17, %cst_11 {dimension_numbers = #tpu.dot_dimension_numbers<[1], [1], [0], [0], [0, 0, 1, 0], [], []>} : vector<128x32xbf16>, vector<128x32xbf16>, vector<128x128xf32> -> vector<128x128xf32>
    %20 = vector.broadcast %13 : vector<1x128xi32> to vector<128x128xi32>
    %21 = vector.broadcast %12 : vector<128x1xi32> to vector<128x128xi32>
    %22 = arith.cmpi sle, %20, %21 : vector<128x128xi32>
    %cst_12 = arith.constant -1.000000e+30 : f32
    %23 = vector.broadcast %cst_12 : f32 to vector<128x128xf32>
    %24 = arith.select %22, %19, %23 : vector<128x128xi1>, vector<128x128xf32>
    %cst_13 = arith.constant dense<0xFF800000> : vector<128xf32>
    %25 = vector.multi_reduction <maximumf>, %24, %cst_13 [1] : vector<128x128xf32> to vector<128xf32>
    %26 = vector.shape_cast %25 : vector<128xf32> to vector<128x1xf32>
    %27 = vector.broadcast %26 : vector<128x1xf32> to vector<128x128xf32>
    %28 = arith.subf %24, %27 : vector<128x128xf32>
    %29 = math.exp %28 : vector<128x128xf32>
    %cst_14 = arith.constant dense<0.000000e+00> : vector<128xf32>
    %30 = vector.multi_reduction <add>, %29, %cst_14 [1] : vector<128x128xf32> to vector<128xf32>
    %31 = vector.shape_cast %30 : vector<128xf32> to vector<128x1xf32>
    %32 = tpu.reciprocal %31 {approx = true} : vector<128x1xf32> -> vector<128x1xf32>
    %33 = vector.broadcast %32 : vector<128x1xf32> to vector<128x128xf32>
    %34 = arith.mulf %29, %33 : vector<128x128xf32>
    %35 = arith.truncf %34 : vector<128x128xf32> to vector<128x128xbf16>
    %cst_15 = arith.constant dense<0.000000e+00> : vector<128x32xf32>
    %36 = tpu.matmul %35, %18, %cst_15 {dimension_numbers = #tpu.dot_dimension_numbers<[1], [0], [0], [1], [0, 0, 1, 1], [], []>} : vector<128x128xbf16>, vector<128x32xbf16>, vector<128x32xf32> -> vector<128x32xf32>
    %c0_16 = arith.constant 0 : index
    %c0_17 = arith.constant 0 : index
    %37 = vector.load %arg6[%c0_16, %c0_17] : memref<128x128xf32, #tpu.memory_space<vmem>>, vector<128x128xf32>
    %38 = arith.truncf %36 : vector<128x32xf32> to vector<128x32xbf16>
    %39 = vector.extract_strided_slice %8 {offsets = [0, 0], sizes = [32, 128], strides = [1, 1]} : vector<128x128xbf16> to vector<32x128xbf16>
    %cst_18 = arith.constant dense<0.000000e+00> : vector<128x128xf32>
    %40 = tpu.matmul %38, %39, %cst_18 {dimension_numbers = #tpu.dot_dimension_numbers<[1], [0], [0], [1], [0, 0, 1, 1], [], []>} : vector<128x32xbf16>, vector<32x128xbf16>, vector<128x128xf32> -> vector<128x128xf32>
    %41 = arith.addf %37, %40 : vector<128x128xf32>
    %c0_19 = arith.constant 0 : index
    %c0_20 = arith.constant 0 : index
    %42 = vector.load %arg6[%c0_19, %c0_20] : memref<128x128xf32, #tpu.memory_space<vmem>>, vector<128x128xf32>
    tpu.vector_store %arg6[%c0_19, %c0_20], %41 {strides = array<i32>} : memref<128x128xf32, #tpu.memory_space<vmem>>, vector<128x128xf32>,
    %43 = vector.extract_strided_slice %5 {offsets = [0, 32], sizes = [128, 32], strides = [1, 1]} : vector<256x128xbf16> to vector<128x32xbf16>
    %44 = vector.extract_strided_slice %6 {offsets = [0, 32], sizes = [128, 32], strides = [1, 1]} : vector<256x128xbf16> to vector<128x32xbf16>
    %45 = vector.extract_strided_slice %7 {offsets = [0, 32], sizes = [128, 32], strides = [1, 1]} : vector<256x128xbf16> to vector<128x32xbf16>
    %cst_21 = arith.constant dense<0.000000e+00> : vector<128x128xf32>
    %46 = tpu.matmul %43, %44, %cst_21 {dimension_numbers = #tpu.dot_dimension_numbers<[1], [1], [0], [0], [0, 0, 1, 0], [], []>} : vector<128x32xbf16>, vector<128x32xbf16>, vector<128x128xf32> -> vector<128x128xf32>
    %47 = vector.broadcast %13 : vector<1x128xi32> to vector<128x128xi32>
    %48 = vector.broadcast %12 : vector<128x1xi32> to vector<128x128xi32>
    %49 = arith.cmpi sle, %47, %48 : vector<128x128xi32>
    %cst_22 = arith.constant -1.000000e+30 : f32
    %50 = vector.broadcast %cst_22 : f32 to vector<128x128xf32>
    %51 = arith.select %49, %46, %50 : vector<128x128xi1>, vector<128x128xf32>
    %cst_23 = arith.constant dense<0xFF800000> : vector<128xf32>
    %52 = vector.multi_reduction <maximumf>, %51, %cst_23 [1] : vector<128x128xf32> to vector<128xf32>
    %53 = vector.shape_cast %52 : vector<128xf32> to vector<128x1xf32>
    %54 = vector.broadcast %53 : vector<128x1xf32> to vector<128x128xf32>
    %55 = arith.subf %51, %54 : vector<128x128xf32>
    %56 = math.exp %55 : vector<128x128xf32>
    %cst_24 = arith.constant dense<0.000000e+00> : vector<128xf32>
    %57 = vector.multi_reduction <add>, %56, %cst_24 [1] : vector<128x128xf32> to vector<128xf32>
    %58 = vector.shape_cast %57 : vector<128xf32> to vector<128x1xf32>
    %59 = tpu.reciprocal %58 {approx = true} : vector<128x1xf32> -> vector<128x1xf32>
    %60 = vector.broadcast %59 : vector<128x1xf32> to vector<128x128xf32>
    %61 = arith.mulf %56, %60 : vector<128x128xf32>
    %62 = arith.truncf %61 : vector<128x128xf32> to vector<128x128xbf16>
    %cst_25 = arith.constant dense<0.000000e+00> : vector<128x32xf32>
    %63 = tpu.matmul %62, %45, %cst_25 {dimension_numbers = #tpu.dot_dimension_numbers<[1], [0], [0], [1], [0, 0, 1, 1], [], []>} : vector<128x128xbf16>, vector<128x32xbf16>, vector<128x32xf32> -> vector<128x32xf32>
    %c0_26 = arith.constant 0 : index
    %c0_27 = arith.constant 0 : index
    %64 = vector.load %arg6[%c0_26, %c0_27] : memref<128x128xf32, #tpu.memory_space<vmem>>, vector<128x128xf32>
    %65 = arith.truncf %63 : vector<128x32xf32> to vector<128x32xbf16>
    %66 = vector.extract_strided_slice %8 {offsets = [32, 0], sizes = [32, 128], strides = [1, 1]} : vector<128x128xbf16> to vector<32x128xbf16>
    %cst_28 = arith.constant dense<0.000000e+00> : vector<128x128xf32>
    %67 = tpu.matmul %65, %66, %cst_28 {dimension_numbers = #tpu.dot_dimension_numbers<[1], [0], [0], [1], [0, 0, 1, 1], [], []>} : vector<128x32xbf16>, vector<32x128xbf16>, vector<128x128xf32> -> vector<128x128xf32>
    %68 = arith.addf %64, %67 : vector<128x128xf32>
    %c0_29 = arith.constant 0 : index
    %c0_30 = arith.constant 0 : index
    %69 = vector.load %arg6[%c0_29, %c0_30] : memref<128x128xf32, #tpu.memory_space<vmem>>, vector<128x128xf32>
    tpu.vector_store %arg6[%c0_29, %c0_30], %68 {strides = array<i32>} : memref<128x128xf32, #tpu.memory_space<vmem>>, vector<128x128xf32>,
    %70 = vector.extract_strided_slice %5 {offsets = [0, 64], sizes = [128, 32], strides = [1, 1]} : vector<256x128xbf16> to vector<128x32xbf16>
    %71 = vector.extract_strided_slice %6 {offsets = [0, 64], sizes = [128, 32], strides = [1, 1]} : vector<256x128xbf16> to vector<128x32xbf16>
    %72 = vector.extract_strided_slice %7 {offsets = [0, 64], sizes = [128, 32], strides = [1, 1]} : vector<256x128xbf16> to vector<128x32xbf16>
    %cst_31 = arith.constant dense<0.000000e+00> : vector<128x128xf32>
    %73 = tpu.matmul %70, %71, %cst_31 {dimension_numbers = #tpu.dot_dimension_numbers<[1], [1], [0], [0], [0, 0, 1, 0], [], []>} : vector<128x32xbf16>, vector<128x32xbf16>, vector<128x128xf32> -> vector<128x128xf32>
    %74 = vector.broadcast %13 : vector<1x128xi32> to vector<128x128xi32>
    %75 = vector.broadcast %12 : vector<128x1xi32> to vector<128x128xi32>
    %76 = arith.cmpi sle, %74, %75 : vector<128x128xi32>
    %cst_32 = arith.constant -1.000000e+30 : f32
    %77 = vector.broadcast %cst_32 : f32 to vector<128x128xf32>
    %78 = arith.select %76, %73, %77 : vector<128x128xi1>, vector<128x128xf32>
    %cst_33 = arith.constant dense<0xFF800000> : vector<128xf32>
    %79 = vector.multi_reduction <maximumf>, %78, %cst_33 [1] : vector<128x128xf32> to vector<128xf32>
    %80 = vector.shape_cast %79 : vector<128xf32> to vector<128x1xf32>
    %81 = vector.broadcast %80 : vector<128x1xf32> to vector<128x128xf32>
    %82 = arith.subf %78, %81 : vector<128x128xf32>
    %83 = math.exp %82 : vector<128x128xf32>
    %cst_34 = arith.constant dense<0.000000e+00> : vector<128xf32>
    %84 = vector.multi_reduction <add>, %83, %cst_34 [1] : vector<128x128xf32> to vector<128xf32>
    %85 = vector.shape_cast %84 : vector<128xf32> to vector<128x1xf32>
    %86 = tpu.reciprocal %85 {approx = true} : vector<128x1xf32> -> vector<128x1xf32>
    %87 = vector.broadcast %86 : vector<128x1xf32> to vector<128x128xf32>
    %88 = arith.mulf %83, %87 : vector<128x128xf32>
    %89 = arith.truncf %88 : vector<128x128xf32> to vector<128x128xbf16>
    %cst_35 = arith.constant dense<0.000000e+00> : vector<128x32xf32>
    %90 = tpu.matmul %89, %72, %cst_35 {dimension_numbers = #tpu.dot_dimension_numbers<[1], [0], [0], [1], [0, 0, 1, 1], [], []>} : vector<128x128xbf16>, vector<128x32xbf16>, vector<128x32xf32> -> vector<128x32xf32>
    %c0_36 = arith.constant 0 : index
    %c0_37 = arith.constant 0 : index
    %91 = vector.load %arg6[%c0_36, %c0_37] : memref<128x128xf32, #tpu.memory_space<vmem>>, vector<128x128xf32>
    %92 = arith.truncf %90 : vector<128x32xf32> to vector<128x32xbf16>
    %93 = vector.extract_strided_slice %8 {offsets = [64, 0], sizes = [32, 128], strides = [1, 1]} : vector<128x128xbf16> to vector<32x128xbf16>
    %cst_38 = arith.constant dense<0.000000e+00> : vector<128x128xf32>
    %94 = tpu.matmul %92, %93, %cst_38 {dimension_numbers = #tpu.dot_dimension_numbers<[1], [0], [0], [1], [0, 0, 1, 1], [], []>} : vector<128x32xbf16>, vector<32x128xbf16>, vector<128x128xf32> -> vector<128x128xf32>
    %95 = arith.addf %91, %94 : vector<128x128xf32>
    %c0_39 = arith.constant 0 : index
    %c0_40 = arith.constant 0 : index
    %96 = vector.load %arg6[%c0_39, %c0_40] : memref<128x128xf32, #tpu.memory_space<vmem>>, vector<128x128xf32>
    tpu.vector_store %arg6[%c0_39, %c0_40], %95 {strides = array<i32>} : memref<128x128xf32, #tpu.memory_space<vmem>>, vector<128x128xf32>,
    %97 = vector.extract_strided_slice %5 {offsets = [0, 96], sizes = [128, 32], strides = [1, 1]} : vector<256x128xbf16> to vector<128x32xbf16>
    %98 = vector.extract_strided_slice %6 {offsets = [0, 96], sizes = [128, 32], strides = [1, 1]} : vector<256x128xbf16> to vector<128x32xbf16>
    %99 = vector.extract_strided_slice %7 {offsets = [0, 96], sizes = [128, 32], strides = [1, 1]} : vector<256x128xbf16> to vector<128x32xbf16>
    %cst_41 = arith.constant dense<0.000000e+00> : vector<128x128xf32>
    %100 = tpu.matmul %97, %98, %cst_41 {dimension_numbers = #tpu.dot_dimension_numbers<[1], [1], [0], [0], [0, 0, 1, 0], [], []>} : vector<128x32xbf16>, vector<128x32xbf16>, vector<128x128xf32> -> vector<128x128xf32>
    %101 = vector.broadcast %13 : vector<1x128xi32> to vector<128x128xi32>
    %102 = vector.broadcast %12 : vector<128x1xi32> to vector<128x128xi32>
    %103 = arith.cmpi sle, %101, %102 : vector<128x128xi32>
    %cst_42 = arith.constant -1.000000e+30 : f32
    %104 = vector.broadcast %cst_42 : f32 to vector<128x128xf32>
    %105 = arith.select %103, %100, %104 : vector<128x128xi1>, vector<128x128xf32>
    %cst_43 = arith.constant dense<0xFF800000> : vector<128xf32>
    %106 = vector.multi_reduction <maximumf>, %105, %cst_43 [1] : vector<128x128xf32> to vector<128xf32>
    %107 = vector.shape_cast %106 : vector<128xf32> to vector<128x1xf32>
    %108 = vector.broadcast %107 : vector<128x1xf32> to vector<128x128xf32>
    %109 = arith.subf %105, %108 : vector<128x128xf32>
    %110 = math.exp %109 : vector<128x128xf32>
    %cst_44 = arith.constant dense<0.000000e+00> : vector<128xf32>
    %111 = vector.multi_reduction <add>, %110, %cst_44 [1] : vector<128x128xf32> to vector<128xf32>
    %112 = vector.shape_cast %111 : vector<128xf32> to vector<128x1xf32>
    %113 = tpu.reciprocal %112 {approx = true} : vector<128x1xf32> -> vector<128x1xf32>
    %114 = vector.broadcast %113 : vector<128x1xf32> to vector<128x128xf32>
    %115 = arith.mulf %110, %114 : vector<128x128xf32>
    %116 = arith.truncf %115 : vector<128x128xf32> to vector<128x128xbf16>
    %cst_45 = arith.constant dense<0.000000e+00> : vector<128x32xf32>
    %117 = tpu.matmul %116, %99, %cst_45 {dimension_numbers = #tpu.dot_dimension_numbers<[1], [0], [0], [1], [0, 0, 1, 1], [], []>} : vector<128x128xbf16>, vector<128x32xbf16>, vector<128x32xf32> -> vector<128x32xf32>
    %c0_46 = arith.constant 0 : index
    %c0_47 = arith.constant 0 : index
    %118 = vector.load %arg6[%c0_46, %c0_47] : memref<128x128xf32, #tpu.memory_space<vmem>>, vector<128x128xf32>
    %119 = arith.truncf %117 : vector<128x32xf32> to vector<128x32xbf16>
    %120 = vector.extract_strided_slice %8 {offsets = [96, 0], sizes = [32, 128], strides = [1, 1]} : vector<128x128xbf16> to vector<32x128xbf16>
    %cst_48 = arith.constant dense<0.000000e+00> : vector<128x128xf32>
    %121 = tpu.matmul %119, %120, %cst_48 {dimension_numbers = #tpu.dot_dimension_numbers<[1], [0], [0], [1], [0, 0, 1, 1], [], []>} : vector<128x32xbf16>, vector<32x128xbf16>, vector<128x128xf32> -> vector<128x128xf32>
    %122 = arith.addf %118, %121 : vector<128x128xf32>
    %c0_49 = arith.constant 0 : index
    %c0_50 = arith.constant 0 : index
    %123 = vector.load %arg6[%c0_49, %c0_50] : memref<128x128xf32, #tpu.memory_space<vmem>>, vector<128x128xf32>
    tpu.vector_store %arg6[%c0_49, %c0_50], %122 {strides = array<i32>} : memref<128x128xf32, #tpu.memory_space<vmem>>, vector<128x128xf32>,
    %c0_51 = arith.constant 0 : index
    %c0_52 = arith.constant 0 : index
    %124 = vector.load %arg6[%c0_51, %c0_52] : memref<128x128xf32, #tpu.memory_space<vmem>>, vector<128x128xf32>
    %125 = vector.broadcast %9 : vector<1x128xf32> to vector<128x128xf32>
    %126 = arith.addf %124, %125 : vector<128x128xf32>
    %c0_53 = arith.constant 0 : index
    %c0_54 = arith.constant 0 : index
    %c0_55 = arith.constant 0 : index
    %127 = vector.load %arg5[%c0_53, %c0_54, %c0_55] : memref<1x256x128xf32, #tpu.memory_space<vmem>>, vector<1x128x128xf32>
    %128 = vector.shape_cast %127 : vector<1x128x128xf32> to vector<128x128xf32>
    %129 = vector.shape_cast %126 : vector<128x128xf32> to vector<1x128x128xf32>
    tpu.vector_store %arg5[%c0_53, %c0_54, %c0_55], %129 {strides = array<i32>} : memref<1x256x128xf32, #tpu.memory_space<vmem>>, vector<1x128x128xf32>,
    %130 = tpu.iota {dimensions = array<i32: 0>} : vector<128x1xi32>
    %c128_i32 = arith.constant 128 : i32
    %131 = vector.broadcast %c128_i32 : i32 to vector<128x1xi32>
    %132 = arith.addi %131, %130 : vector<128x1xi32>
    %133 = tpu.iota {dimensions = array<i32: 1>} : vector<1x256xi32>
    %cst_56 = arith.constant 0.000000e+00 : f32
    %134 = vector.broadcast %cst_56 : f32 to vector<128x128xf32>
    %c0_57 = arith.constant 0 : index
    %c0_58 = arith.constant 0 : index
    %135 = vector.load %arg6[%c0_57, %c0_58] : memref<128x128xf32, #tpu.memory_space<vmem>>, vector<128x128xf32>
    tpu.vector_store %arg6[%c0_57, %c0_58], %134 {strides = array<i32>} : memref<128x128xf32, #tpu.memory_space<vmem>>, vector<128x128xf32>,
    %136 = vector.extract_strided_slice %5 {offsets = [128, 0], sizes = [128, 32], strides = [1, 1]} : vector<256x128xbf16> to vector<128x32xbf16>
    %137 = vector.extract_strided_slice %6 {offsets = [0, 0], sizes = [256, 32], strides = [1, 1]} : vector<256x128xbf16> to vector<256x32xbf16>
    %138 = vector.extract_strided_slice %7 {offsets = [0, 0], sizes = [256, 32], strides = [1, 1]} : vector<256x128xbf16> to vector<256x32xbf16>
    %cst_59 = arith.constant dense<0.000000e+00> : vector<128x256xf32>
    %139 = tpu.matmul %136, %137, %cst_59 {dimension_numbers = #tpu.dot_dimension_numbers<[1], [1], [0], [0], [0, 0, 1, 0], [], []>} : vector<128x32xbf16>, vector<256x32xbf16>, vector<128x256xf32> -> vector<128x256xf32>
    %140 = vector.broadcast %133 : vector<1x256xi32> to vector<128x256xi32>
    %141 = vector.broadcast %132 : vector<128x1xi32> to vector<128x256xi32>
    %142 = arith.cmpi sle, %140, %141 : vector<128x256xi32>
    %cst_60 = arith.constant -1.000000e+30 : f32
    %143 = vector.broadcast %cst_60 : f32 to vector<128x256xf32>
    %144 = arith.select %142, %139, %143 : vector<128x256xi1>, vector<128x256xf32>
    %cst_61 = arith.constant dense<0xFF800000> : vector<128xf32>
    %145 = vector.multi_reduction <maximumf>, %144, %cst_61 [1] : vector<128x256xf32> to vector<128xf32>
    %146 = vector.shape_cast %145 : vector<128xf32> to vector<128x1xf32>
    %147 = vector.broadcast %146 : vector<128x1xf32> to vector<128x256xf32>
    %148 = arith.subf %144, %147 : vector<128x256xf32>
    %149 = math.exp %148 : vector<128x256xf32>
    %cst_62 = arith.constant dense<0.000000e+00> : vector<128xf32>
    %150 = vector.multi_reduction <add>, %149, %cst_62 [1] : vector<128x256xf32> to vector<128xf32>
    %151 = vector.shape_cast %150 : vector<128xf32> to vector<128x1xf32>
    %152 = tpu.reciprocal %151 {approx = true} : vector<128x1xf32> -> vector<128x1xf32>
    %153 = vector.broadcast %152 : vector<128x1xf32> to vector<128x256xf32>
    %154 = arith.mulf %149, %153 : vector<128x256xf32>
    %155 = arith.truncf %154 : vector<128x256xf32> to vector<128x256xbf16>
    %cst_63 = arith.constant dense<0.000000e+00> : vector<128x32xf32>
    %156 = tpu.matmul %155, %138, %cst_63 {dimension_numbers = #tpu.dot_dimension_numbers<[1], [0], [0], [1], [0, 0, 1, 1], [], []>} : vector<128x256xbf16>, vector<256x32xbf16>, vector<128x32xf32> -> vector<128x32xf32>
    %c0_64 = arith.constant 0 : index
    %c0_65 = arith.constant 0 : index
    %157 = vector.load %arg6[%c0_64, %c0_65] : memref<128x128xf32, #tpu.memory_space<vmem>>, vector<128x128xf32>
    %158 = arith.truncf %156 : vector<128x32xf32> to vector<128x32xbf16>
    %159 = vector.extract_strided_slice %8 {offsets = [0, 0], sizes = [32, 128], strides = [1, 1]} : vector<128x128xbf16> to vector<32x128xbf16>
    %cst_66 = arith.constant dense<0.000000e+00> : vector<128x128xf32>
    %160 = tpu.matmul %158, %159, %cst_66 {dimension_numbers = #tpu.dot_dimension_numbers<[1], [0], [0], [1], [0, 0, 1, 1], [], []>} : vector<128x32xbf16>, vector<32x128xbf16>, vector<128x128xf32> -> vector<128x128xf32>
    %161 = arith.addf %157, %160 : vector<128x128xf32>
    %c0_67 = arith.constant 0 : index
    %c0_68 = arith.constant 0 : index
    %162 = vector.load %arg6[%c0_67, %c0_68] : memref<128x128xf32, #tpu.memory_space<vmem>>, vector<128x128xf32>
    tpu.vector_store %arg6[%c0_67, %c0_68], %161 {strides = array<i32>} : memref<128x128xf32, #tpu.memory_space<vmem>>, vector<128x128xf32>,
    %163 = vector.extract_strided_slice %5 {offsets = [128, 32], sizes = [128, 32], strides = [1, 1]} : vector<256x128xbf16> to vector<128x32xbf16>
    %164 = vector.extract_strided_slice %6 {offsets = [0, 32], sizes = [256, 32], strides = [1, 1]} : vector<256x128xbf16> to vector<256x32xbf16>
    %165 = vector.extract_strided_slice %7 {offsets = [0, 32], sizes = [256, 32], strides = [1, 1]} : vector<256x128xbf16> to vector<256x32xbf16>
    %cst_69 = arith.constant dense<0.000000e+00> : vector<128x256xf32>
    %166 = tpu.matmul %163, %164, %cst_69 {dimension_numbers = #tpu.dot_dimension_numbers<[1], [1], [0], [0], [0, 0, 1, 0], [], []>} : vector<128x32xbf16>, vector<256x32xbf16>, vector<128x256xf32> -> vector<128x256xf32>
    %167 = vector.broadcast %133 : vector<1x256xi32> to vector<128x256xi32>
    %168 = vector.broadcast %132 : vector<128x1xi32> to vector<128x256xi32>
    %169 = arith.cmpi sle, %167, %168 : vector<128x256xi32>
    %cst_70 = arith.constant -1.000000e+30 : f32
    %170 = vector.broadcast %cst_70 : f32 to vector<128x256xf32>
    %171 = arith.select %169, %166, %170 : vector<128x256xi1>, vector<128x256xf32>
    %cst_71 = arith.constant dense<0xFF800000> : vector<128xf32>
    %172 = vector.multi_reduction <maximumf>, %171, %cst_71 [1] : vector<128x256xf32> to vector<128xf32>
    %173 = vector.shape_cast %172 : vector<128xf32> to vector<128x1xf32>
    %174 = vector.broadcast %173 : vector<128x1xf32> to vector<128x256xf32>
    %175 = arith.subf %171, %174 : vector<128x256xf32>
    %176 = math.exp %175 : vector<128x256xf32>
    %cst_72 = arith.constant dense<0.000000e+00> : vector<128xf32>
    %177 = vector.multi_reduction <add>, %176, %cst_72 [1] : vector<128x256xf32> to vector<128xf32>
    %178 = vector.shape_cast %177 : vector<128xf32> to vector<128x1xf32>
    %179 = tpu.reciprocal %178 {approx = true} : vector<128x1xf32> -> vector<128x1xf32>
    %180 = vector.broadcast %179 : vector<128x1xf32> to vector<128x256xf32>
    %181 = arith.mulf %176, %180 : vector<128x256xf32>
    %182 = arith.truncf %181 : vector<128x256xf32> to vector<128x256xbf16>
    %cst_73 = arith.constant dense<0.000000e+00> : vector<128x32xf32>
    %183 = tpu.matmul %182, %165, %cst_73 {dimension_numbers = #tpu.dot_dimension_numbers<[1], [0], [0], [1], [0, 0, 1, 1], [], []>} : vector<128x256xbf16>, vector<256x32xbf16>, vector<128x32xf32> -> vector<128x32xf32>
    %c0_74 = arith.constant 0 : index
    %c0_75 = arith.constant 0 : index
    %184 = vector.load %arg6[%c0_74, %c0_75] : memref<128x128xf32, #tpu.memory_space<vmem>>, vector<128x128xf32>
    %185 = arith.truncf %183 : vector<128x32xf32> to vector<128x32xbf16>
    %186 = vector.extract_strided_slice %8 {offsets = [32, 0], sizes = [32, 128], strides = [1, 1]} : vector<128x128xbf16> to vector<32x128xbf16>
    %cst_76 = arith.constant dense<0.000000e+00> : vector<128x128xf32>
    %187 = tpu.matmul %185, %186, %cst_76 {dimension_numbers = #tpu.dot_dimension_numbers<[1], [0], [0], [1], [0, 0, 1, 1], [], []>} : vector<128x32xbf16>, vector<32x128xbf16>, vector<128x128xf32> -> vector<128x128xf32>
    %188 = arith.addf %184, %187 : vector<128x128xf32>
    %c0_77 = arith.constant 0 : index
    %c0_78 = arith.constant 0 : index
    %189 = vector.load %arg6[%c0_77, %c0_78] : memref<128x128xf32, #tpu.memory_space<vmem>>, vector<128x128xf32>
    tpu.vector_store %arg6[%c0_77, %c0_78], %188 {strides = array<i32>} : memref<128x128xf32, #tpu.memory_space<vmem>>, vector<128x128xf32>,
    %190 = vector.extract_strided_slice %5 {offsets = [128, 64], sizes = [128, 32], strides = [1, 1]} : vector<256x128xbf16> to vector<128x32xbf16>
    %191 = vector.extract_strided_slice %6 {offsets = [0, 64], sizes = [256, 32], strides = [1, 1]} : vector<256x128xbf16> to vector<256x32xbf16>
    %192 = vector.extract_strided_slice %7 {offsets = [0, 64], sizes = [256, 32], strides = [1, 1]} : vector<256x128xbf16> to vector<256x32xbf16>
    %cst_79 = arith.constant dense<0.000000e+00> : vector<128x256xf32>
    %193 = tpu.matmul %190, %191, %cst_79 {dimension_numbers = #tpu.dot_dimension_numbers<[1], [1], [0], [0], [0, 0, 1, 0], [], []>} : vector<128x32xbf16>, vector<256x32xbf16>, vector<128x256xf32> -> vector<128x256xf32>
    %194 = vector.broadcast %133 : vector<1x256xi32> to vector<128x256xi32>
    %195 = vector.broadcast %132 : vector<128x1xi32> to vector<128x256xi32>
    %196 = arith.cmpi sle, %194, %195 : vector<128x256xi32>
    %cst_80 = arith.constant -1.000000e+30 : f32
    %197 = vector.broadcast %cst_80 : f32 to vector<128x256xf32>
    %198 = arith.select %196, %193, %197 : vector<128x256xi1>, vector<128x256xf32>
    %cst_81 = arith.constant dense<0xFF800000> : vector<128xf32>
    %199 = vector.multi_reduction <maximumf>, %198, %cst_81 [1] : vector<128x256xf32> to vector<128xf32>
    %200 = vector.shape_cast %199 : vector<128xf32> to vector<128x1xf32>
    %201 = vector.broadcast %200 : vector<128x1xf32> to vector<128x256xf32>
    %202 = arith.subf %198, %201 : vector<128x256xf32>
    %203 = math.exp %202 : vector<128x256xf32>
    %cst_82 = arith.constant dense<0.000000e+00> : vector<128xf32>
    %204 = vector.multi_reduction <add>, %203, %cst_82 [1] : vector<128x256xf32> to vector<128xf32>
    %205 = vector.shape_cast %204 : vector<128xf32> to vector<128x1xf32>
    %206 = tpu.reciprocal %205 {approx = true} : vector<128x1xf32> -> vector<128x1xf32>
    %207 = vector.broadcast %206 : vector<128x1xf32> to vector<128x256xf32>
    %208 = arith.mulf %203, %207 : vector<128x256xf32>
    %209 = arith.truncf %208 : vector<128x256xf32> to vector<128x256xbf16>
    %cst_83 = arith.constant dense<0.000000e+00> : vector<128x32xf32>
    %210 = tpu.matmul %209, %192, %cst_83 {dimension_numbers = #tpu.dot_dimension_numbers<[1], [0], [0], [1], [0, 0, 1, 1], [], []>} : vector<128x256xbf16>, vector<256x32xbf16>, vector<128x32xf32> -> vector<128x32xf32>
    %c0_84 = arith.constant 0 : index
    %c0_85 = arith.constant 0 : index
    %211 = vector.load %arg6[%c0_84, %c0_85] : memref<128x128xf32, #tpu.memory_space<vmem>>, vector<128x128xf32>
    %212 = arith.truncf %210 : vector<128x32xf32> to vector<128x32xbf16>
    %213 = vector.extract_strided_slice %8 {offsets = [64, 0], sizes = [32, 128], strides = [1, 1]} : vector<128x128xbf16> to vector<32x128xbf16>
    %cst_86 = arith.constant dense<0.000000e+00> : vector<128x128xf32>
    %214 = tpu.matmul %212, %213, %cst_86 {dimension_numbers = #tpu.dot_dimension_numbers<[1], [0], [0], [1], [0, 0, 1, 1], [], []>} : vector<128x32xbf16>, vector<32x128xbf16>, vector<128x128xf32> -> vector<128x128xf32>
    %215 = arith.addf %211, %214 : vector<128x128xf32>
    %c0_87 = arith.constant 0 : index
    %c0_88 = arith.constant 0 : index
    %216 = vector.load %arg6[%c0_87, %c0_88] : memref<128x128xf32, #tpu.memory_space<vmem>>, vector<128x128xf32>
    tpu.vector_store %arg6[%c0_87, %c0_88], %215 {strides = array<i32>} : memref<128x128xf32, #tpu.memory_space<vmem>>, vector<128x128xf32>,
    %217 = vector.extract_strided_slice %5 {offsets = [128, 96], sizes = [128, 32], strides = [1, 1]} : vector<256x128xbf16> to vector<128x32xbf16>
    %218 = vector.extract_strided_slice %6 {offsets = [0, 96], sizes = [256, 32], strides = [1, 1]} : vector<256x128xbf16> to vector<256x32xbf16>
    %219 = vector.extract_strided_slice %7 {offsets = [0, 96], sizes = [256, 32], strides = [1, 1]} : vector<256x128xbf16> to vector<256x32xbf16>
    %cst_89 = arith.constant dense<0.000000e+00> : vector<128x256xf32>
    %220 = tpu.matmul %217, %218, %cst_89 {dimension_numbers = #tpu.dot_dimension_numbers<[1], [1], [0], [0], [0, 0, 1, 0], [], []>} : vector<128x32xbf16>, vector<256x32xbf16>, vector<128x256xf32> -> vector<128x256xf32>
    %221 = vector.broadcast %133 : vector<1x256xi32> to vector<128x256xi32>
    %222 = vector.broadcast %132 : vector<128x1xi32> to vector<128x256xi32>
    %223 = arith.cmpi sle, %221, %222 : vector<128x256xi32>
    %cst_90 = arith.constant -1.000000e+30 : f32
    %224 = vector.broadcast %cst_90 : f32 to vector<128x256xf32>
    %225 = arith.select %223, %220, %224 : vector<128x256xi1>, vector<128x256xf32>
    %cst_91 = arith.constant dense<0xFF800000> : vector<128xf32>
    %226 = vector.multi_reduction <maximumf>, %225, %cst_91 [1] : vector<128x256xf32> to vector<128xf32>
    %227 = vector.shape_cast %226 : vector<128xf32> to vector<128x1xf32>
    %228 = vector.broadcast %227 : vector<128x1xf32> to vector<128x256xf32>
    %229 = arith.subf %225, %228 : vector<128x256xf32>
    %230 = math.exp %229 : vector<128x256xf32>
    %cst_92 = arith.constant dense<0.000000e+00> : vector<128xf32>
    %231 = vector.multi_reduction <add>, %230, %cst_92 [1] : vector<128x256xf32> to vector<128xf32>
    %232 = vector.shape_cast %231 : vector<128xf32> to vector<128x1xf32>
    %233 = tpu.reciprocal %232 {approx = true} : vector<128x1xf32> -> vector<128x1xf32>
    %234 = vector.broadcast %233 : vector<128x1xf32> to vector<128x256xf32>
    %235 = arith.mulf %230, %234 : vector<128x256xf32>
    %236 = arith.truncf %235 : vector<128x256xf32> to vector<128x256xbf16>
    %cst_93 = arith.constant dense<0.000000e+00> : vector<128x32xf32>
    %237 = tpu.matmul %236, %219, %cst_93 {dimension_numbers = #tpu.dot_dimension_numbers<[1], [0], [0], [1], [0, 0, 1, 1], [], []>} : vector<128x256xbf16>, vector<256x32xbf16>, vector<128x32xf32> -> vector<128x32xf32>
    %c0_94 = arith.constant 0 : index
    %c0_95 = arith.constant 0 : index
    %238 = vector.load %arg6[%c0_94, %c0_95] : memref<128x128xf32, #tpu.memory_space<vmem>>, vector<128x128xf32>
    %239 = arith.truncf %237 : vector<128x32xf32> to vector<128x32xbf16>
    %240 = vector.extract_strided_slice %8 {offsets = [96, 0], sizes = [32, 128], strides = [1, 1]} : vector<128x128xbf16> to vector<32x128xbf16>
    %cst_96 = arith.constant dense<0.000000e+00> : vector<128x128xf32>
    %241 = tpu.matmul %239, %240, %cst_96 {dimension_numbers = #tpu.dot_dimension_numbers<[1], [0], [0], [1], [0, 0, 1, 1], [], []>} : vector<128x32xbf16>, vector<32x128xbf16>, vector<128x128xf32> -> vector<128x128xf32>
    %242 = arith.addf %238, %241 : vector<128x128xf32>
    %c0_97 = arith.constant 0 : index
    %c0_98 = arith.constant 0 : index
    %243 = vector.load %arg6[%c0_97, %c0_98] : memref<128x128xf32, #tpu.memory_space<vmem>>, vector<128x128xf32>
    tpu.vector_store %arg6[%c0_97, %c0_98], %242 {strides = array<i32>} : memref<128x128xf32, #tpu.memory_space<vmem>>, vector<128x128xf32>,
    %c0_99 = arith.constant 0 : index
    %c0_100 = arith.constant 0 : index
    %244 = vector.load %arg6[%c0_99, %c0_100] : memref<128x128xf32, #tpu.memory_space<vmem>>, vector<128x128xf32>
    %245 = vector.broadcast %9 : vector<1x128xf32> to vector<128x128xf32>
    %246 = arith.addf %244, %245 : vector<128x128xf32>
    %c0_101 = arith.constant 0 : index
    %c128 = arith.constant 128 : index
    %c0_102 = arith.constant 0 : index
    %247 = vector.load %arg5[%c0_101, %c128, %c0_102] : memref<1x256x128xf32, #tpu.memory_space<vmem>>, vector<1x128x128xf32>
    %248 = vector.shape_cast %247 : vector<1x128x128xf32> to vector<128x128xf32>
    %249 = vector.shape_cast %246 : vector<128x128xf32> to vector<1x128x128xf32>
    tpu.vector_store %arg5[%c0_101, %c128, %c0_102], %249 {strides = array<i32>} : memref<1x256x128xf32, #tpu.memory_space<vmem>>, vector<1x128x128xf32>,
    return
  }
  func.func @transform_0(%arg0: i32) -> (i32, i32, i32) {
    %c0_i32 = arith.constant 0 : i32
    %c0_i32_0 = arith.constant 0 : i32
    %c0_i32_1 = arith.constant 0 : i32
    return %arg0, %c0_i32, %c0_i32_0 : i32, i32, i32
  }
  func.func @transform_1(%arg0: i32) -> (i32, i32) {
    %c0_i32 = arith.constant 0 : i32
    %c0_i32_0 = arith.constant 0 : i32
    %c0_i32_1 = arith.constant 0 : i32
    return %c0_i32, %c0_i32_0 : i32, i32
  }
  func.func @transform_2(%arg0: i32) -> (i32, i32) {
    %c0_i32 = arith.constant 0 : i32
    %c0_i32_0 = arith.constant 0 : i32
    %c0_i32_1 = arith.constant 0 : i32
    return %c0_i32, %c0_i32_0 : i32, i32
  }
  func.func @transform_3(%arg0: i32) -> (i32, i32) {
    %c0_i32 = arith.constant 0 : i32
    %c0_i32_0 = arith.constant 0 : i32
    %c0_i32_1 = arith.constant 0 : i32
    return %c0_i32, %c0_i32_0 : i32, i32
  }
  func.func @transform_4(%arg0: i32) -> (i32, i32, i32) {
    %c0_i32 = arith.constant 0 : i32
    %c0_i32_0 = arith.constant 0 : i32
    %c0_i32_1 = arith.constant 0 : i32
    return %arg0, %c0_i32, %c0_i32_0 : i32, i32, i32
  }
}

</mosaic_0001>

<llo_original>
// kernel: multihead_forward.1
$region0: #{multihead_forward.1}
  #allocation0 [shape = 'u32[]', space=smem, size = 0x4, offset = 0x4, fixed_abs, tag = 'smem constant byte address 0x4 - core index']
  #allocation1 [shape = 'u32[72,128]{1,0:T(1,128)}', space=vmem, size = 0x9000, scoped, tag = 'internal scratch']
  #allocation2 [shape = 'f32[128,128]{1,0:T(8,128)}', space=vmem, size = 0x10000, scoped, tag = 'scratch operand']
  %s0 = inlined_call_operand.vmem [shape: bf16[4,256,128], index: 0, kind: input, shape index: {}]
  %s1 = inlined_call_operand.vmem [shape: bf16[128,384], index: 1, kind: input, shape index: {}]
  %s2 = inlined_call_operand.vmem [shape: bf16[128,128], index: 2, kind: input, shape index: {}]
  %s3 = inlined_call_operand.vmem [shape: f32[1,128], index: 3, kind: input, shape index: {}]
  %s4 = inlined_call_operand.hbm [shape: f32[4,256,128], index: 4, kind: output, shape index: {}]
  %s5 = sld [smem:[#allocation0]]
  $region49: #{multihead_forward.1} parent=0
    _
  %s7 = ssub.s32 1, %s5
  %s8 = scalar_select 0, %s7, %s5
  $region1: #{multihead_forward.1} parent=0
    #allocation3 [shape = 'u8[262144]{0}', space=vmem, size = 0x40000, scoped, tag = 'output window, operand 0']
    #allocation4 [shape = 's32[2]{0}', space=sflag, size = 0x8, scoped, tag = 'scoped memory for multihead_forward.1']
    %9 = vsyncpa [#allocation4], 0
    %s10 = scalar_lea.sflag [#allocation4], 1
    %11 = vsyncpa %s10, 0
    loop: start=0, step=1, limit=6
    $region2: #{multihead_forward.1} parent=1 // loop_pre_header
      _
    $region3: #{multihead_forward.1} parent=1 // loop_header
      %s13 = sphi 0, %s17
      %p14 = scmp.ge.s32.totalorder %s13, 6
      %s23 = sphi 0, %s25
      %s26 = sphi 0, %s23
      %s27 = sphi 0, %s26
      %s43 = sphi 0, %s27
      %s47 = sphi 0, %s47
      %s49 = sphi 0, %s47
      %s50 = sphi 0, %s49
      %s64 = sphi 0, %s50
      %s68 = sphi 0, %s68
      %s70 = sphi 0, %s68
      %s71 = sphi 0, %s70
      %s85 = sphi 0, %s71
      %s89 = sphi 0, %s89
      %s91 = sphi 0, %s89
      %s92 = sphi 0, %s91
      %s106 = sphi 0, %s92
      %s112 = sphi 0, %s114
      %s115 = sphi 0, %s112
      %s116 = sphi 0, %s115
      %s132 = sphi 0, %s116
    $region4: #{multihead_forward.1} parent=1 // loop_header_branch
      %16 = sbr.rel (%p14) target = $region8
    $region5: #{multihead_forward.1} parent=1 // loop_body
      %s18 = ssub.s32 %s13, 1
      %s19 = ssub.s32 %s13, 2
      %s20 = sadd.s32 %s13, 1
      %s21 = ssub.s32 %s13, %s20
      %p22 = scmp.eq.s32.totalorder %s21, 0
      %s24 = sadd.s32 %s23, 1
      %s25 = scalar_select %p22, %s23, %s24
      %p28 = pneg %p22
      %p29 = scmp.eq.s32.totalorder %s13, 3
      %p30 = por %p28, %p29
      %p31 = scmp.ne.s32.totalorder %s23, %s26
      %p32 = scmp.eq.s32.totalorder %s13, 0
      %p33 = por %p31, %p32
      %p34 = scmp.ne.s32.totalorder %s23, %s26
      %p35 = scmp.eq.s32.totalorder %s18, 3
      %p36 = por %p34, %p35
      %p37 = scmp.ne.s32.totalorder %s26, %s27
      %p38 = scmp.eq.s32.totalorder %s18, 0
      %p39 = por %p37, %p38
      %p40 = scmp.ne.s32.totalorder %s26, %s27
      %p41 = scmp.eq.s32.totalorder %s19, 3
      %p42 = por %p40, %p41
      %p44 = scmp.ne.s32.totalorder %s27, %s43
      %p45 = scmp.eq.s32.totalorder %s19, 0
      %p46 = por %p44, %p45
      %s48 = sadd.s32 %s47, 1
      %p51 = scmp.eq.s32.totalorder %s13, 3
      %p52 = scmp.ne.s32.totalorder %s47, %s49
      %p53 = scmp.eq.s32.totalorder %s13, 0
      %p54 = por %p52, %p53
      %p55 = scmp.ne.s32.totalorder %s47, %s49
      %p56 = scmp.eq.s32.totalorder %s18, 3
      %p57 = por %p55, %p56
      %p58 = scmp.ne.s32.totalorder %s49, %s50
      %p59 = scmp.eq.s32.totalorder %s18, 0
      %p60 = por %p58, %p59
      %p61 = scmp.ne.s32.totalorder %s49, %s50
      %p62 = scmp.eq.s32.totalorder %s19, 3
      %p63 = por %p61, %p62
      %p65 = scmp.ne.s32.totalorder %s50, %s64
      %p66 = scmp.eq.s32.totalorder %s19, 0
      %p67 = por %p65, %p66
      %s69 = sadd.s32 %s68, 1
      %p72 = scmp.eq.s32.totalorder %s13, 3
      %p73 = scmp.ne.s32.totalorder %s68, %s70
      %p74 = scmp.eq.s32.totalorder %s13, 0
      %p75 = por %p73, %p74
      %p76 = scmp.ne.s32.totalorder %s68, %s70
      %p77 = scmp.eq.s32.totalorder %s18, 3
      %p78 = por %p76, %p77
      %p79 = scmp.ne.s32.totalorder %s70, %s71
      %p80 = scmp.eq.s32.totalorder %s18, 0
      %p81 = por %p79, %p80
      %p82 = scmp.ne.s32.totalorder %s70, %s71
      %p83 = scmp.eq.s32.totalorder %s19, 3
      %p84 = por %p82, %p83
      %p86 = scmp.ne.s32.totalorder %s71, %s85
      %p87 = scmp.eq.s32.totalorder %s19, 0
      %p88 = por %p86, %p87
      %s90 = sadd.s32 %s89, 1
      %p93 = scmp.eq.s32.totalorder %s13, 3
      %p94 = scmp.ne.s32.totalorder %s89, %s91
      %p95 = scmp.eq.s32.totalorder %s13, 0
      %p96 = por %p94, %p95
      %p97 = scmp.ne.s32.totalorder %s89, %s91
      %p98 = scmp.eq.s32.totalorder %s18, 3
      %p99 = por %p97, %p98
      %p100 = scmp.ne.s32.totalorder %s91, %s92
      %p101 = scmp.eq.s32.totalorder %s18, 0
      %p102 = por %p100, %p101
      %p103 = scmp.ne.s32.totalorder %s91, %s92
      %p104 = scmp.eq.s32.totalorder %s19, 3
      %p105 = por %p103, %p104
      %p107 = scmp.ne.s32.totalorder %s92, %s106
      %p108 = scmp.eq.s32.totalorder %s19, 0
      %p109 = por %p107, %p108
      %s110 = ssub.s32 %s13, %s20
      %p111 = scmp.eq.s32.totalorder %s110, 0
      %s113 = sadd.s32 %s112, 1
      %s114 = scalar_select %p111, %s112, %s113
      %p117 = pneg %p111
      %p118 = scmp.eq.s32.totalorder %s13, 3
      %p119 = por %p117, %p118
      %p120 = scmp.ne.s32.totalorder %s112, %s115
      %p121 = scmp.eq.s32.totalorder %s13, 0
      %p122 = por %p120, %p121
      %p123 = scmp.ne.s32.totalorder %s112, %s115
      %p124 = scmp.eq.s32.totalorder %s18, 3
      %p125 = por %p123, %p124
      %p126 = scmp.ne.s32.totalorder %s115, %s116
      %p127 = scmp.eq.s32.totalorder %s18, 0
      %p128 = por %p126, %p127
      %p129 = scmp.ne.s32.totalorder %s115, %s116
      %p130 = scmp.eq.s32.totalorder %s19, 3
      %p131 = por %p129, %p130
      %p133 = scmp.ne.s32.totalorder %s116, %s132
      %p134 = scmp.eq.s32.totalorder %s19, 0
      %p135 = por %p133, %p134
      %p136 = scmp.le.s32.totalorder 1, %s13
      %p137 = scmp.lt.s32.totalorder %s13, 5
      %p138 = pnand %p136, %p137
      %p139 = pneg %p138
      // Predicated region
      $region9: #{multihead_forward.1} parent=5 // pred_check
        _
      $region10: #{multihead_forward.1} parent=5 // pred_check_branch
        %141 = sbr.rel (%p138) target = $region12
      $region11: #{multihead_forward.1} parent=5 // pred_region
        %s142 = ssub.s32 %s13, 1
        // Predicated region
        $region13: #{multihead_forward.1} parent=11 // pred_check
          %p143 = pneg %p60
        $region14: #{multihead_forward.1} parent=11 // pred_check_branch
          %145 = sbr.rel (%p143) target = $region16
        $region15: #{multihead_forward.1} parent=11 // pred_region
          _
        $region16: #{multihead_forward.1} parent=11 // pred_fallthru
          _
        // Predicated region
        $region17: #{multihead_forward.1} parent=11 // pred_check
          %p146 = pneg %p81
        $region18: #{multihead_forward.1} parent=11 // pred_check_branch
          %148 = sbr.rel (%p146) target = $region20
        $region19: #{multihead_forward.1} parent=11 // pred_region
          _
        $region20: #{multihead_forward.1} parent=11 // pred_fallthru
          _
        // Predicated region
        $region21: #{multihead_forward.1} parent=11 // pred_check
          %p149 = pneg %p102
        $region22: #{multihead_forward.1} parent=11 // pred_check_branch
          %151 = sbr.rel (%p149) target = $region24
        $region23: #{multihead_forward.1} parent=11 // pred_region
          _
        $region24: #{multihead_forward.1} parent=11 // pred_fallthru
          _
      $region12: #{multihead_forward.1} parent=5 // pred_fallthru
        _
      %p152 = scmp.lt.s32.totalorder %s13, 4
      // Predicated region
      $region25: #{multihead_forward.1} parent=5 // pred_check
        %p153 = pneg %p152
      $region26: #{multihead_forward.1} parent=5 // pred_check_branch
        %155 = sbr.rel (%p153) target = $region28
      $region27: #{multihead_forward.1} parent=5 // pred_region
        // Predicated region
        $region29: #{multihead_forward.1} parent=27 // pred_check
          %p156 = pneg %p33
        $region30: #{multihead_forward.1} parent=27 // pred_check_branch
          %158 = sbr.rel (%p156) target = $region32
        $region31: #{multihead_forward.1} parent=27 // pred_region
          %p159 = scmp.lt.s32.totalorder %s13, 3
          %s160 = scalar_select %p159, %s13, 3
          %s161 = smul.addr %s160, 32
          %s162 = smul.addr %s161, 4
          %s163 = scalar_lea.vmem %s0, %s162
        $region32: #{multihead_forward.1} parent=27 // pred_fallthru
          _
      $region28: #{multihead_forward.1} parent=5 // pred_fallthru
        _
      %p164 = scmp.le.s32.totalorder 1, %s13
      %p165 = scmp.lt.s32.totalorder %s13, 5
      %p166 = pnand %p164, %p165
      %p167 = pneg %p166
      // Predicated region
      $region33: #{multihead_forward.1} parent=5 // pred_check
        _
      $region34: #{multihead_forward.1} parent=5 // pred_check_branch
        %169 = sbr.rel (%p166) target = $region36
      $region35: #{multihead_forward.1} parent=5 // pred_region
        %s170 = ssub.s32 %s13, 1
        %p171 = scmp.lt.s32.totalorder %s18, 3
        %s172 = scalar_select %p171, %s18, 3
        %s173 = smul.addr %s172, 32
        %s174 = smul.addr %s173, 4
        %s175 = scalar_lea.vmem %s0, %s174
        %p176 = pneg %p39
        %p177 = pneg %p36
        %p178 = pneg %p60
        %p179 = pneg %p57
        %p180 = pneg %p81
        %p181 = pneg %p78
        %p182 = pneg %p102
        %p183 = pneg %p99
        %p184 = pneg %p128
        %p185 = pneg %p125
        %s186 = sand.u32 %s115, 1
        %s187 = scalar_lea.sflag [#allocation4], %s186
        %s188 = sand.u32 %s115, 1
        %s189 = smul.addr %s188, 256
        %s190 = scalar_lea.vmem [#allocation3], %s189
        %p191 = scmp.lt.s32.totalorder %s18, 3
        %s192 = scalar_select %p191, %s18, 3
        %s193 = smul.addr %s192, 32
        %s194 = smul.addr %s193, 4
        %s195 = scalar_lea.vmem %s0, %s194
        %v197 = vld [vmem:[%s195] sm:$0xf]
        %v198 = vld [vmem:[%s195 + $0x4] sm:$0xf]
        %v199 = vld [vmem:[%s195 + $0x8] sm:$0xf]
        %v200 = vld [vmem:[%s195 + $0xc] sm:$0xf]
        %v201 = vld [vmem:[%s195 + $0x10] sm:$0xf]
        %v202 = vld [vmem:[%s195 + $0x14] sm:$0xf]
        %v203 = vld [vmem:[%s195 + $0x18] sm:$0xf]
        %v204 = vld [vmem:[%s195 + $0x1c] sm:$0xf]
        %v205 = vld [vmem:[%s195 + $0x20] sm:$0xf]
        %v206 = vld [vmem:[%s195 + $0x24] sm:$0xf]
        %v207 = vld [vmem:[%s195 + $0x28] sm:$0xf]
        %v208 = vld [vmem:[%s195 + $0x2c] sm:$0xf]
        %v209 = vld [vmem:[%s195 + $0x30] sm:$0xf]
        %v210 = vld [vmem:[%s195 + $0x34] sm:$0xf]
        %v211 = vld [vmem:[%s195 + $0x38] sm:$0xf]
        %v212 = vld [vmem:[%s195 + $0x3c] sm:$0xf]
        %v213 = vld [vmem:[%s195 + $0x40] sm:$0xf]
        %v214 = vld [vmem:[%s195 + $0x44] sm:$0xf]
        %v215 = vld [vmem:[%s195 + $0x48] sm:$0xf]
        %v216 = vld [vmem:[%s195 + $0x4c] sm:$0xf]
        %v217 = vld [vmem:[%s195 + $0x50] sm:$0xf]
        %v218 = vld [vmem:[%s195 + $0x54] sm:$0xf]
        %v219 = vld [vmem:[%s195 + $0x58] sm:$0xf]
        %v220 = vld [vmem:[%s195 + $0x5c] sm:$0xf]
        %v221 = vld [vmem:[%s195 + $0x60] sm:$0xf]
        %v222 = vld [vmem:[%s195 + $0x64] sm:$0xf]
        %v223 = vld [vmem:[%s195 + $0x68] sm:$0xf]
        %v224 = vld [vmem:[%s195 + $0x6c] sm:$0xf]
        %v225 = vld [vmem:[%s195 + $0x70] sm:$0xf]
        %v226 = vld [vmem:[%s195 + $0x74] sm:$0xf]
        %v227 = vld [vmem:[%s195 + $0x78] sm:$0xf]
        %v228 = vld [vmem:[%s195 + $0x7c] sm:$0xf]
        %v229 = vld [vmem:[%s1] sm:$0xff]
        %v230 = vld [vmem:[%s1 + $0x8] sm:$0xf]
        %v231 = vld [vmem:[%s1 + $0xc] sm:$0xff]
        %v232 = vld [vmem:[%s1 + $0x14] sm:$0xf]
        %v233 = vld [vmem:[%s1 + $0x18] sm:$0xff]
        %v234 = vld [vmem:[%s1 + $0x20] sm:$0xf]
        %v235 = vld [vmem:[%s1 + $0x24] sm:$0xff]
        %v236 = vld [vmem:[%s1 + $0x2c] sm:$0xf]
        %v237 = vld [vmem:[%s1 + $0x30] sm:$0xff]
        %v238 = vld [vmem:[%s1 + $0x38] sm:$0xf]
        %v239 = vld [vmem:[%s1 + $0x3c] sm:$0xff]
        %v240 = vld [vmem:[%s1 + $0x44] sm:$0xf]
        %v241 = vld [vmem:[%s1 + $0x48] sm:$0xff]
        %v242 = vld [vmem:[%s1 + $0x50] sm:$0xf]
        %v243 = vld [vmem:[%s1 + $0x54] sm:$0xff]
        %v244 = vld [vmem:[%s1 + $0x5c] sm:$0xf]
        %v245 = vld [vmem:[%s1 + $0x60] sm:$0xff]
        %v246 = vld [vmem:[%s1 + $0x68] sm:$0xf]
        %v247 = vld [vmem:[%s1 + $0x6c] sm:$0xff]
        %v248 = vld [vmem:[%s1 + $0x74] sm:$0xf]
        %v249 = vld [vmem:[%s1 + $0x78] sm:$0xff]
        %v250 = vld [vmem:[%s1 + $0x80] sm:$0xf]
        %v251 = vld [vmem:[%s1 + $0x84] sm:$0xff]
        %v252 = vld [vmem:[%s1 + $0x8c] sm:$0xf]
        %v253 = vld [vmem:[%s1 + $0x90] sm:$0xff]
        %v254 = vld [vmem:[%s1 + $0x98] sm:$0xf]
        %v255 = vld [vmem:[%s1 + $0x9c] sm:$0xff]
        %v256 = vld [vmem:[%s1 + $0xa4] sm:$0xf]
        %v257 = vld [vmem:[%s1 + $0xa8] sm:$0xff]
        %v258 = vld [vmem:[%s1 + $0xb0] sm:$0xf]
        %v259 = vld [vmem:[%s1 + $0xb4] sm:$0xff]
        %v260 = vld [vmem:[%s1 + $0xbc] sm:$0xf]
        %v293 = vunpack.c.l.b16 %v197
        %v294 = vunpack.c.l.b16 %v198
        %v295 = vunpack.c.l.b16 %v199
        %v296 = vunpack.c.l.b16 %v200
        %v297 = vunpack.c.l.b16 %v201
        %v298 = vunpack.c.l.b16 %v202
        %v299 = vunpack.c.l.b16 %v203
        %v300 = vunpack.c.l.b16 %v204
        %v301 = vunpack.c.l.b16 %v205
        %v302 = vunpack.c.l.b16 %v206
        %v303 = vunpack.c.l.b16 %v207
        %v304 = vunpack.c.l.b16 %v208
        %v305 = vunpack.c.l.b16 %v209
        %v306 = vunpack.c.l.b16 %v210
        %v307 = vunpack.c.l.b16 %v211
        %v308 = vunpack.c.l.b16 %v212
        %v309 = vunpack.c.l.b16 %v213
        %v310 = vunpack.c.l.b16 %v214
        %v311 = vunpack.c.l.b16 %v215
        %v312 = vunpack.c.l.b16 %v216
        %v313 = vunpack.c.l.b16 %v217
        %v314 = vunpack.c.l.b16 %v218
        %v315 = vunpack.c.l.b16 %v219
        %v316 = vunpack.c.l.b16 %v220
        %v317 = vunpack.c.l.b16 %v221
        %v318 = vunpack.c.l.b16 %v222
        %v319 = vunpack.c.l.b16 %v223
        %v320 = vunpack.c.l.b16 %v224
        %v321 = vunpack.c.l.b16 %v225
        %v322 = vunpack.c.l.b16 %v226
        %v323 = vunpack.c.l.b16 %v227
        %v324 = vunpack.c.l.b16 %v228
        %v325 = vpack.c.b16 %v294, %v293
        %v326 = vpack.c.b16 %v296, %v295
        %v327 = vpack.c.b16 %v298, %v297
        %v328 = vpack.c.b16 %v300, %v299
        %v329 = vpack.c.b16 %v302, %v301
        %v330 = vpack.c.b16 %v304, %v303
        %v331 = vpack.c.b16 %v306, %v305
        %v332 = vpack.c.b16 %v308, %v307
        %v333 = vpack.c.b16 %v310, %v309
        %v334 = vpack.c.b16 %v312, %v311
        %v335 = vpack.c.b16 %v314, %v313
        %v336 = vpack.c.b16 %v316, %v315
        %v337 = vpack.c.b16 %v318, %v317
        %v338 = vpack.c.b16 %v320, %v319
        %v339 = vpack.c.b16 %v322, %v321
        %v340 = vpack.c.b16 %v324, %v323
        %v389 = vunpack.c.l.b16 %v229
        %v390 = vunpack.c.h.b16 %v229
        %v391 = vunpack.c.l.b16 %v230
        %v392 = vunpack.c.l.b16 %v231
        %v393 = vunpack.c.h.b16 %v231
        %v394 = vunpack.c.l.b16 %v232
        %v395 = vunpack.c.l.b16 %v233
        %v396 = vunpack.c.h.b16 %v233
        %v397 = vunpack.c.l.b16 %v234
        %v398 = vunpack.c.l.b16 %v235
        %v399 = vunpack.c.h.b16 %v235
        %v400 = vunpack.c.l.b16 %v236
        %v401 = vunpack.c.l.b16 %v237
        %v402 = vunpack.c.h.b16 %v237
        %v403 = vunpack.c.l.b16 %v238
        %v404 = vunpack.c.l.b16 %v239
        %v405 = vunpack.c.h.b16 %v239
        %v406 = vunpack.c.l.b16 %v240
        %v407 = vunpack.c.l.b16 %v241
        %v408 = vunpack.c.h.b16 %v241
        %v409 = vunpack.c.l.b16 %v242
        %v410 = vunpack.c.l.b16 %v243
        %v411 = vunpack.c.h.b16 %v243
        %v412 = vunpack.c.l.b16 %v244
        %v413 = vunpack.c.l.b16 %v245
        %v414 = vunpack.c.h.b16 %v245
        %v415 = vunpack.c.l.b16 %v246
        %v416 = vunpack.c.l.b16 %v247
        %v417 = vunpack.c.h.b16 %v247
        %v418 = vunpack.c.l.b16 %v248
        %v419 = vunpack.c.l.b16 %v249
        %v420 = vunpack.c.h.b16 %v249
        %v421 = vunpack.c.l.b16 %v250
        %v422 = vunpack.c.l.b16 %v251
        %v423 = vunpack.c.h.b16 %v251
        %v424 = vunpack.c.l.b16 %v252
        %v425 = vunpack.c.l.b16 %v253
        %v426 = vunpack.c.h.b16 %v253
        %v427 = vunpack.c.l.b16 %v254
        %v428 = vunpack.c.l.b16 %v255
        %v429 = vunpack.c.h.b16 %v255
        %v430 = vunpack.c.l.b16 %v256
        %v431 = vunpack.c.l.b16 %v257
        %v432 = vunpack.c.h.b16 %v257
        %v433 = vunpack.c.l.b16 %v258
        %v434 = vunpack.c.l.b16 %v259
        %v435 = vunpack.c.h.b16 %v259
        %v436 = vunpack.c.l.b16 %v260
        %v437 = vpack.c.b16 %v392, %v389
        %v438 = vpack.c.b16 %v393, %v390
        %v439 = vpack.c.b16 %v394, %v391
        %v440 = vpack.c.b16 %v398, %v395
        %v441 = vpack.c.b16 %v399, %v396
        %v442 = vpack.c.b16 %v400, %v397
        %v443 = vpack.c.b16 %v404, %v401
        %v444 = vpack.c.b16 %v405, %v402
        %v445 = vpack.c.b16 %v406, %v403
        %v446 = vpack.c.b16 %v410, %v407
        %v447 = vpack.c.b16 %v411, %v408
        %v448 = vpack.c.b16 %v412, %v409
        %v449 = vpack.c.b16 %v416, %v413
        %v450 = vpack.c.b16 %v417, %v414
        %v451 = vpack.c.b16 %v418, %v415
        %v452 = vpack.c.b16 %v422, %v419
        %v453 = vpack.c.b16 %v423, %v420
        %v454 = vpack.c.b16 %v424, %v421
        %v455 = vpack.c.b16 %v428, %v425
        %v456 = vpack.c.b16 %v429, %v426
        %v457 = vpack.c.b16 %v430, %v427
        %v458 = vpack.c.b16 %v434, %v431
        %v459 = vpack.c.b16 %v435, %v432
        %v460 = vpack.c.b16 %v436, %v433
        %485 = vmatpush.bf16.msra.mxu0 %v458
        %486 = vmatpush.bf16.msra.mxu0 %v455
        %487 = vmatpush.bf16.msra.mxu0 %v452
        %488 = vmatpush.bf16.msra.mxu0 %v449
        %489 = vmatpush.bf16.msra.mxu0 %v446
        %490 = vmatpush.bf16.msra.mxu0 %v443
        %491 = vmatpush.bf16.msra.mxu0 %v440
        %492 = vmatpush.bf16.msra.mxu0 %v437
        %493 = vmatmul.bf16.gmra.mxu0 %v325
        %v494 = vpop.f32.mrf.mxu0
        %v495 = vadd.f32 0.0, %v494
        %v496 = vpop.f32.mrf.mxu0
        %v497 = vadd.f32 0.0, %v496
        %498 = vmatmul.bf16.gmra.mxu0 %v326
        %v499 = vpop.f32.mrf.mxu0
        %v500 = vadd.f32 0.0, %v499
        %v501 = vpop.f32.mrf.mxu0
        %v502 = vadd.f32 0.0, %v501
        %503 = vmatmul.bf16.gmra.mxu0 %v327
        %v504 = vpop.f32.mrf.mxu0
        %v505 = vadd.f32 0.0, %v504
        %v506 = vpop.f32.mrf.mxu0
        %v507 = vadd.f32 0.0, %v506
        %508 = vmatmul.bf16.gmra.mxu0 %v328
        %v509 = vpop.f32.mrf.mxu0
        %v510 = vadd.f32 0.0, %v509
        %v511 = vpop.f32.mrf.mxu0
        %v512 = vadd.f32 0.0, %v511
        %513 = vmatmul.bf16.gmra.mxu0 %v329
        %v514 = vpop.f32.mrf.mxu0
        %v515 = vadd.f32 0.0, %v514
        %v516 = vpop.f32.mrf.mxu0
        %v517 = vadd.f32 0.0, %v516
        %518 = vmatmul.bf16.gmra.mxu0 %v330
        %v519 = vpop.f32.mrf.mxu0
        %v520 = vadd.f32 0.0, %v519
        %v521 = vpop.f32.mrf.mxu0
        %v522 = vadd.f32 0.0, %v521
        %523 = vmatmul.bf16.gmra.mxu0 %v331
        %v524 = vpop.f32.mrf.mxu0
        %v525 = vadd.f32 0.0, %v524
        %v526 = vpop.f32.mrf.mxu0
        %v527 = vadd.f32 0.0, %v526
        %528 = vmatmul.bf16.gmra.mxu0 %v332
        %v529 = vpop.f32.mrf.mxu0
        %v530 = vadd.f32 0.0, %v529
        %v531 = vpop.f32.mrf.mxu0
        %v532 = vadd.f32 0.0, %v531
        %533 = vmatmul.bf16.gmra.mxu0 %v333
        %v534 = vpop.f32.mrf.mxu0
        %v535 = vadd.f32 0.0, %v534
        %v536 = vpop.f32.mrf.mxu0
        %v537 = vadd.f32 0.0, %v536
        %538 = vmatmul.bf16.gmra.mxu0 %v334
        %v539 = vpop.f32.mrf.mxu0
        %v540 = vadd.f32 0.0, %v539
        %v541 = vpop.f32.mrf.mxu0
        %v542 = vadd.f32 0.0, %v541
        %543 = vmatmul.bf16.gmra.mxu0 %v335
        %v544 = vpop.f32.mrf.mxu0
        %v545 = vadd.f32 0.0, %v544
        %v546 = vpop.f32.mrf.mxu0
        %v547 = vadd.f32 0.0, %v546
        %548 = vmatmul.bf16.gmra.mxu0 %v336
        %v549 = vpop.f32.mrf.mxu0
        %v550 = vadd.f32 0.0, %v549
        %v551 = vpop.f32.mrf.mxu0
        %v552 = vadd.f32 0.0, %v551
        %553 = vmatmul.bf16.gmra.mxu0 %v337
        %v554 = vpop.f32.mrf.mxu0
        %v555 = vadd.f32 0.0, %v554
        %v556 = vpop.f32.mrf.mxu0
        %v557 = vadd.f32 0.0, %v556
        %558 = vmatmul.bf16.gmra.mxu0 %v338
        %v559 = vpop.f32.mrf.mxu0
        %v560 = vadd.f32 0.0, %v559
        %v561 = vpop.f32.mrf.mxu0
        %v562 = vadd.f32 0.0, %v561
        %563 = vmatmul.bf16.gmra.mxu0 %v339
        %v564 = vpop.f32.mrf.mxu0
        %v565 = vadd.f32 0.0, %v564
        %v566 = vpop.f32.mrf.mxu0
        %v567 = vadd.f32 0.0, %v566
        %568 = vmatmul.bf16.gmra.mxu0 %v340
        %v569 = vpop.f32.mrf.mxu0
        %v570 = vadd.f32 0.0, %v569
        %v571 = vpop.f32.mrf.mxu0
        %v572 = vadd.f32 0.0, %v571
        %573 = vdwg.mxu0
        %574 = vmatpush.bf16.msra.mxu0 %v459
        %575 = vmatpush.bf16.msra.mxu0 %v456
        %576 = vmatpush.bf16.msra.mxu0 %v453
        %577 = vmatpush.bf16.msra.mxu0 %v450
        %578 = vmatpush.bf16.msra.mxu0 %v447
        %579 = vmatpush.bf16.msra.mxu0 %v444
        %580 = vmatpush.bf16.msra.mxu0 %v441
        %581 = vmatpush.bf16.msra.mxu0 %v438
        %582 = vmatmul.bf16.gmra.mxu0 %v325
        %v583 = vpop.f32.mrf.mxu0
        %v584 = vadd.f32 0.0, %v583
        %v585 = vpop.f32.mrf.mxu0
        %v586 = vadd.f32 0.0, %v585
        %587 = vmatmul.bf16.gmra.mxu0 %v326
        %v588 = vpop.f32.mrf.mxu0
        %v589 = vadd.f32 0.0, %v588
        %v590 = vpop.f32.mrf.mxu0
        %v591 = vadd.f32 0.0, %v590
        %592 = vmatmul.bf16.gmra.mxu0 %v327
        %v593 = vpop.f32.mrf.mxu0
        %v594 = vadd.f32 0.0, %v593
        %v595 = vpop.f32.mrf.mxu0
        %v596 = vadd.f32 0.0, %v595
        %597 = vmatmul.bf16.gmra.mxu0 %v328
        %v598 = vpop.f32.mrf.mxu0
        %v599 = vadd.f32 0.0, %v598
        %v600 = vpop.f32.mrf.mxu0
        %v601 = vadd.f32 0.0, %v600
        %602 = vmatmul.bf16.gmra.mxu0 %v329
        %v603 = vpop.f32.mrf.mxu0
        %v604 = vadd.f32 0.0, %v603
        %v605 = vpop.f32.mrf.mxu0
        %v606 = vadd.f32 0.0, %v605
        %607 = vmatmul.bf16.gmra.mxu0 %v330
        %v608 = vpop.f32.mrf.mxu0
        %v609 = vadd.f32 0.0, %v608
        %v610 = vpop.f32.mrf.mxu0
        %v611 = vadd.f32 0.0, %v610
        %612 = vmatmul.bf16.gmra.mxu0 %v331
        %v613 = vpop.f32.mrf.mxu0
        %v614 = vadd.f32 0.0, %v613
        %v615 = vpop.f32.mrf.mxu0
        %v616 = vadd.f32 0.0, %v615
        %617 = vmatmul.bf16.gmra.mxu0 %v332
        %v618 = vpop.f32.mrf.mxu0
        %v619 = vadd.f32 0.0, %v618
        %v620 = vpop.f32.mrf.mxu0
        %v621 = vadd.f32 0.0, %v620
        %622 = vmatmul.bf16.gmra.mxu0 %v333
        %v623 = vpop.f32.mrf.mxu0
        %v624 = vadd.f32 0.0, %v623
        %v625 = vpop.f32.mrf.mxu0
        %v626 = vadd.f32 0.0, %v625
        %627 = vmatmul.bf16.gmra.mxu0 %v334
        %v628 = vpop.f32.mrf.mxu0
        %v629 = vadd.f32 0.0, %v628
        %v630 = vpop.f32.mrf.mxu0
        %v631 = vadd.f32 0.0, %v630
        %632 = vmatmul.bf16.gmra.mxu0 %v335
        %v633 = vpop.f32.mrf.mxu0
        %v634 = vadd.f32 0.0, %v633
        %v635 = vpop.f32.mrf.mxu0
        %v636 = vadd.f32 0.0, %v635
        %637 = vmatmul.bf16.gmra.mxu0 %v336
        %v638 = vpop.f32.mrf.mxu0
        %v639 = vadd.f32 0.0, %v638
        %v640 = vpop.f32.mrf.mxu0
        %v641 = vadd.f32 0.0, %v640
        %642 = vmatmul.bf16.gmra.mxu0 %v337
        %v643 = vpop.f32.mrf.mxu0
        %v644 = vadd.f32 0.0, %v643
        %v645 = vpop.f32.mrf.mxu0
        %v646 = vadd.f32 0.0, %v645
        %647 = vmatmul.bf16.gmra.mxu0 %v338
        %v648 = vpop.f32.mrf.mxu0
        %v649 = vadd.f32 0.0, %v648
        %v650 = vpop.f32.mrf.mxu0
        %v651 = vadd.f32 0.0, %v650
        %652 = vmatmul.bf16.gmra.mxu0 %v339
        %v653 = vpop.f32.mrf.mxu0
        %v654 = vadd.f32 0.0, %v653
        %v655 = vpop.f32.mrf.mxu0
        %v656 = vadd.f32 0.0, %v655
        %657 = vmatmul.bf16.gmra.mxu0 %v340
        %v658 = vpop.f32.mrf.mxu0
        %v659 = vadd.f32 0.0, %v658
        %v660 = vpop.f32.mrf.mxu0
        %v661 = vadd.f32 0.0, %v660
        %662 = vdwg.mxu0
        %663 = vmatpush.bf16.msra.mxu0 %v460
        %664 = vmatpush.bf16.msra.mxu0 %v457
        %665 = vmatpush.bf16.msra.mxu0 %v454
        %666 = vmatpush.bf16.msra.mxu0 %v451
        %667 = vmatpush.bf16.msra.mxu0 %v448
        %668 = vmatpush.bf16.msra.mxu0 %v445
        %669 = vmatpush.bf16.msra.mxu0 %v442
        %670 = vmatpush.bf16.msra.mxu0 %v439
        %671 = vmatmul.bf16.gmra.mxu0 %v325
        %v672 = vpop.f32.mrf.mxu0
        %v673 = vadd.f32 0.0, %v672
        %v674 = vpop.f32.mrf.mxu0
        %v675 = vadd.f32 0.0, %v674
        %676 = vmatmul.bf16.gmra.mxu0 %v326
        %v677 = vpop.f32.mrf.mxu0
        %v678 = vadd.f32 0.0, %v677
        %v679 = vpop.f32.mrf.mxu0
        %v680 = vadd.f32 0.0, %v679
        %681 = vmatmul.bf16.gmra.mxu0 %v327
        %v682 = vpop.f32.mrf.mxu0
        %v683 = vadd.f32 0.0, %v682
        %v684 = vpop.f32.mrf.mxu0
        %v685 = vadd.f32 0.0, %v684
        %686 = vmatmul.bf16.gmra.mxu0 %v328
        %v687 = vpop.f32.mrf.mxu0
        %v688 = vadd.f32 0.0, %v687
        %v689 = vpop.f32.mrf.mxu0
        %v690 = vadd.f32 0.0, %v689
        %691 = vmatmul.bf16.gmra.mxu0 %v329
        %v692 = vpop.f32.mrf.mxu0
        %v693 = vadd.f32 0.0, %v692
        %v694 = vpop.f32.mrf.mxu0
        %v695 = vadd.f32 0.0, %v694
        %696 = vmatmul.bf16.gmra.mxu0 %v330
        %v697 = vpop.f32.mrf.mxu0
        %v698 = vadd.f32 0.0, %v697
        %v699 = vpop.f32.mrf.mxu0
        %v700 = vadd.f32 0.0, %v699
        %701 = vmatmul.bf16.gmra.mxu0 %v331
        %v702 = vpop.f32.mrf.mxu0
        %v703 = vadd.f32 0.0, %v702
        %v704 = vpop.f32.mrf.mxu0
        %v705 = vadd.f32 0.0, %v704
        %706 = vmatmul.bf16.gmra.mxu0 %v332
        %v707 = vpop.f32.mrf.mxu0
        %v708 = vadd.f32 0.0, %v707
        %v709 = vpop.f32.mrf.mxu0
        %v710 = vadd.f32 0.0, %v709
        %711 = vmatmul.bf16.gmra.mxu0 %v333
        %v712 = vpop.f32.mrf.mxu0
        %v713 = vadd.f32 0.0, %v712
        %v714 = vpop.f32.mrf.mxu0
        %v715 = vadd.f32 0.0, %v714
        %716 = vmatmul.bf16.gmra.mxu0 %v334
        %v717 = vpop.f32.mrf.mxu0
        %v718 = vadd.f32 0.0, %v717
        %v719 = vpop.f32.mrf.mxu0
        %v720 = vadd.f32 0.0, %v719
        %721 = vmatmul.bf16.gmra.mxu0 %v335
        %v722 = vpop.f32.mrf.mxu0
        %v723 = vadd.f32 0.0, %v722
        %v724 = vpop.f32.mrf.mxu0
        %v725 = vadd.f32 0.0, %v724
        %726 = vmatmul.bf16.gmra.mxu0 %v336
        %v727 = vpop.f32.mrf.mxu0
        %v728 = vadd.f32 0.0, %v727
        %v729 = vpop.f32.mrf.mxu0
        %v730 = vadd.f32 0.0, %v729
        %731 = vmatmul.bf16.gmra.mxu0 %v337
        %v732 = vpop.f32.mrf.mxu0
        %v733 = vadd.f32 0.0, %v732
        %v734 = vpop.f32.mrf.mxu0
        %v735 = vadd.f32 0.0, %v734
        %736 = vmatmul.bf16.gmra.mxu0 %v338
        %v737 = vpop.f32.mrf.mxu0
        %v738 = vadd.f32 0.0, %v737
        %v739 = vpop.f32.mrf.mxu0
        %v740 = vadd.f32 0.0, %v739
        %741 = vmatmul.bf16.gmra.mxu0 %v339
        %v742 = vpop.f32.mrf.mxu0
        %v743 = vadd.f32 0.0, %v742
        %v744 = vpop.f32.mrf.mxu0
        %v745 = vadd.f32 0.0, %v744
        %746 = vmatmul.bf16.gmra.mxu0 %v340
        %v747 = vpop.f32.mrf.mxu0
        %v748 = vadd.f32 0.0, %v747
        %v749 = vpop.f32.mrf.mxu0
        %v750 = vadd.f32 0.0, %v749
        %751 = vdwg.mxu0
        %v752 = vpack.c.bf16 %v584, %v495
        %v753 = vpack.c.bf16 %v673, %v673
        %v754 = vpack.c.bf16 %v586, %v497
        %v755 = vpack.c.bf16 %v675, %v675
        %v756 = vpack.c.bf16 %v589, %v500
        %v757 = vpack.c.bf16 %v678, %v678
        %v758 = vpack.c.bf16 %v591, %v502
        %v759 = vpack.c.bf16 %v680, %v680
        %v760 = vpack.c.bf16 %v594, %v505
        %v761 = vpack.c.bf16 %v683, %v683
        %v762 = vpack.c.bf16 %v596, %v507
        %v763 = vpack.c.bf16 %v685, %v685
        %v764 = vpack.c.bf16 %v599, %v510
        %v765 = vpack.c.bf16 %v688, %v688
        %v766 = vpack.c.bf16 %v601, %v512
        %v767 = vpack.c.bf16 %v690, %v690
        %v768 = vpack.c.bf16 %v604, %v515
        %v769 = vpack.c.bf16 %v693, %v693
        %v770 = vpack.c.bf16 %v606, %v517
        %v771 = vpack.c.bf16 %v695, %v695
        %v772 = vpack.c.bf16 %v609, %v520
        %v773 = vpack.c.bf16 %v698, %v698
        %v774 = vpack.c.bf16 %v611, %v522
        %v775 = vpack.c.bf16 %v700, %v700
        %v776 = vpack.c.bf16 %v614, %v525
        %v777 = vpack.c.bf16 %v703, %v703
        %v778 = vpack.c.bf16 %v616, %v527
        %v779 = vpack.c.bf16 %v705, %v705
        %v780 = vpack.c.bf16 %v619, %v530
        %v781 = vpack.c.bf16 %v708, %v708
        %v782 = vpack.c.bf16 %v621, %v532
        %v783 = vpack.c.bf16 %v710, %v710
        %v784 = vpack.c.bf16 %v624, %v535
        %v785 = vpack.c.bf16 %v713, %v713
        %v786 = vpack.c.bf16 %v626, %v537
        %v787 = vpack.c.bf16 %v715, %v715
        %v788 = vpack.c.bf16 %v629, %v540
        %v789 = vpack.c.bf16 %v718, %v718
        %v790 = vpack.c.bf16 %v631, %v542
        %v791 = vpack.c.bf16 %v720, %v720
        %v792 = vpack.c.bf16 %v634, %v545
        %v793 = vpack.c.bf16 %v723, %v723
        %v794 = vpack.c.bf16 %v636, %v547
        %v795 = vpack.c.bf16 %v725, %v725
        %v796 = vpack.c.bf16 %v639, %v550
        %v797 = vpack.c.bf16 %v728, %v728
        %v798 = vpack.c.bf16 %v641, %v552
        %v799 = vpack.c.bf16 %v730, %v730
        %v800 = vpack.c.bf16 %v644, %v555
        %v801 = vpack.c.bf16 %v733, %v733
        %v802 = vpack.c.bf16 %v646, %v557
        %v803 = vpack.c.bf16 %v735, %v735
        %v804 = vpack.c.bf16 %v649, %v560
        %v805 = vpack.c.bf16 %v738, %v738
        %v806 = vpack.c.bf16 %v651, %v562
        %v807 = vpack.c.bf16 %v740, %v740
        %v808 = vpack.c.bf16 %v654, %v565
        %v809 = vpack.c.bf16 %v743, %v743
        %v810 = vpack.c.bf16 %v656, %v567
        %v811 = vpack.c.bf16 %v745, %v745
        %v812 = vpack.c.bf16 %v659, %v570
        %v813 = vpack.c.bf16 %v748, %v748
        %v814 = vpack.c.bf16 %v661, %v572
        %v815 = vpack.c.bf16 %v750, %v750
        %v816 = vld [vmem:[%s2] sm:$0xf]
        %v817 = vld [vmem:[%s2 + $0x4] sm:$0xf]
        %v818 = vld [vmem:[%s2 + $0x8] sm:$0xf]
        %v819 = vld [vmem:[%s2 + $0xc] sm:$0xf]
        %v820 = vld [vmem:[%s2 + $0x10] sm:$0xf]
        %v821 = vld [vmem:[%s2 + $0x14] sm:$0xf]
        %v822 = vld [vmem:[%s2 + $0x18] sm:$0xf]
        %v823 = vld [vmem:[%s2 + $0x1c] sm:$0xf]
        %v824 = vld [vmem:[%s2 + $0x20] sm:$0xf]
        %v825 = vld [vmem:[%s2 + $0x24] sm:$0xf]
        %v826 = vld [vmem:[%s2 + $0x28] sm:$0xf]
        %v827 = vld [vmem:[%s2 + $0x2c] sm:$0xf]
        %v828 = vld [vmem:[%s2 + $0x30] sm:$0xf]
        %v829 = vld [vmem:[%s2 + $0x34] sm:$0xf]
        %v830 = vld [vmem:[%s2 + $0x38] sm:$0xf]
        %v831 = vld [vmem:[%s2 + $0x3c] sm:$0xf]
        %v832 = vld [vmem:[%s3] sm:$0x1]
        %v833 = vlaneseq
        %v834 = vshrl.u32 %v833, 7
        %v835 = vadd.s32 %v834, 8
        %v836 = vadd.s32 %v834, 16
        %v837 = vadd.s32 %v834, 24
        %v838 = vadd.s32 %v834, 32
        %v839 = vadd.s32 %v834, 40
        %v840 = vadd.s32 %v834, 48
        %v841 = vadd.s32 %v834, 56
        %v842 = vadd.s32 %v834, 64
        %v843 = vadd.s32 %v834, 72
        %v844 = vadd.s32 %v834, 80
        %v845 = vadd.s32 %v834, 88
        %v846 = vadd.s32 %v834, 96
        %v847 = vadd.s32 %v834, 104
        %v848 = vadd.s32 %v834, 112
        %v849 = vadd.s32 %v834, 120
        %v850 = vlaneseq
        %v851 = vand.u32 %v850, 127
        %852 = vst [vmem:[#allocation2] sm:$0xff] 0.0
        %853 = vst [vmem:[#allocation2 + $0x8] sm:$0xff] 0.0
        %854 = vst [vmem:[#allocation2 + $0x10] sm:$0xff] 0.0
        %855 = vst [vmem:[#allocation2 + $0x18] sm:$0xff] 0.0
        %856 = vst [vmem:[#allocation2 + $0x20] sm:$0xff] 0.0
        %857 = vst [vmem:[#allocation2 + $0x28] sm:$0xff] 0.0
        %858 = vst [vmem:[#allocation2 + $0x30] sm:$0xff] 0.0
        %859 = vst [vmem:[#allocation2 + $0x38] sm:$0xff] 0.0
        %860 = vst [vmem:[#allocation2 + $0x40] sm:$0xff] 0.0
        %861 = vst [vmem:[#allocation2 + $0x48] sm:$0xff] 0.0
        %862 = vst [vmem:[#allocation2 + $0x50] sm:$0xff] 0.0
        %863 = vst [vmem:[#allocation2 + $0x58] sm:$0xff] 0.0
        %864 = vst [vmem:[#allocation2 + $0x60] sm:$0xff] 0.0
        %865 = vst [vmem:[#allocation2 + $0x68] sm:$0xff] 0.0
        %866 = vst [vmem:[#allocation2 + $0x70] sm:$0xff] 0.0
        %867 = vst [vmem:[#allocation2 + $0x78] sm:$0xff] 0.0
        %v884 = vunpack.c.l.b16 %v752
        %v885 = vunpack.c.l.b16 %v754
        %v886 = vunpack.c.l.b16 %v756
        %v887 = vunpack.c.l.b16 %v758
        %v888 = vunpack.c.l.b16 %v760
        %v889 = vunpack.c.l.b16 %v762
        %v890 = vunpack.c.l.b16 %v764
        %v891 = vunpack.c.l.b16 %v766
        %v892 = vunpack.c.l.b16 %v768
        %v893 = vunpack.c.l.b16 %v770
        %v894 = vunpack.c.l.b16 %v772
        %v895 = vunpack.c.l.b16 %v774
        %v896 = vunpack.c.l.b16 %v776
        %v897 = vunpack.c.l.b16 %v778
        %v898 = vunpack.c.l.b16 %v780
        %v899 = vunpack.c.l.b16 %v782
        %v900 = vpack.c.b16 %v885, %v884
        %v901 = vpack.c.b16 %v887, %v886
        %v902 = vpack.c.b16 %v889, %v888
        %v903 = vpack.c.b16 %v891, %v890
        %v904 = vpack.c.b16 %v893, %v892
        %v905 = vpack.c.b16 %v895, %v894
        %v906 = vpack.c.b16 %v897, %v896
        %v907 = vpack.c.b16 %v899, %v898
        %v908 = vunpack.c.h.b16 %v752
        %v909 = vunpack.c.h.b16 %v754
        %v910 = vunpack.c.h.b16 %v756
        %v911 = vunpack.c.h.b16 %v758
        %v912 = vunpack.c.h.b16 %v760
        %v913 = vunpack.c.h.b16 %v762
        %v914 = vunpack.c.h.b16 %v764
        %v915 = vunpack.c.h.b16 %v766
        %v916 = vunpack.c.h.b16 %v768
        %v917 = vunpack.c.h.b16 %v770
        %v918 = vunpack.c.h.b16 %v772
        %v919 = vunpack.c.h.b16 %v774
        %v920 = vunpack.c.h.b16 %v776
        %v921 = vunpack.c.h.b16 %v778
        %v922 = vunpack.c.h.b16 %v780
        %v923 = vunpack.c.h.b16 %v782
        %v924 = vpack.c.b16 %v909, %v908
        %v925 = vpack.c.b16 %v911, %v910
        %v926 = vpack.c.b16 %v913, %v912
        %v927 = vpack.c.b16 %v915, %v914
        %v928 = vpack.c.b16 %v917, %v916
        %v929 = vpack.c.b16 %v919, %v918
        %v930 = vpack.c.b16 %v921, %v920
        %v931 = vpack.c.b16 %v923, %v922
        %vm932 = vcmask 261120
        %v934 = vsel %vm932, %v900, 0
        %v937 = vsel %vm932, %v901, 0
        %v940 = vsel %vm932, %v902, 0
        %v943 = vsel %vm932, %v903, 0
        %v946 = vsel %vm932, %v904, 0
        %v949 = vsel %vm932, %v905, 0
        %v952 = vsel %vm932, %v906, 0
        %v955 = vsel %vm932, %v907, 0
        %v958 = vsel %vm932, %v924, 0
        %v961 = vsel %vm932, %v925, 0
        %v964 = vsel %vm932, %v926, 0
        %v967 = vsel %vm932, %v927, 0
        %v970 = vsel %vm932, %v928, 0
        %v973 = vsel %vm932, %v929, 0
        %v976 = vsel %vm932, %v930, 0
        %v979 = vsel %vm932, %v931, 0
        %981 = vmatpush.bf16.xpose.msra.mxu0 %v979
        %982 = vmatpush.bf16.xpose.msra.mxu0 %v976
        %983 = vmatpush.bf16.xpose.msra.mxu0 %v973
        %984 = vmatpush.bf16.xpose.msra.mxu0 %v970
        %985 = vmatpush.bf16.xpose.msra.mxu0 %v967
        %986 = vmatpush.bf16.xpose.msra.mxu0 %v964
        %987 = vmatpush.bf16.xpose.msra.mxu0 %v961
        %988 = vmatpush.bf16.xpose.msra.mxu0 %v958
        %989 = vmatmul.bf16.gmra.mxu0 %v934
        %v990 = vpop.f32.mrf.mxu0
        %v991 = vadd.f32 0.0, %v990
        %v992 = vpop.f32.mrf.mxu0
        %v993 = vadd.f32 0.0, %v992
        %994 = vmatmul.bf16.gmra.mxu0 %v937
        %v995 = vpop.f32.mrf.mxu0
        %v996 = vadd.f32 0.0, %v995
        %v997 = vpop.f32.mrf.mxu0
        %v998 = vadd.f32 0.0, %v997
        %999 = vmatmul.bf16.gmra.mxu0 %v940
        %v1000 = vpop.f32.mrf.mxu0
        %v1001 = vadd.f32 0.0, %v1000
        %v1002 = vpop.f32.mrf.mxu0
        %v1003 = vadd.f32 0.0, %v1002
        %1004 = vmatmul.bf16.gmra.mxu0 %v943
        %v1005 = vpop.f32.mrf.mxu0
        %v1006 = vadd.f32 0.0, %v1005
        %v1007 = vpop.f32.mrf.mxu0
        %v1008 = vadd.f32 0.0, %v1007
        %1009 = vmatmul.bf16.gmra.mxu0 %v946
        %v1010 = vpop.f32.mrf.mxu0
        %v1011 = vadd.f32 0.0, %v1010
        %v1012 = vpop.f32.mrf.mxu0
        %v1013 = vadd.f32 0.0, %v1012
        %1014 = vmatmul.bf16.gmra.mxu0 %v949
        %v1015 = vpop.f32.mrf.mxu0
        %v1016 = vadd.f32 0.0, %v1015
        %v1017 = vpop.f32.mrf.mxu0
        %v1018 = vadd.f32 0.0, %v1017
        %1019 = vmatmul.bf16.gmra.mxu0 %v952
        %v1020 = vpop.f32.mrf.mxu0
        %v1021 = vadd.f32 0.0, %v1020
        %v1022 = vpop.f32.mrf.mxu0
        %v1023 = vadd.f32 0.0, %v1022
        %1024 = vmatmul.bf16.gmra.mxu0 %v955
        %v1025 = vpop.f32.mrf.mxu0
        %v1026 = vadd.f32 0.0, %v1025
        %v1027 = vpop.f32.mrf.mxu0
        %v1028 = vadd.f32 0.0, %v1027
        %1029 = vdwg.mxu0
        %vm1030 = vcmp.le.s32.totalorder %v851, %v834
        %vm1031 = vcmp.le.s32.totalorder %v851, %v835
        %vm1032 = vcmp.le.s32.totalorder %v851, %v836
        %vm1033 = vcmp.le.s32.totalorder %v851, %v837
        %vm1034 = vcmp.le.s32.totalorder %v851, %v838
        %vm1035 = vcmp.le.s32.totalorder %v851, %v839
        %vm1036 = vcmp.le.s32.totalorder %v851, %v840
        %vm1037 = vcmp.le.s32.totalorder %v851, %v841
        %vm1038 = vcmp.le.s32.totalorder %v851, %v842
        %vm1039 = vcmp.le.s32.totalorder %v851, %v843
        %vm1040 = vcmp.le.s32.totalorder %v851, %v844
        %vm1041 = vcmp.le.s32.totalorder %v851, %v845
        %vm1042 = vcmp.le.s32.totalorder %v851, %v846
        %vm1043 = vcmp.le.s32.totalorder %v851, %v847
        %vm1044 = vcmp.le.s32.totalorder %v851, %v848
        %vm1045 = vcmp.le.s32.totalorder %v851, %v849
        %v1046 = vsel %vm1030, %v991, -1e+30
        %v1047 = vsel %vm1031, %v993, -1e+30
        %v1048 = vsel %vm1032, %v996, -1e+30
        %v1049 = vsel %vm1033, %v998, -1e+30
        %v1050 = vsel %vm1034, %v1001, -1e+30
        %v1051 = vsel %vm1035, %v1003, -1e+30
        %v1052 = vsel %vm1036, %v1006, -1e+30
        %v1053 = vsel %vm1037, %v1008, -1e+30
        %v1054 = vsel %vm1038, %v1011, -1e+30
        %v1055 = vsel %vm1039, %v1013, -1e+30
        %v1056 = vsel %vm1040, %v1016, -1e+30
        %v1057 = vsel %vm1041, %v1018, -1e+30
        %v1058 = vsel %vm1042, %v1021, -1e+30
        %v1059 = vsel %vm1043, %v1023, -1e+30
        %v1060 = vsel %vm1044, %v1026, -1e+30
        %v1061 = vsel %vm1045, %v1028, -1e+30
        %1062 = vmax.xlane.f32.xlu0 %v1046
        %v1063 = vpop.xlane.xlu0 %1062
        %1064 = vmax.xlane.f32.xlu0 %v1047
        %v1065 = vpop.xlane.xlu0 %1064
        %1066 = vmax.xlane.f32.xlu0 %v1048
        %v1067 = vpop.xlane.xlu0 %1066
        %1068 = vmax.xlane.f32.xlu0 %v1049
        %v1069 = vpop.xlane.xlu0 %1068
        %1070 = vmax.xlane.f32.xlu0 %v1050
        %v1071 = vpop.xlane.xlu0 %1070
        %1072 = vmax.xlane.f32.xlu0 %v1051
        %v1073 = vpop.xlane.xlu0 %1072
        %1074 = vmax.xlane.f32.xlu0 %v1052
        %v1075 = vpop.xlane.xlu0 %1074
        %1076 = vmax.xlane.f32.xlu0 %v1053
        %v1077 = vpop.xlane.xlu0 %1076
        %1078 = vmax.xlane.f32.xlu0 %v1054
        %v1079 = vpop.xlane.xlu0 %1078
        %1080 = vmax.xlane.f32.xlu0 %v1055
        %v1081 = vpop.xlane.xlu0 %1080
        %1082 = vmax.xlane.f32.xlu0 %v1056
        %v1083 = vpop.xlane.xlu0 %1082
        %1084 = vmax.xlane.f32.xlu0 %v1057
        %v1085 = vpop.xlane.xlu0 %1084
        %1086 = vmax.xlane.f32.xlu0 %v1058
        %v1087 = vpop.xlane.xlu0 %1086
        %1088 = vmax.xlane.f32.xlu0 %v1059
        %v1089 = vpop.xlane.xlu0 %1088
        %1090 = vmax.xlane.f32.xlu0 %v1060
        %v1091 = vpop.xlane.xlu0 %1090
        %1092 = vmax.xlane.f32.xlu0 %v1061
        %v1093 = vpop.xlane.xlu0 %1092
        %v1094 = vsub.f32 %v1046, %v1063
        %v1095 = vsub.f32 %v1047, %v1065
        %v1096 = vsub.f32 %v1048, %v1067
        %v1097 = vsub.f32 %v1049, %v1069
        %v1098 = vsub.f32 %v1050, %v1071
        %v1099 = vsub.f32 %v1051, %v1073
        %v1100 = vsub.f32 %v1052, %v1075
        %v1101 = vsub.f32 %v1053, %v1077
        %v1102 = vsub.f32 %v1054, %v1079
        %v1103 = vsub.f32 %v1055, %v1081
        %v1104 = vsub.f32 %v1056, %v1083
        %v1105 = vsub.f32 %v1057, %v1085
        %v1106 = vsub.f32 %v1058, %v1087
        %v1107 = vsub.f32 %v1059, %v1089
        %v1108 = vsub.f32 %v1060, %v1091
        %v1109 = vsub.f32 %v1061, %v1093
        %v1110 = vmul.f32 %v1094, 1.442695
        %v1111 = vpow.pop %v1110
        %v1112 = vmul.f32 %v1095, 1.442695
        %v1113 = vpow.pop %v1112
        %v1114 = vmul.f32 %v1096, 1.442695
        %v1115 = vpow.pop %v1114
        %v1116 = vmul.f32 %v1097, 1.442695
        %v1117 = vpow.pop %v1116
        %v1118 = vmul.f32 %v1098, 1.442695
        %v1119 = vpow.pop %v1118
        %v1120 = vmul.f32 %v1099, 1.442695
        %v1121 = vpow.pop %v1120
        %v1122 = vmul.f32 %v1100, 1.442695
        %v1123 = vpow.pop %v1122
        %v1124 = vmul.f32 %v1101, 1.442695
        %v1125 = vpow.pop %v1124
        %v1126 = vmul.f32 %v1102, 1.442695
        %v1127 = vpow.pop %v1126
        %v1128 = vmul.f32 %v1103, 1.442695
        %v1129 = vpow.pop %v1128
        %v1130 = vmul.f32 %v1104, 1.442695
        %v1131 = vpow.pop %v1130
        %v1132 = vmul.f32 %v1105, 1.442695
        %v1133 = vpow.pop %v1132
        %v1134 = vmul.f32 %v1106, 1.442695
        %v1135 = vpow.pop %v1134
        %v1136 = vmul.f32 %v1107, 1.442695
        %v1137 = vpow.pop %v1136
        %v1138 = vmul.f32 %v1108, 1.442695
        %v1139 = vpow.pop %v1138
        %v1140 = vmul.f32 %v1109, 1.442695
        %v1141 = vpow.pop %v1140
        %1142 = vadd.xlane.f32.xlu0 %v1111
        %v1143 = vpop.xlane.xlu0 %1142
        %1144 = vadd.xlane.f32.xlu0 %v1113
        %v1145 = vpop.xlane.xlu0 %1144
        %1146 = vadd.xlane.f32.xlu0 %v1115
        %v1147 = vpop.xlane.xlu0 %1146
        %1148 = vadd.xlane.f32.xlu0 %v1117
        %v1149 = vpop.xlane.xlu0 %1148
        %1150 = vadd.xlane.f32.xlu0 %v1119
        %v1151 = vpop.xlane.xlu0 %1150
        %1152 = vadd.xlane.f32.xlu0 %v1121
        %v1153 = vpop.xlane.xlu0 %1152
        %1154 = vadd.xlane.f32.xlu0 %v1123
        %v1155 = vpop.xlane.xlu0 %1154
        %1156 = vadd.xlane.f32.xlu0 %v1125
        %v1157 = vpop.xlane.xlu0 %1156
        %1158 = vadd.xlane.f32.xlu0 %v1127
        %v1159 = vpop.xlane.xlu0 %1158
        %1160 = vadd.xlane.f32.xlu0 %v1129
        %v1161 = vpop.xlane.xlu0 %1160
        %1162 = vadd.xlane.f32.xlu0 %v1131
        %v1163 = vpop.xlane.xlu0 %1162
        %1164 = vadd.xlane.f32.xlu0 %v1133
        %v1165 = vpop.xlane.xlu0 %1164
        %1166 = vadd.xlane.f32.xlu0 %v1135
        %v1167 = vpop.xlane.xlu0 %1166
        %1168 = vadd.xlane.f32.xlu0 %v1137
        %v1169 = vpop.xlane.xlu0 %1168
        %1170 = vadd.xlane.f32.xlu0 %v1139
        %v1171 = vpop.xlane.xlu0 %1170
        %1172 = vadd.xlane.f32.xlu0 %v1141
        %v1173 = vpop.xlane.xlu0 %1172
        %v1174 = vrcp.pop %v1143
        %v1175 = vrcp.pop %v1145
        %v1176 = vrcp.pop %v1147
        %v1177 = vrcp.pop %v1149
        %v1178 = vrcp.pop %v1151
        %v1179 = vrcp.pop %v1153
        %v1180 = vrcp.pop %v1155
        %v1181 = vrcp.pop %v1157
        %v1182 = vrcp.pop %v1159
        %v1183 = vrcp.pop %v1161
        %v1184 = vrcp.pop %v1163
        %v1185 = vrcp.pop %v1165
        %v1186 = vrcp.pop %v1167
        %v1187 = vrcp.pop %v1169
        %v1188 = vrcp.pop %v1171
        %v1189 = vrcp.pop %v1173
        %v1190 = vmul.f32 %v1111, %v1174
        %v1191 = vmul.f32 %v1113, %v1175
        %v1192 = vmul.f32 %v1115, %v1176
        %v1193 = vmul.f32 %v1117, %v1177
        %v1194 = vmul.f32 %v1119, %v1178
        %v1195 = vmul.f32 %v1121, %v1179
        %v1196 = vmul.f32 %v1123, %v1180
        %v1197 = vmul.f32 %v1125, %v1181
        %v1198 = vmul.f32 %v1127, %v1182
        %v1199 = vmul.f32 %v1129, %v1183
        %v1200 = vmul.f32 %v1131, %v1184
        %v1201 = vmul.f32 %v1133, %v1185
        %v1202 = vmul.f32 %v1135, %v1186
        %v1203 = vmul.f32 %v1137, %v1187
        %v1204 = vmul.f32 %v1139, %v1188
        %v1205 = vmul.f32 %v1141, %v1189
        %v1206 = vpack.c.bf16 %v1191, %v1190
        %v1207 = vpack.c.bf16 %v1193, %v1192
        %v1208 = vpack.c.bf16 %v1195, %v1194
        %v1209 = vpack.c.bf16 %v1197, %v1196
        %v1210 = vpack.c.bf16 %v1199, %v1198
        %v1211 = vpack.c.bf16 %v1201, %v1200
        %v1212 = vpack.c.bf16 %v1203, %v1202
        %v1213 = vpack.c.bf16 %v1205, %v1204
        %v1230 = vunpack.c.l.b16 %v753
        %v1231 = vunpack.c.l.b16 %v755
        %v1232 = vunpack.c.l.b16 %v757
        %v1233 = vunpack.c.l.b16 %v759
        %v1234 = vunpack.c.l.b16 %v761
        %v1235 = vunpack.c.l.b16 %v763
        %v1236 = vunpack.c.l.b16 %v765
        %v1237 = vunpack.c.l.b16 %v767
        %v1238 = vunpack.c.l.b16 %v769
        %v1239 = vunpack.c.l.b16 %v771
        %v1240 = vunpack.c.l.b16 %v773
        %v1241 = vunpack.c.l.b16 %v775
        %v1242 = vunpack.c.l.b16 %v777
        %v1243 = vunpack.c.l.b16 %v779
        %v1244 = vunpack.c.l.b16 %v781
        %v1245 = vunpack.c.l.b16 %v783
        %v1246 = vpack.c.b16 %v1231, %v1230
        %v1247 = vpack.c.b16 %v1233, %v1232
        %v1248 = vpack.c.b16 %v1235, %v1234
        %v1249 = vpack.c.b16 %v1237, %v1236
        %v1250 = vpack.c.b16 %v1239, %v1238
        %v1251 = vpack.c.b16 %v1241, %v1240
        %v1252 = vpack.c.b16 %v1243, %v1242
        %v1253 = vpack.c.b16 %v1245, %v1244
        %1262 = vmatpush.bf16.msra.mxu0 %v1253
        %1263 = vmatpush.bf16.msra.mxu0 %v1252
        %1264 = vmatpush.bf16.msra.mxu0 %v1251
        %1265 = vmatpush.bf16.msra.mxu0 %v1250
        %1266 = vmatpush.bf16.msra.mxu0 %v1249
        %1267 = vmatpush.bf16.msra.mxu0 %v1248
        %1268 = vmatpush.bf16.msra.mxu0 %v1247
        %1269 = vmatpush.bf16.msra.mxu0 %v1246
        %1270 = vmatmul.bf16.gmra.mxu0 %v1206
        %v1271 = vpop.f32.mrf.mxu0
        %v1272 = vadd.f32 0.0, %v1271
        %v1273 = vpop.f32.mrf.mxu0
        %v1274 = vadd.f32 0.0, %v1273
        %1275 = vmatmul.bf16.gmra.mxu0 %v1207
        %v1276 = vpop.f32.mrf.mxu0
        %v1277 = vadd.f32 0.0, %v1276
        %v1278 = vpop.f32.mrf.mxu0
        %v1279 = vadd.f32 0.0, %v1278
        %1280 = vmatmul.bf16.gmra.mxu0 %v1208
        %v1281 = vpop.f32.mrf.mxu0
        %v1282 = vadd.f32 0.0, %v1281
        %v1283 = vpop.f32.mrf.mxu0
        %v1284 = vadd.f32 0.0, %v1283
        %1285 = vmatmul.bf16.gmra.mxu0 %v1209
        %v1286 = vpop.f32.mrf.mxu0
        %v1287 = vadd.f32 0.0, %v1286
        %v1288 = vpop.f32.mrf.mxu0
        %v1289 = vadd.f32 0.0, %v1288
        %1290 = vmatmul.bf16.gmra.mxu0 %v1210
        %v1291 = vpop.f32.mrf.mxu0
        %v1292 = vadd.f32 0.0, %v1291
        %v1293 = vpop.f32.mrf.mxu0
        %v1294 = vadd.f32 0.0, %v1293
        %1295 = vmatmul.bf16.gmra.mxu0 %v1211
        %v1296 = vpop.f32.mrf.mxu0
        %v1297 = vadd.f32 0.0, %v1296
        %v1298 = vpop.f32.mrf.mxu0
        %v1299 = vadd.f32 0.0, %v1298
        %1300 = vmatmul.bf16.gmra.mxu0 %v1212
        %v1301 = vpop.f32.mrf.mxu0
        %v1302 = vadd.f32 0.0, %v1301
        %v1303 = vpop.f32.mrf.mxu0
        %v1304 = vadd.f32 0.0, %v1303
        %1305 = vmatmul.bf16.gmra.mxu0 %v1213
        %v1306 = vpop.f32.mrf.mxu0
        %v1307 = vadd.f32 0.0, %v1306
        %v1308 = vpop.f32.mrf.mxu0
        %v1309 = vadd.f32 0.0, %v1308
        %1310 = vdwg.mxu0
        %v1311 = vld [vmem:[#allocation2] sm:$0xff]
        %v1312 = vld [vmem:[#allocation2 + $0x8] sm:$0xff]
        %v1313 = vld [vmem:[#allocation2 + $0x10] sm:$0xff]
        %v1314 = vld [vmem:[#allocation2 + $0x18] sm:$0xff]
        %v1315 = vld [vmem:[#allocation2 + $0x20] sm:$0xff]
        %v1316 = vld [vmem:[#allocation2 + $0x28] sm:$0xff]
        %v1317 = vld [vmem:[#allocation2 + $0x30] sm:$0xff]
        %v1318 = vld [vmem:[#allocation2 + $0x38] sm:$0xff]
        %v1319 = vld [vmem:[#allocation2 + $0x40] sm:$0xff]
        %v1320 = vld [vmem:[#allocation2 + $0x48] sm:$0xff]
        %v1321 = vld [vmem:[#allocation2 + $0x50] sm:$0xff]
        %v1322 = vld [vmem:[#allocation2 + $0x58] sm:$0xff]
        %v1323 = vld [vmem:[#allocation2 + $0x60] sm:$0xff]
        %v1324 = vld [vmem:[#allocation2 + $0x68] sm:$0xff]
        %v1325 = vld [vmem:[#allocation2 + $0x70] sm:$0xff]
        %v1326 = vld [vmem:[#allocation2 + $0x78] sm:$0xff]
        %v1327 = vpack.c.bf16 %v1274, %v1272
        %v1328 = vpack.c.bf16 %v1279, %v1277
        %v1329 = vpack.c.bf16 %v1284, %v1282
        %v1330 = vpack.c.bf16 %v1289, %v1287
        %v1331 = vpack.c.bf16 %v1294, %v1292
        %v1332 = vpack.c.bf16 %v1299, %v1297
        %v1333 = vpack.c.bf16 %v1304, %v1302
        %v1334 = vpack.c.bf16 %v1309, %v1307
        %v1339 = vunpack.c.l.b16 %v816
        %v1340 = vunpack.c.l.b16 %v817
        %v1341 = vunpack.c.l.b16 %v818
        %v1342 = vunpack.c.l.b16 %v819
        %v1343 = vpack.c.b16 %v1340, %v1339
        %v1344 = vpack.c.b16 %v1342, %v1341
        %v1348 = vsel %vm932, %v1327, 0
        %v1351 = vsel %vm932, %v1328, 0
        %v1354 = vsel %vm932, %v1329, 0
        %v1357 = vsel %vm932, %v1330, 0
        %v1360 = vsel %vm932, %v1331, 0
        %v1363 = vsel %vm932, %v1332, 0
        %v1366 = vsel %vm932, %v1333, 0
        %v1369 = vsel %vm932, %v1334, 0
        %1371 = vmatpush.bf16.msra.mxu0 0
        %1372 = vmatpush.bf16.msra.mxu0 0
        %1373 = vmatpush.bf16.msra.mxu0 0
        %1374 = vmatpush.bf16.msra.mxu0 0
        %1375 = vmatpush.bf16.msra.mxu0 0
        %1376 = vmatpush.bf16.msra.mxu0 0
        %1377 = vmatpush.bf16.msra.mxu0 %v1344
        %1378 = vmatpush.bf16.msra.mxu0 %v1343
        %1379 = vmatmul.bf16.gmra.mxu0 %v1348
        %v1380 = vpop.f32.mrf.mxu0
        %v1381 = vadd.f32 0.0, %v1380
        %v1382 = vpop.f32.mrf.mxu0
        %v1383 = vadd.f32 0.0, %v1382
        %1384 = vmatmul.bf16.gmra.mxu0 %v1351
        %v1385 = vpop.f32.mrf.mxu0
        %v1386 = vadd.f32 0.0, %v1385
        %v1387 = vpop.f32.mrf.mxu0
        %v1388 = vadd.f32 0.0, %v1387
        %1389 = vmatmul.bf16.gmra.mxu0 %v1354
        %v1390 = vpop.f32.mrf.mxu0
        %v1391 = vadd.f32 0.0, %v1390
        %v1392 = vpop.f32.mrf.mxu0
        %v1393 = vadd.f32 0.0, %v1392
        %1394 = vmatmul.bf16.gmra.mxu0 %v1357
        %v1395 = vpop.f32.mrf.mxu0
        %v1396 = vadd.f32 0.0, %v1395
        %v1397 = vpop.f32.mrf.mxu0
        %v1398 = vadd.f32 0.0, %v1397
        %1399 = vmatmul.bf16.gmra.mxu0 %v1360
        %v1400 = vpop.f32.mrf.mxu0
        %v1401 = vadd.f32 0.0, %v1400
        %v1402 = vpop.f32.mrf.mxu0
        %v1403 = vadd.f32 0.0, %v1402
        %1404 = vmatmul.bf16.gmra.mxu0 %v1363
        %v1405 = vpop.f32.mrf.mxu0
        %v1406 = vadd.f32 0.0, %v1405
        %v1407 = vpop.f32.mrf.mxu0
        %v1408 = vadd.f32 0.0, %v1407
        %1409 = vmatmul.bf16.gmra.mxu0 %v1366
        %v1410 = vpop.f32.mrf.mxu0
        %v1411 = vadd.f32 0.0, %v1410
        %v1412 = vpop.f32.mrf.mxu0
        %v1413 = vadd.f32 0.0, %v1412
        %1414 = vmatmul.bf16.gmra.mxu0 %v1369
        %v1415 = vpop.f32.mrf.mxu0
        %v1416 = vadd.f32 0.0, %v1415
        %v1417 = vpop.f32.mrf.mxu0
        %v1418 = vadd.f32 0.0, %v1417
        %1419 = vdwg.mxu0
        %v1420 = vadd.f32 %v1311, %v1381
        %v1421 = vadd.f32 %v1312, %v1383
        %v1422 = vadd.f32 %v1313, %v1386
        %v1423 = vadd.f32 %v1314, %v1388
        %v1424 = vadd.f32 %v1315, %v1391
        %v1425 = vadd.f32 %v1316, %v1393
        %v1426 = vadd.f32 %v1317, %v1396
        %v1427 = vadd.f32 %v1318, %v1398
        %v1428 = vadd.f32 %v1319, %v1401
        %v1429 = vadd.f32 %v1320, %v1403
        %v1430 = vadd.f32 %v1321, %v1406
        %v1431 = vadd.f32 %v1322, %v1408
        %v1432 = vadd.f32 %v1323, %v1411
        %v1433 = vadd.f32 %v1324, %v1413
        %v1434 = vadd.f32 %v1325, %v1416
        %v1435 = vadd.f32 %v1326, %v1418
        %1436 = vst [vmem:[#allocation2] sm:$0xff] %v1420
        %1437 = vst [vmem:[#allocation2 + $0x8] sm:$0xff] %v1421
        %1438 = vst [vmem:[#allocation2 + $0x10] sm:$0xff] %v1422
        %1439 = vst [vmem:[#allocation2 + $0x18] sm:$0xff] %v1423
        %1440 = vst [vmem:[#allocation2 + $0x20] sm:$0xff] %v1424
        %1441 = vst [vmem:[#allocation2 + $0x28] sm:$0xff] %v1425
        %1442 = vst [vmem:[#allocation2 + $0x30] sm:$0xff] %v1426
        %1443 = vst [vmem:[#allocation2 + $0x38] sm:$0xff] %v1427
        %1444 = vst [vmem:[#allocation2 + $0x40] sm:$0xff] %v1428
        %1445 = vst [vmem:[#allocation2 + $0x48] sm:$0xff] %v1429
        %1446 = vst [vmem:[#allocation2 + $0x50] sm:$0xff] %v1430
        %1447 = vst [vmem:[#allocation2 + $0x58] sm:$0xff] %v1431
        %1448 = vst [vmem:[#allocation2 + $0x60] sm:$0xff] %v1432
        %1449 = vst [vmem:[#allocation2 + $0x68] sm:$0xff] %v1433
        %1450 = vst [vmem:[#allocation2 + $0x70] sm:$0xff] %v1434
        %1451 = vst [vmem:[#allocation2 + $0x78] sm:$0xff] %v1435
        %1452 = vrot.lane.b32.xlu0 %v900, 96
        %v1453 = vpop.permute.xlu0 %1452
        %1454 = vrot.lane.b32.xlu0 %v901, 96
        %v1455 = vpop.permute.xlu0 %1454
        %1456 = vrot.lane.b32.xlu0 %v902, 96
        %v1457 = vpop.permute.xlu0 %1456
        %1458 = vrot.lane.b32.xlu0 %v903, 96
        %v1459 = vpop.permute.xlu0 %1458
        %1460 = vrot.lane.b32.xlu0 %v904, 96
        %v1461 = vpop.permute.xlu0 %1460
        %1462 = vrot.lane.b32.xlu0 %v905, 96
        %v1463 = vpop.permute.xlu0 %1462
        %1464 = vrot.lane.b32.xlu0 %v906, 96
        %v1465 = vpop.permute.xlu0 %1464
        %1466 = vrot.lane.b32.xlu0 %v907, 96
        %v1467 = vpop.permute.xlu0 %1466
        %1468 = vrot.lane.b32.xlu0 %v924, 96
        %v1469 = vpop.permute.xlu0 %1468
        %1470 = vrot.lane.b32.xlu0 %v925, 96
        %v1471 = vpop.permute.xlu0 %1470
        %1472 = vrot.lane.b32.xlu0 %v926, 96
        %v1473 = vpop.permute.xlu0 %1472
        %1474 = vrot.lane.b32.xlu0 %v927, 96
        %v1475 = vpop.permute.xlu0 %1474
        %1476 = vrot.lane.b32.xlu0 %v928, 96
        %v1477 = vpop.permute.xlu0 %1476
        %1478 = vrot.lane.b32.xlu0 %v929, 96
        %v1479 = vpop.permute.xlu0 %1478
        %1480 = vrot.lane.b32.xlu0 %v930, 96
        %v1481 = vpop.permute.xlu0 %1480
        %1482 = vrot.lane.b32.xlu0 %v931, 96
        %v1483 = vpop.permute.xlu0 %1482
        %v1485 = vsel %vm932, %v1453, 0
        %v1488 = vsel %vm932, %v1455, 0
        %v1491 = vsel %vm932, %v1457, 0
        %v1494 = vsel %vm932, %v1459, 0
        %v1497 = vsel %vm932, %v1461, 0
        %v1500 = vsel %vm932, %v1463, 0
        %v1503 = vsel %vm932, %v1465, 0
        %v1506 = vsel %vm932, %v1467, 0
        %v1509 = vsel %vm932, %v1469, 0
        %v1512 = vsel %vm932, %v1471, 0
        %v1515 = vsel %vm932, %v1473, 0
        %v1518 = vsel %vm932, %v1475, 0
        %v1521 = vsel %vm932, %v1477, 0
        %v1524 = vsel %vm932, %v1479, 0
        %v1527 = vsel %vm932, %v1481, 0
        %v1530 = vsel %vm932, %v1483, 0
        %1532 = vmatpush.bf16.xpose.msra.mxu0 %v1530
        %1533 = vmatpush.bf16.xpose.msra.mxu0 %v1527
        %1534 = vmatpush.bf16.xpose.msra.mxu0 %v1524
        %1535 = vmatpush.bf16.xpose.msra.mxu0 %v1521
        %1536 = vmatpush.bf16.xpose.msra.mxu0 %v1518
        %1537 = vmatpush.bf16.xpose.msra.mxu0 %v1515
        %1538 = vmatpush.bf16.xpose.msra.mxu0 %v1512
        %1539 = vmatpush.bf16.xpose.msra.mxu0 %v1509
        %1540 = vmatmul.bf16.gmra.mxu0 %v1485
        %v1541 = vpop.f32.mrf.mxu0
        %v1542 = vadd.f32 0.0, %v1541
        %v1543 = vpop.f32.mrf.mxu0
        %v1544 = vadd.f32 0.0, %v1543
        %1545 = vmatmul.bf16.gmra.mxu0 %v1488
        %v1546 = vpop.f32.mrf.mxu0
        %v1547 = vadd.f32 0.0, %v1546
        %v1548 = vpop.f32.mrf.mxu0
        %v1549 = vadd.f32 0.0, %v1548
        %1550 = vmatmul.bf16.gmra.mxu0 %v1491
        %v1551 = vpop.f32.mrf.mxu0
        %v1552 = vadd.f32 0.0, %v1551
        %v1553 = vpop.f32.mrf.mxu0
        %v1554 = vadd.f32 0.0, %v1553
        %1555 = vmatmul.bf16.gmra.mxu0 %v1494
        %v1556 = vpop.f32.mrf.mxu0
        %v1557 = vadd.f32 0.0, %v1556
        %v1558 = vpop.f32.mrf.mxu0
        %v1559 = vadd.f32 0.0, %v1558
        %1560 = vmatmul.bf16.gmra.mxu0 %v1497
        %v1561 = vpop.f32.mrf.mxu0
        %v1562 = vadd.f32 0.0, %v1561
        %v1563 = vpop.f32.mrf.mxu0
        %v1564 = vadd.f32 0.0, %v1563
        %1565 = vmatmul.bf16.gmra.mxu0 %v1500
        %v1566 = vpop.f32.mrf.mxu0
        %v1567 = vadd.f32 0.0, %v1566
        %v1568 = vpop.f32.mrf.mxu0
        %v1569 = vadd.f32 0.0, %v1568
        %1570 = vmatmul.bf16.gmra.mxu0 %v1503
        %v1571 = vpop.f32.mrf.mxu0
        %v1572 = vadd.f32 0.0, %v1571
        %v1573 = vpop.f32.mrf.mxu0
        %v1574 = vadd.f32 0.0, %v1573
        %1575 = vmatmul.bf16.gmra.mxu0 %v1506
        %v1576 = vpop.f32.mrf.mxu0
        %v1577 = vadd.f32 0.0, %v1576
        %v1578 = vpop.f32.mrf.mxu0
        %v1579 = vadd.f32 0.0, %v1578
        %1580 = vdwg.mxu0
        %v1581 = vsel %vm1030, %v1542, -1e+30
        %v1582 = vsel %vm1031, %v1544, -1e+30
        %v1583 = vsel %vm1032, %v1547, -1e+30
        %v1584 = vsel %vm1033, %v1549, -1e+30
        %v1585 = vsel %vm1034, %v1552, -1e+30
        %v1586 = vsel %vm1035, %v1554, -1e+30
        %v1587 = vsel %vm1036, %v1557, -1e+30
        %v1588 = vsel %vm1037, %v1559, -1e+30
        %v1589 = vsel %vm1038, %v1562, -1e+30
        %v1590 = vsel %vm1039, %v1564, -1e+30
        %v1591 = vsel %vm1040, %v1567, -1e+30
        %v1592 = vsel %vm1041, %v1569, -1e+30
        %v1593 = vsel %vm1042, %v1572, -1e+30
        %v1594 = vsel %vm1043, %v1574, -1e+30
        %v1595 = vsel %vm1044, %v1577, -1e+30
        %v1596 = vsel %vm1045, %v1579, -1e+30
        %1597 = vmax.xlane.f32.xlu0 %v1581
        %v1598 = vpop.xlane.xlu0 %1597
        %1599 = vmax.xlane.f32.xlu0 %v1582
        %v1600 = vpop.xlane.xlu0 %1599
        %1601 = vmax.xlane.f32.xlu0 %v1583
        %v1602 = vpop.xlane.xlu0 %1601
        %1603 = vmax.xlane.f32.xlu0 %v1584
        %v1604 = vpop.xlane.xlu0 %1603
        %1605 = vmax.xlane.f32.xlu0 %v1585
        %v1606 = vpop.xlane.xlu0 %1605
        %1607 = vmax.xlane.f32.xlu0 %v1586
        %v1608 = vpop.xlane.xlu0 %1607
        %1609 = vmax.xlane.f32.xlu0 %v1587
        %v1610 = vpop.xlane.xlu0 %1609
        %1611 = vmax.xlane.f32.xlu0 %v1588
        %v1612 = vpop.xlane.xlu0 %1611
        %1613 = vmax.xlane.f32.xlu0 %v1589
        %v1614 = vpop.xlane.xlu0 %1613
        %1615 = vmax.xlane.f32.xlu0 %v1590
        %v1616 = vpop.xlane.xlu0 %1615
        %1617 = vmax.xlane.f32.xlu0 %v1591
        %v1618 = vpop.xlane.xlu0 %1617
        %1619 = vmax.xlane.f32.xlu0 %v1592
        %v1620 = vpop.xlane.xlu0 %1619
        %1621 = vmax.xlane.f32.xlu0 %v1593
        %v1622 = vpop.xlane.xlu0 %1621
        %1623 = vmax.xlane.f32.xlu0 %v1594
        %v1624 = vpop.xlane.xlu0 %1623
        %1625 = vmax.xlane.f32.xlu0 %v1595
        %v1626 = vpop.xlane.xlu0 %1625
        %1627 = vmax.xlane.f32.xlu0 %v1596
        %v1628 = vpop.xlane.xlu0 %1627
        %v1629 = vsub.f32 %v1581, %v1598
        %v1630 = vsub.f32 %v1582, %v1600
        %v1631 = vsub.f32 %v1583, %v1602
        %v1632 = vsub.f32 %v1584, %v1604
        %v1633 = vsub.f32 %v1585, %v1606
        %v1634 = vsub.f32 %v1586, %v1608
        %v1635 = vsub.f32 %v1587, %v1610
        %v1636 = vsub.f32 %v1588, %v1612
        %v1637 = vsub.f32 %v1589, %v1614
        %v1638 = vsub.f32 %v1590, %v1616
        %v1639 = vsub.f32 %v1591, %v1618
        %v1640 = vsub.f32 %v1592, %v1620
        %v1641 = vsub.f32 %v1593, %v1622
        %v1642 = vsub.f32 %v1594, %v1624
        %v1643 = vsub.f32 %v1595, %v1626
        %v1644 = vsub.f32 %v1596, %v1628
        %v1645 = vmul.f32 %v1629, 1.442695
        %v1646 = vpow.pop %v1645
        %v1647 = vmul.f32 %v1630, 1.442695
        %v1648 = vpow.pop %v1647
        %v1649 = vmul.f32 %v1631, 1.442695
        %v1650 = vpow.pop %v1649
        %v1651 = vmul.f32 %v1632, 1.442695
        %v1652 = vpow.pop %v1651
        %v1653 = vmul.f32 %v1633, 1.442695
        %v1654 = vpow.pop %v1653
        %v1655 = vmul.f32 %v1634, 1.442695
        %v1656 = vpow.pop %v1655
        %v1657 = vmul.f32 %v1635, 1.442695
        %v1658 = vpow.pop %v1657
        %v1659 = vmul.f32 %v1636, 1.442695
        %v1660 = vpow.pop %v1659
        %v1661 = vmul.f32 %v1637, 1.442695
        %v1662 = vpow.pop %v1661
        %v1663 = vmul.f32 %v1638, 1.442695
        %v1664 = vpow.pop %v1663
        %v1665 = vmul.f32 %v1639, 1.442695
        %v1666 = vpow.pop %v1665
        %v1667 = vmul.f32 %v1640, 1.442695
        %v1668 = vpow.pop %v1667
        %v1669 = vmul.f32 %v1641, 1.442695
        %v1670 = vpow.pop %v1669
        %v1671 = vmul.f32 %v1642, 1.442695
        %v1672 = vpow.pop %v1671
        %v1673 = vmul.f32 %v1643, 1.442695
        %v1674 = vpow.pop %v1673
        %v1675 = vmul.f32 %v1644, 1.442695
        %v1676 = vpow.pop %v1675
        %1677 = vadd.xlane.f32.xlu0 %v1646
        %v1678 = vpop.xlane.xlu0 %1677
        %1679 = vadd.xlane.f32.xlu0 %v1648
        %v1680 = vpop.xlane.xlu0 %1679
        %1681 = vadd.xlane.f32.xlu0 %v1650
        %v1682 = vpop.xlane.xlu0 %1681
        %1683 = vadd.xlane.f32.xlu0 %v1652
        %v1684 = vpop.xlane.xlu0 %1683
        %1685 = vadd.xlane.f32.xlu0 %v1654
        %v1686 = vpop.xlane.xlu0 %1685
        %1687 = vadd.xlane.f32.xlu0 %v1656
        %v1688 = vpop.xlane.xlu0 %1687
        %1689 = vadd.xlane.f32.xlu0 %v1658
        %v1690 = vpop.xlane.xlu0 %1689
        %1691 = vadd.xlane.f32.xlu0 %v1660
        %v1692 = vpop.xlane.xlu0 %1691
        %1693 = vadd.xlane.f32.xlu0 %v1662
        %v1694 = vpop.xlane.xlu0 %1693
        %1695 = vadd.xlane.f32.xlu0 %v1664
        %v1696 = vpop.xlane.xlu0 %1695
        %1697 = vadd.xlane.f32.xlu0 %v1666
        %v1698 = vpop.xlane.xlu0 %1697
        %1699 = vadd.xlane.f32.xlu0 %v1668
        %v1700 = vpop.xlane.xlu0 %1699
        %1701 = vadd.xlane.f32.xlu0 %v1670
        %v1702 = vpop.xlane.xlu0 %1701
        %1703 = vadd.xlane.f32.xlu0 %v1672
        %v1704 = vpop.xlane.xlu0 %1703
        %1705 = vadd.xlane.f32.xlu0 %v1674
        %v1706 = vpop.xlane.xlu0 %1705
        %1707 = vadd.xlane.f32.xlu0 %v1676
        %v1708 = vpop.xlane.xlu0 %1707
        %v1709 = vrcp.pop %v1678
        %v1710 = vrcp.pop %v1680
        %v1711 = vrcp.pop %v1682
        %v1712 = vrcp.pop %v1684
        %v1713 = vrcp.pop %v1686
        %v1714 = vrcp.pop %v1688
        %v1715 = vrcp.pop %v1690
        %v1716 = vrcp.pop %v1692
        %v1717 = vrcp.pop %v1694
        %v1718 = vrcp.pop %v1696
        %v1719 = vrcp.pop %v1698
        %v1720 = vrcp.pop %v1700
        %v1721 = vrcp.pop %v1702
        %v1722 = vrcp.pop %v1704
        %v1723 = vrcp.pop %v1706
        %v1724 = vrcp.pop %v1708
        %v1725 = vmul.f32 %v1646, %v1709
        %v1726 = vmul.f32 %v1648, %v1710
        %v1727 = vmul.f32 %v1650, %v1711
        %v1728 = vmul.f32 %v1652, %v1712
        %v1729 = vmul.f32 %v1654, %v1713
        %v1730 = vmul.f32 %v1656, %v1714
        %v1731 = vmul.f32 %v1658, %v1715
        %v1732 = vmul.f32 %v1660, %v1716
        %v1733 = vmul.f32 %v1662, %v1717
        %v1734 = vmul.f32 %v1664, %v1718
        %v1735 = vmul.f32 %v1666, %v1719
        %v1736 = vmul.f32 %v1668, %v1720
        %v1737 = vmul.f32 %v1670, %v1721
        %v1738 = vmul.f32 %v1672, %v1722
        %v1739 = vmul.f32 %v1674, %v1723
        %v1740 = vmul.f32 %v1676, %v1724
        %v1741 = vpack.c.bf16 %v1726, %v1725
        %v1742 = vpack.c.bf16 %v1728, %v1727
        %v1743 = vpack.c.bf16 %v1730, %v1729
        %v1744 = vpack.c.bf16 %v1732, %v1731
        %v1745 = vpack.c.bf16 %v1734, %v1733
        %v1746 = vpack.c.bf16 %v1736, %v1735
        %v1747 = vpack.c.bf16 %v1738, %v1737
        %v1748 = vpack.c.bf16 %v1740, %v1739
        %1749 = vrot.lane.b32.xlu0 %v1246, 96
        %v1750 = vpop.permute.xlu0 %1749
        %1751 = vrot.lane.b32.xlu0 %v1247, 96
        %v1752 = vpop.permute.xlu0 %1751
        %1753 = vrot.lane.b32.xlu0 %v1248, 96
        %v1754 = vpop.permute.xlu0 %1753
        %1755 = vrot.lane.b32.xlu0 %v1249, 96
        %v1756 = vpop.permute.xlu0 %1755
        %1757 = vrot.lane.b32.xlu0 %v1250, 96
        %v1758 = vpop.permute.xlu0 %1757
        %1759 = vrot.lane.b32.xlu0 %v1251, 96
        %v1760 = vpop.permute.xlu0 %1759
        %1761 = vrot.lane.b32.xlu0 %v1252, 96
        %v1762 = vpop.permute.xlu0 %1761
        %1763 = vrot.lane.b32.xlu0 %v1253, 96
        %v1764 = vpop.permute.xlu0 %1763
        %1773 = vmatpush.bf16.msra.mxu0 %v1764
        %1774 = vmatpush.bf16.msra.mxu0 %v1762
        %1775 = vmatpush.bf16.msra.mxu0 %v1760
        %1776 = vmatpush.bf16.msra.mxu0 %v1758
        %1777 = vmatpush.bf16.msra.mxu0 %v1756
        %1778 = vmatpush.bf16.msra.mxu0 %v1754
        %1779 = vmatpush.bf16.msra.mxu0 %v1752
        %1780 = vmatpush.bf16.msra.mxu0 %v1750
        %1781 = vmatmul.bf16.gmra.mxu0 %v1741
        %v1782 = vpop.f32.mrf.mxu0
        %v1783 = vadd.f32 0.0, %v1782
        %v1784 = vpop.f32.mrf.mxu0
        %v1785 = vadd.f32 0.0, %v1784
        %1786 = vmatmul.bf16.gmra.mxu0 %v1742
        %v1787 = vpop.f32.mrf.mxu0
        %v1788 = vadd.f32 0.0, %v1787
        %v1789 = vpop.f32.mrf.mxu0
        %v1790 = vadd.f32 0.0, %v1789
        %1791 = vmatmul.bf16.gmra.mxu0 %v1743
        %v1792 = vpop.f32.mrf.mxu0
        %v1793 = vadd.f32 0.0, %v1792
        %v1794 = vpop.f32.mrf.mxu0
        %v1795 = vadd.f32 0.0, %v1794
        %1796 = vmatmul.bf16.gmra.mxu0 %v1744
        %v1797 = vpop.f32.mrf.mxu0
        %v1798 = vadd.f32 0.0, %v1797
        %v1799 = vpop.f32.mrf.mxu0
        %v1800 = vadd.f32 0.0, %v1799
        %1801 = vmatmul.bf16.gmra.mxu0 %v1745
        %v1802 = vpop.f32.mrf.mxu0
        %v1803 = vadd.f32 0.0, %v1802
        %v1804 = vpop.f32.mrf.mxu0
        %v1805 = vadd.f32 0.0, %v1804
        %1806 = vmatmul.bf16.gmra.mxu0 %v1746
        %v1807 = vpop.f32.mrf.mxu0
        %v1808 = vadd.f32 0.0, %v1807
        %v1809 = vpop.f32.mrf.mxu0
        %v1810 = vadd.f32 0.0, %v1809
        %1811 = vmatmul.bf16.gmra.mxu0 %v1747
        %v1812 = vpop.f32.mrf.mxu0
        %v1813 = vadd.f32 0.0, %v1812
        %v1814 = vpop.f32.mrf.mxu0
        %v1815 = vadd.f32 0.0, %v1814
        %1816 = vmatmul.bf16.gmra.mxu0 %v1748
        %v1817 = vpop.f32.mrf.mxu0
        %v1818 = vadd.f32 0.0, %v1817
        %v1819 = vpop.f32.mrf.mxu0
        %v1820 = vadd.f32 0.0, %v1819
        %1821 = vdwg.mxu0
        %v1822 = vld [vmem:[#allocation2] sm:$0xff]
        %v1823 = vld [vmem:[#allocation2 + $0x8] sm:$0xff]
        %v1824 = vld [vmem:[#allocation2 + $0x10] sm:$0xff]
        %v1825 = vld [vmem:[#allocation2 + $0x18] sm:$0xff]
        %v1826 = vld [vmem:[#allocation2 + $0x20] sm:$0xff]
        %v1827 = vld [vmem:[#allocation2 + $0x28] sm:$0xff]
        %v1828 = vld [vmem:[#allocation2 + $0x30] sm:$0xff]
        %v1829 = vld [vmem:[#allocation2 + $0x38] sm:$0xff]
        %v1830 = vld [vmem:[#allocation2 + $0x40] sm:$0xff]
        %v1831 = vld [vmem:[#allocation2 + $0x48] sm:$0xff]
        %v1832 = vld [vmem:[#allocation2 + $0x50] sm:$0xff]
        %v1833 = vld [vmem:[#allocation2 + $0x58] sm:$0xff]
        %v1834 = vld [vmem:[#allocation2 + $0x60] sm:$0xff]
        %v1835 = vld [vmem:[#allocation2 + $0x68] sm:$0xff]
        %v1836 = vld [vmem:[#allocation2 + $0x70] sm:$0xff]
        %v1837 = vld [vmem:[#allocation2 + $0x78] sm:$0xff]
        %v1838 = vpack.c.bf16 %v1785, %v1783
        %v1839 = vpack.c.bf16 %v1790, %v1788
        %v1840 = vpack.c.bf16 %v1795, %v1793
        %v1841 = vpack.c.bf16 %v1800, %v1798
        %v1842 = vpack.c.bf16 %v1805, %v1803
        %v1843 = vpack.c.bf16 %v1810, %v1808
        %v1844 = vpack.c.bf16 %v1815, %v1813
        %v1845 = vpack.c.bf16 %v1820, %v1818
        %v1850 = vunpack.c.l.b16 %v820
        %v1851 = vunpack.c.l.b16 %v821
        %v1852 = vunpack.c.l.b16 %v822
        %v1853 = vunpack.c.l.b16 %v823
        %v1854 = vpack.c.b16 %v1851, %v1850
        %v1855 = vpack.c.b16 %v1853, %v1852
        %v1859 = vsel %vm932, %v1838, 0
        %v1862 = vsel %vm932, %v1839, 0
        %v1865 = vsel %vm932, %v1840, 0
        %v1868 = vsel %vm932, %v1841, 0
        %v1871 = vsel %vm932, %v1842, 0
        %v1874 = vsel %vm932, %v1843, 0
        %v1877 = vsel %vm932, %v1844, 0
        %v1880 = vsel %vm932, %v1845, 0
        %1882 = vmatpush.bf16.msra.mxu0 0
        %1883 = vmatpush.bf16.msra.mxu0 0
        %1884 = vmatpush.bf16.msra.mxu0 0
        %1885 = vmatpush.bf16.msra.mxu0 0
        %1886 = vmatpush.bf16.msra.mxu0 0
        %1887 = vmatpush.bf16.msra.mxu0 0
        %1888 = vmatpush.bf16.msra.mxu0 %v1855
        %1889 = vmatpush.bf16.msra.mxu0 %v1854
        %1890 = vmatmul.bf16.gmra.mxu0 %v1859
        %v1891 = vpop.f32.mrf.mxu0
        %v1892 = vadd.f32 0.0, %v1891
        %v1893 = vpop.f32.mrf.mxu0
        %v1894 = vadd.f32 0.0, %v1893
        %1895 = vmatmul.bf16.gmra.mxu0 %v1862
        %v1896 = vpop.f32.mrf.mxu0
        %v1897 = vadd.f32 0.0, %v1896
        %v1898 = vpop.f32.mrf.mxu0
        %v1899 = vadd.f32 0.0, %v1898
        %1900 = vmatmul.bf16.gmra.mxu0 %v1865
        %v1901 = vpop.f32.mrf.mxu0
        %v1902 = vadd.f32 0.0, %v1901
        %v1903 = vpop.f32.mrf.mxu0
        %v1904 = vadd.f32 0.0, %v1903
        %1905 = vmatmul.bf16.gmra.mxu0 %v1868
        %v1906 = vpop.f32.mrf.mxu0
        %v1907 = vadd.f32 0.0, %v1906
        %v1908 = vpop.f32.mrf.mxu0
        %v1909 = vadd.f32 0.0, %v1908
        %1910 = vmatmul.bf16.gmra.mxu0 %v1871
        %v1911 = vpop.f32.mrf.mxu0
        %v1912 = vadd.f32 0.0, %v1911
        %v1913 = vpop.f32.mrf.mxu0
        %v1914 = vadd.f32 0.0, %v1913
        %1915 = vmatmul.bf16.gmra.mxu0 %v1874
        %v1916 = vpop.f32.mrf.mxu0
        %v1917 = vadd.f32 0.0, %v1916
        %v1918 = vpop.f32.mrf.mxu0
        %v1919 = vadd.f32 0.0, %v1918
        %1920 = vmatmul.bf16.gmra.mxu0 %v1877
        %v1921 = vpop.f32.mrf.mxu0
        %v1922 = vadd.f32 0.0, %v1921
        %v1923 = vpop.f32.mrf.mxu0
        %v1924 = vadd.f32 0.0, %v1923
        %1925 = vmatmul.bf16.gmra.mxu0 %v1880
        %v1926 = vpop.f32.mrf.mxu0
        %v1927 = vadd.f32 0.0, %v1926
        %v1928 = vpop.f32.mrf.mxu0
        %v1929 = vadd.f32 0.0, %v1928
        %1930 = vdwg.mxu0
        %v1931 = vadd.f32 %v1822, %v1892
        %v1932 = vadd.f32 %v1823, %v1894
        %v1933 = vadd.f32 %v1824, %v1897
        %v1934 = vadd.f32 %v1825, %v1899
        %v1935 = vadd.f32 %v1826, %v1902
        %v1936 = vadd.f32 %v1827, %v1904
        %v1937 = vadd.f32 %v1828, %v1907
        %v1938 = vadd.f32 %v1829, %v1909
        %v1939 = vadd.f32 %v1830, %v1912
        %v1940 = vadd.f32 %v1831, %v1914
        %v1941 = vadd.f32 %v1832, %v1917
        %v1942 = vadd.f32 %v1833, %v1919
        %v1943 = vadd.f32 %v1834, %v1922
        %v1944 = vadd.f32 %v1835, %v1924
        %v1945 = vadd.f32 %v1836, %v1927
        %v1946 = vadd.f32 %v1837, %v1929
        %1947 = vst [vmem:[#allocation2] sm:$0xff] %v1931
        %1948 = vst [vmem:[#allocation2 + $0x8] sm:$0xff] %v1932
        %1949 = vst [vmem:[#allocation2 + $0x10] sm:$0xff] %v1933
        %1950 = vst [vmem:[#allocation2 + $0x18] sm:$0xff] %v1934
        %1951 = vst [vmem:[#allocation2 + $0x20] sm:$0xff] %v1935
        %1952 = vst [vmem:[#allocation2 + $0x28] sm:$0xff] %v1936
        %1953 = vst [vmem:[#allocation2 + $0x30] sm:$0xff] %v1937
        %1954 = vst [vmem:[#allocation2 + $0x38] sm:$0xff] %v1938
        %1955 = vst [vmem:[#allocation2 + $0x40] sm:$0xff] %v1939
        %1956 = vst [vmem:[#allocation2 + $0x48] sm:$0xff] %v1940
        %1957 = vst [vmem:[#allocation2 + $0x50] sm:$0xff] %v1941
        %1958 = vst [vmem:[#allocation2 + $0x58] sm:$0xff] %v1942
        %1959 = vst [vmem:[#allocation2 + $0x60] sm:$0xff] %v1943
        %1960 = vst [vmem:[#allocation2 + $0x68] sm:$0xff] %v1944
        %1961 = vst [vmem:[#allocation2 + $0x70] sm:$0xff] %v1945
        %1962 = vst [vmem:[#allocation2 + $0x78] sm:$0xff] %v1946
        %1963 = vrot.lane.b32.xlu0 %v900, 64
        %v1964 = vpop.permute.xlu0 %1963
        %1965 = vrot.lane.b32.xlu0 %v901, 64
        %v1966 = vpop.permute.xlu0 %1965
        %1967 = vrot.lane.b32.xlu0 %v902, 64
        %v1968 = vpop.permute.xlu0 %1967
        %1969 = vrot.lane.b32.xlu0 %v903, 64
        %v1970 = vpop.permute.xlu0 %1969
        %1971 = vrot.lane.b32.xlu0 %v904, 64
        %v1972 = vpop.permute.xlu0 %1971
        %1973 = vrot.lane.b32.xlu0 %v905, 64
        %v1974 = vpop.permute.xlu0 %1973
        %1975 = vrot.lane.b32.xlu0 %v906, 64
        %v1976 = vpop.permute.xlu0 %1975
        %1977 = vrot.lane.b32.xlu0 %v907, 64
        %v1978 = vpop.permute.xlu0 %1977
        %1979 = vrot.lane.b32.xlu0 %v924, 64
        %v1980 = vpop.permute.xlu0 %1979
        %1981 = vrot.lane.b32.xlu0 %v925, 64
        %v1982 = vpop.permute.xlu0 %1981
        %1983 = vrot.lane.b32.xlu0 %v926, 64
        %v1984 = vpop.permute.xlu0 %1983
        %1985 = vrot.lane.b32.xlu0 %v927, 64
        %v1986 = vpop.permute.xlu0 %1985
        %1987 = vrot.lane.b32.xlu0 %v928, 64
        %v1988 = vpop.permute.xlu0 %1987
        %1989 = vrot.lane.b32.xlu0 %v929, 64
        %v1990 = vpop.permute.xlu0 %1989
        %1991 = vrot.lane.b32.xlu0 %v930, 64
        %v1992 = vpop.permute.xlu0 %1991
        %1993 = vrot.lane.b32.xlu0 %v931, 64
        %v1994 = vpop.permute.xlu0 %1993
        %v1996 = vsel %vm932, %v1964, 0
        %v1999 = vsel %vm932, %v1966, 0
        %v2002 = vsel %vm932, %v1968, 0
        %v2005 = vsel %vm932, %v1970, 0
        %v2008 = vsel %vm932, %v1972, 0
        %v2011 = vsel %vm932, %v1974, 0
        %v2014 = vsel %vm932, %v1976, 0
        %v2017 = vsel %vm932, %v1978, 0
        %v2020 = vsel %vm932, %v1980, 0
        %v2023 = vsel %vm932, %v1982, 0
        %v2026 = vsel %vm932, %v1984, 0
        %v2029 = vsel %vm932, %v1986, 0
        %v2032 = vsel %vm932, %v1988, 0
        %v2035 = vsel %vm932, %v1990, 0
        %v2038 = vsel %vm932, %v1992, 0
        %v2041 = vsel %vm932, %v1994, 0
        %2043 = vmatpush.bf16.xpose.msra.mxu0 %v2041
        %2044 = vmatpush.bf16.xpose.msra.mxu0 %v2038
        %2045 = vmatpush.bf16.xpose.msra.mxu0 %v2035
        %2046 = vmatpush.bf16.xpose.msra.mxu0 %v2032
        %2047 = vmatpush.bf16.xpose.msra.mxu0 %v2029
        %2048 = vmatpush.bf16.xpose.msra.mxu0 %v2026
        %2049 = vmatpush.bf16.xpose.msra.mxu0 %v2023
        %2050 = vmatpush.bf16.xpose.msra.mxu0 %v2020
        %2051 = vmatmul.bf16.gmra.mxu0 %v1996
        %v2052 = vpop.f32.mrf.mxu0
        %v2053 = vadd.f32 0.0, %v2052
        %v2054 = vpop.f32.mrf.mxu0
        %v2055 = vadd.f32 0.0, %v2054
        %2056 = vmatmul.bf16.gmra.mxu0 %v1999
        %v2057 = vpop.f32.mrf.mxu0
        %v2058 = vadd.f32 0.0, %v2057
        %v2059 = vpop.f32.mrf.mxu0
        %v2060 = vadd.f32 0.0, %v2059
        %2061 = vmatmul.bf16.gmra.mxu0 %v2002
        %v2062 = vpop.f32.mrf.mxu0
        %v2063 = vadd.f32 0.0, %v2062
        %v2064 = vpop.f32.mrf.mxu0
        %v2065 = vadd.f32 0.0, %v2064
        %2066 = vmatmul.bf16.gmra.mxu0 %v2005
        %v2067 = vpop.f32.mrf.mxu0
        %v2068 = vadd.f32 0.0, %v2067
        %v2069 = vpop.f32.mrf.mxu0
        %v2070 = vadd.f32 0.0, %v2069
        %2071 = vmatmul.bf16.gmra.mxu0 %v2008
        %v2072 = vpop.f32.mrf.mxu0
        %v2073 = vadd.f32 0.0, %v2072
        %v2074 = vpop.f32.mrf.mxu0
        %v2075 = vadd.f32 0.0, %v2074
        %2076 = vmatmul.bf16.gmra.mxu0 %v2011
        %v2077 = vpop.f32.mrf.mxu0
        %v2078 = vadd.f32 0.0, %v2077
        %v2079 = vpop.f32.mrf.mxu0
        %v2080 = vadd.f32 0.0, %v2079
        %2081 = vmatmul.bf16.gmra.mxu0 %v2014
        %v2082 = vpop.f32.mrf.mxu0
        %v2083 = vadd.f32 0.0, %v2082
        %v2084 = vpop.f32.mrf.mxu0
        %v2085 = vadd.f32 0.0, %v2084
        %2086 = vmatmul.bf16.gmra.mxu0 %v2017
        %v2087 = vpop.f32.mrf.mxu0
        %v2088 = vadd.f32 0.0, %v2087
        %v2089 = vpop.f32.mrf.mxu0
        %v2090 = vadd.f32 0.0, %v2089
        %2091 = vdwg.mxu0
        %v2092 = vsel %vm1030, %v2053, -1e+30
        %v2093 = vsel %vm1031, %v2055, -1e+30
        %v2094 = vsel %vm1032, %v2058, -1e+30
        %v2095 = vsel %vm1033, %v2060, -1e+30
        %v2096 = vsel %vm1034, %v2063, -1e+30
        %v2097 = vsel %vm1035, %v2065, -1e+30
        %v2098 = vsel %vm1036, %v2068, -1e+30
        %v2099 = vsel %vm1037, %v2070, -1e+30
        %v2100 = vsel %vm1038, %v2073, -1e+30
        %v2101 = vsel %vm1039, %v2075, -1e+30
        %v2102 = vsel %vm1040, %v2078, -1e+30
        %v2103 = vsel %vm1041, %v2080, -1e+30
        %v2104 = vsel %vm1042, %v2083, -1e+30
        %v2105 = vsel %vm1043, %v2085, -1e+30
        %v2106 = vsel %vm1044, %v2088, -1e+30
        %v2107 = vsel %vm1045, %v2090, -1e+30
        %2108 = vmax.xlane.f32.xlu0 %v2092
        %v2109 = vpop.xlane.xlu0 %2108
        %2110 = vmax.xlane.f32.xlu0 %v2093
        %v2111 = vpop.xlane.xlu0 %2110
        %2112 = vmax.xlane.f32.xlu0 %v2094
        %v2113 = vpop.xlane.xlu0 %2112
        %2114 = vmax.xlane.f32.xlu0 %v2095
        %v2115 = vpop.xlane.xlu0 %2114
        %2116 = vmax.xlane.f32.xlu0 %v2096
        %v2117 = vpop.xlane.xlu0 %2116
        %2118 = vmax.xlane.f32.xlu0 %v2097
        %v2119 = vpop.xlane.xlu0 %2118
        %2120 = vmax.xlane.f32.xlu0 %v2098
        %v2121 = vpop.xlane.xlu0 %2120
        %2122 = vmax.xlane.f32.xlu0 %v2099
        %v2123 = vpop.xlane.xlu0 %2122
        %2124 = vmax.xlane.f32.xlu0 %v2100
        %v2125 = vpop.xlane.xlu0 %2124
        %2126 = vmax.xlane.f32.xlu0 %v2101
        %v2127 = vpop.xlane.xlu0 %2126
        %2128 = vmax.xlane.f32.xlu0 %v2102
        %v2129 = vpop.xlane.xlu0 %2128
        %2130 = vmax.xlane.f32.xlu0 %v2103
        %v2131 = vpop.xlane.xlu0 %2130
        %2132 = vmax.xlane.f32.xlu0 %v2104
        %v2133 = vpop.xlane.xlu0 %2132
        %2134 = vmax.xlane.f32.xlu0 %v2105
        %v2135 = vpop.xlane.xlu0 %2134
        %2136 = vmax.xlane.f32.xlu0 %v2106
        %v2137 = vpop.xlane.xlu0 %2136
        %2138 = vmax.xlane.f32.xlu0 %v2107
        %v2139 = vpop.xlane.xlu0 %2138
        %v2140 = vsub.f32 %v2092, %v2109
        %v2141 = vsub.f32 %v2093, %v2111
        %v2142 = vsub.f32 %v2094, %v2113
        %v2143 = vsub.f32 %v2095, %v2115
        %v2144 = vsub.f32 %v2096, %v2117
        %v2145 = vsub.f32 %v2097, %v2119
        %v2146 = vsub.f32 %v2098, %v2121
        %v2147 = vsub.f32 %v2099, %v2123
        %v2148 = vsub.f32 %v2100, %v2125
        %v2149 = vsub.f32 %v2101, %v2127
        %v2150 = vsub.f32 %v2102, %v2129
        %v2151 = vsub.f32 %v2103, %v2131
        %v2152 = vsub.f32 %v2104, %v2133
        %v2153 = vsub.f32 %v2105, %v2135
        %v2154 = vsub.f32 %v2106, %v2137
        %v2155 = vsub.f32 %v2107, %v2139
        %v2156 = vmul.f32 %v2140, 1.442695
        %v2157 = vpow.pop %v2156
        %v2158 = vmul.f32 %v2141, 1.442695
        %v2159 = vpow.pop %v2158
        %v2160 = vmul.f32 %v2142, 1.442695
        %v2161 = vpow.pop %v2160
        %v2162 = vmul.f32 %v2143, 1.442695
        %v2163 = vpow.pop %v2162
        %v2164 = vmul.f32 %v2144, 1.442695
        %v2165 = vpow.pop %v2164
        %v2166 = vmul.f32 %v2145, 1.442695
        %v2167 = vpow.pop %v2166
        %v2168 = vmul.f32 %v2146, 1.442695
        %v2169 = vpow.pop %v2168
        %v2170 = vmul.f32 %v2147, 1.442695
        %v2171 = vpow.pop %v2170
        %v2172 = vmul.f32 %v2148, 1.442695
        %v2173 = vpow.pop %v2172
        %v2174 = vmul.f32 %v2149, 1.442695
        %v2175 = vpow.pop %v2174
        %v2176 = vmul.f32 %v2150, 1.442695
        %v2177 = vpow.pop %v2176
        %v2178 = vmul.f32 %v2151, 1.442695
        %v2179 = vpow.pop %v2178
        %v2180 = vmul.f32 %v2152, 1.442695
        %v2181 = vpow.pop %v2180
        %v2182 = vmul.f32 %v2153, 1.442695
        %v2183 = vpow.pop %v2182
        %v2184 = vmul.f32 %v2154, 1.442695
        %v2185 = vpow.pop %v2184
        %v2186 = vmul.f32 %v2155, 1.442695
        %v2187 = vpow.pop %v2186
        %2188 = vadd.xlane.f32.xlu0 %v2157
        %v2189 = vpop.xlane.xlu0 %2188
        %2190 = vadd.xlane.f32.xlu0 %v2159
        %v2191 = vpop.xlane.xlu0 %2190
        %2192 = vadd.xlane.f32.xlu0 %v2161
        %v2193 = vpop.xlane.xlu0 %2192
        %2194 = vadd.xlane.f32.xlu0 %v2163
        %v2195 = vpop.xlane.xlu0 %2194
        %2196 = vadd.xlane.f32.xlu0 %v2165
        %v2197 = vpop.xlane.xlu0 %2196
        %2198 = vadd.xlane.f32.xlu0 %v2167
        %v2199 = vpop.xlane.xlu0 %2198
        %2200 = vadd.xlane.f32.xlu0 %v2169
        %v2201 = vpop.xlane.xlu0 %2200
        %2202 = vadd.xlane.f32.xlu0 %v2171
        %v2203 = vpop.xlane.xlu0 %2202
        %2204 = vadd.xlane.f32.xlu0 %v2173
        %v2205 = vpop.xlane.xlu0 %2204
        %2206 = vadd.xlane.f32.xlu0 %v2175
        %v2207 = vpop.xlane.xlu0 %2206
        %2208 = vadd.xlane.f32.xlu0 %v2177
        %v2209 = vpop.xlane.xlu0 %2208
        %2210 = vadd.xlane.f32.xlu0 %v2179
        %v2211 = vpop.xlane.xlu0 %2210
        %2212 = vadd.xlane.f32.xlu0 %v2181
        %v2213 = vpop.xlane.xlu0 %2212
        %2214 = vadd.xlane.f32.xlu0 %v2183
        %v2215 = vpop.xlane.xlu0 %2214
        %2216 = vadd.xlane.f32.xlu0 %v2185
        %v2217 = vpop.xlane.xlu0 %2216
        %2218 = vadd.xlane.f32.xlu0 %v2187
        %v2219 = vpop.xlane.xlu0 %2218
        %v2220 = vrcp.pop %v2189
        %v2221 = vrcp.pop %v2191
        %v2222 = vrcp.pop %v2193
        %v2223 = vrcp.pop %v2195
        %v2224 = vrcp.pop %v2197
        %v2225 = vrcp.pop %v2199
        %v2226 = vrcp.pop %v2201
        %v2227 = vrcp.pop %v2203
        %v2228 = vrcp.pop %v2205
        %v2229 = vrcp.pop %v2207
        %v2230 = vrcp.pop %v2209
        %v2231 = vrcp.pop %v2211
        %v2232 = vrcp.pop %v2213
        %v2233 = vrcp.pop %v2215
        %v2234 = vrcp.pop %v2217
        %v2235 = vrcp.pop %v2219
        %v2236 = vmul.f32 %v2157, %v2220
        %v2237 = vmul.f32 %v2159, %v2221
        %v2238 = vmul.f32 %v2161, %v2222
        %v2239 = vmul.f32 %v2163, %v2223
        %v2240 = vmul.f32 %v2165, %v2224
        %v2241 = vmul.f32 %v2167, %v2225
        %v2242 = vmul.f32 %v2169, %v2226
        %v2243 = vmul.f32 %v2171, %v2227
        %v2244 = vmul.f32 %v2173, %v2228
        %v2245 = vmul.f32 %v2175, %v2229
        %v2246 = vmul.f32 %v2177, %v2230
        %v2247 = vmul.f32 %v2179, %v2231
        %v2248 = vmul.f32 %v2181, %v2232
        %v2249 = vmul.f32 %v2183, %v2233
        %v2250 = vmul.f32 %v2185, %v2234
        %v2251 = vmul.f32 %v2187, %v2235
        %v2252 = vpack.c.bf16 %v2237, %v2236
        %v2253 = vpack.c.bf16 %v2239, %v2238
        %v2254 = vpack.c.bf16 %v2241, %v2240
        %v2255 = vpack.c.bf16 %v2243, %v2242
        %v2256 = vpack.c.bf16 %v2245, %v2244
        %v2257 = vpack.c.bf16 %v2247, %v2246
        %v2258 = vpack.c.bf16 %v2249, %v2248
        %v2259 = vpack.c.bf16 %v2251, %v2250
        %2260 = vrot.lane.b32.xlu0 %v1246, 64
        %v2261 = vpop.permute.xlu0 %2260
        %2262 = vrot.lane.b32.xlu0 %v1247, 64
        %v2263 = vpop.permute.xlu0 %2262
        %2264 = vrot.lane.b32.xlu0 %v1248, 64
        %v2265 = vpop.permute.xlu0 %2264
        %2266 = vrot.lane.b32.xlu0 %v1249, 64
        %v2267 = vpop.permute.xlu0 %2266
        %2268 = vrot.lane.b32.xlu0 %v1250, 64
        %v2269 = vpop.permute.xlu0 %2268
        %2270 = vrot.lane.b32.xlu0 %v1251, 64
        %v2271 = vpop.permute.xlu0 %2270
        %2272 = vrot.lane.b32.xlu0 %v1252, 64
        %v2273 = vpop.permute.xlu0 %2272
        %2274 = vrot.lane.b32.xlu0 %v1253, 64
        %v2275 = vpop.permute.xlu0 %2274
        %2284 = vmatpush.bf16.msra.mxu0 %v2275
        %2285 = vmatpush.bf16.msra.mxu0 %v2273
        %2286 = vmatpush.bf16.msra.mxu0 %v2271
        %2287 = vmatpush.bf16.msra.mxu0 %v2269
        %2288 = vmatpush.bf16.msra.mxu0 %v2267
        %2289 = vmatpush.bf16.msra.mxu0 %v2265
        %2290 = vmatpush.bf16.msra.mxu0 %v2263
        %2291 = vmatpush.bf16.msra.mxu0 %v2261
        %2292 = vmatmul.bf16.gmra.mxu0 %v2252
        %v2293 = vpop.f32.mrf.mxu0
        %v2294 = vadd.f32 0.0, %v2293
        %v2295 = vpop.f32.mrf.mxu0
        %v2296 = vadd.f32 0.0, %v2295
        %2297 = vmatmul.bf16.gmra.mxu0 %v2253
        %v2298 = vpop.f32.mrf.mxu0
        %v2299 = vadd.f32 0.0, %v2298
        %v2300 = vpop.f32.mrf.mxu0
        %v2301 = vadd.f32 0.0, %v2300
        %2302 = vmatmul.bf16.gmra.mxu0 %v2254
        %v2303 = vpop.f32.mrf.mxu0
        %v2304 = vadd.f32 0.0, %v2303
        %v2305 = vpop.f32.mrf.mxu0
        %v2306 = vadd.f32 0.0, %v2305
        %2307 = vmatmul.bf16.gmra.mxu0 %v2255
        %v2308 = vpop.f32.mrf.mxu0
        %v2309 = vadd.f32 0.0, %v2308
        %v2310 = vpop.f32.mrf.mxu0
        %v2311 = vadd.f32 0.0, %v2310
        %2312 = vmatmul.bf16.gmra.mxu0 %v2256
        %v2313 = vpop.f32.mrf.mxu0
        %v2314 = vadd.f32 0.0, %v2313
        %v2315 = vpop.f32.mrf.mxu0
        %v2316 = vadd.f32 0.0, %v2315
        %2317 = vmatmul.bf16.gmra.mxu0 %v2257
        %v2318 = vpop.f32.mrf.mxu0
        %v2319 = vadd.f32 0.0, %v2318
        %v2320 = vpop.f32.mrf.mxu0
        %v2321 = vadd.f32 0.0, %v2320
        %2322 = vmatmul.bf16.gmra.mxu0 %v2258
        %v2323 = vpop.f32.mrf.mxu0
        %v2324 = vadd.f32 0.0, %v2323
        %v2325 = vpop.f32.mrf.mxu0
        %v2326 = vadd.f32 0.0, %v2325
        %2327 = vmatmul.bf16.gmra.mxu0 %v2259
        %v2328 = vpop.f32.mrf.mxu0
        %v2329 = vadd.f32 0.0, %v2328
        %v2330 = vpop.f32.mrf.mxu0
        %v2331 = vadd.f32 0.0, %v2330
        %2332 = vdwg.mxu0
        %v2333 = vld [vmem:[#allocation2] sm:$0xff]
        %v2334 = vld [vmem:[#allocation2 + $0x8] sm:$0xff]
        %v2335 = vld [vmem:[#allocation2 + $0x10] sm:$0xff]
        %v2336 = vld [vmem:[#allocation2 + $0x18] sm:$0xff]
        %v2337 = vld [vmem:[#allocation2 + $0x20] sm:$0xff]
        %v2338 = vld [vmem:[#allocation2 + $0x28] sm:$0xff]
        %v2339 = vld [vmem:[#allocation2 + $0x30] sm:$0xff]
        %v2340 = vld [vmem:[#allocation2 + $0x38] sm:$0xff]
        %v2341 = vld [vmem:[#allocation2 + $0x40] sm:$0xff]
        %v2342 = vld [vmem:[#allocation2 + $0x48] sm:$0xff]
        %v2343 = vld [vmem:[#allocation2 + $0x50] sm:$0xff]
        %v2344 = vld [vmem:[#allocation2 + $0x58] sm:$0xff]
        %v2345 = vld [vmem:[#allocation2 + $0x60] sm:$0xff]
        %v2346 = vld [vmem:[#allocation2 + $0x68] sm:$0xff]
        %v2347 = vld [vmem:[#allocation2 + $0x70] sm:$0xff]
        %v2348 = vld [vmem:[#allocation2 + $0x78] sm:$0xff]
        %v2349 = vpack.c.bf16 %v2296, %v2294
        %v2350 = vpack.c.bf16 %v2301, %v2299
        %v2351 = vpack.c.bf16 %v2306, %v2304
        %v2352 = vpack.c.bf16 %v2311, %v2309
        %v2353 = vpack.c.bf16 %v2316, %v2314
        %v2354 = vpack.c.bf16 %v2321, %v2319
        %v2355 = vpack.c.bf16 %v2326, %v2324
        %v2356 = vpack.c.bf16 %v2331, %v2329
        %v2361 = vunpack.c.l.b16 %v824
        %v2362 = vunpack.c.l.b16 %v825
        %v2363 = vunpack.c.l.b16 %v826
        %v2364 = vunpack.c.l.b16 %v827
        %v2365 = vpack.c.b16 %v2362, %v2361
        %v2366 = vpack.c.b16 %v2364, %v2363
        %v2370 = vsel %vm932, %v2349, 0
        %v2373 = vsel %vm932, %v2350, 0
        %v2376 = vsel %vm932, %v2351, 0
        %v2379 = vsel %vm932, %v2352, 0
        %v2382 = vsel %vm932, %v2353, 0
        %v2385 = vsel %vm932, %v2354, 0
        %v2388 = vsel %vm932, %v2355, 0
        %v2391 = vsel %vm932, %v2356, 0
        %2393 = vmatpush.bf16.msra.mxu0 0
        %2394 = vmatpush.bf16.msra.mxu0 0
        %2395 = vmatpush.bf16.msra.mxu0 0
        %2396 = vmatpush.bf16.msra.mxu0 0
        %2397 = vmatpush.bf16.msra.mxu0 0
        %2398 = vmatpush.bf16.msra.mxu0 0
        %2399 = vmatpush.bf16.msra.mxu0 %v2366
        %2400 = vmatpush.bf16.msra.mxu0 %v2365
        %2401 = vmatmul.bf16.gmra.mxu0 %v2370
        %v2402 = vpop.f32.mrf.mxu0
        %v2403 = vadd.f32 0.0, %v2402
        %v2404 = vpop.f32.mrf.mxu0
        %v2405 = vadd.f32 0.0, %v2404
        %2406 = vmatmul.bf16.gmra.mxu0 %v2373
        %v2407 = vpop.f32.mrf.mxu0
        %v2408 = vadd.f32 0.0, %v2407
        %v2409 = vpop.f32.mrf.mxu0
        %v2410 = vadd.f32 0.0, %v2409
        %2411 = vmatmul.bf16.gmra.mxu0 %v2376
        %v2412 = vpop.f32.mrf.mxu0
        %v2413 = vadd.f32 0.0, %v2412
        %v2414 = vpop.f32.mrf.mxu0
        %v2415 = vadd.f32 0.0, %v2414
        %2416 = vmatmul.bf16.gmra.mxu0 %v2379
        %v2417 = vpop.f32.mrf.mxu0
        %v2418 = vadd.f32 0.0, %v2417
        %v2419 = vpop.f32.mrf.mxu0
        %v2420 = vadd.f32 0.0, %v2419
        %2421 = vmatmul.bf16.gmra.mxu0 %v2382
        %v2422 = vpop.f32.mrf.mxu0
        %v2423 = vadd.f32 0.0, %v2422
        %v2424 = vpop.f32.mrf.mxu0
        %v2425 = vadd.f32 0.0, %v2424
        %2426 = vmatmul.bf16.gmra.mxu0 %v2385
        %v2427 = vpop.f32.mrf.mxu0
        %v2428 = vadd.f32 0.0, %v2427
        %v2429 = vpop.f32.mrf.mxu0
        %v2430 = vadd.f32 0.0, %v2429
        %2431 = vmatmul.bf16.gmra.mxu0 %v2388
        %v2432 = vpop.f32.mrf.mxu0
        %v2433 = vadd.f32 0.0, %v2432
        %v2434 = vpop.f32.mrf.mxu0
        %v2435 = vadd.f32 0.0, %v2434
        %2436 = vmatmul.bf16.gmra.mxu0 %v2391
        %v2437 = vpop.f32.mrf.mxu0
        %v2438 = vadd.f32 0.0, %v2437
        %v2439 = vpop.f32.mrf.mxu0
        %v2440 = vadd.f32 0.0, %v2439
        %2441 = vdwg.mxu0
        %v2442 = vadd.f32 %v2333, %v2403
        %v2443 = vadd.f32 %v2334, %v2405
        %v2444 = vadd.f32 %v2335, %v2408
        %v2445 = vadd.f32 %v2336, %v2410
        %v2446 = vadd.f32 %v2337, %v2413
        %v2447 = vadd.f32 %v2338, %v2415
        %v2448 = vadd.f32 %v2339, %v2418
        %v2449 = vadd.f32 %v2340, %v2420
        %v2450 = vadd.f32 %v2341, %v2423
        %v2451 = vadd.f32 %v2342, %v2425
        %v2452 = vadd.f32 %v2343, %v2428
        %v2453 = vadd.f32 %v2344, %v2430
        %v2454 = vadd.f32 %v2345, %v2433
        %v2455 = vadd.f32 %v2346, %v2435
        %v2456 = vadd.f32 %v2347, %v2438
        %v2457 = vadd.f32 %v2348, %v2440
        %2458 = vst [vmem:[#allocation2] sm:$0xff] %v2442
        %2459 = vst [vmem:[#allocation2 + $0x8] sm:$0xff] %v2443
        %2460 = vst [vmem:[#allocation2 + $0x10] sm:$0xff] %v2444
        %2461 = vst [vmem:[#allocation2 + $0x18] sm:$0xff] %v2445
        %2462 = vst [vmem:[#allocation2 + $0x20] sm:$0xff] %v2446
        %2463 = vst [vmem:[#allocation2 + $0x28] sm:$0xff] %v2447
        %2464 = vst [vmem:[#allocation2 + $0x30] sm:$0xff] %v2448
        %2465 = vst [vmem:[#allocation2 + $0x38] sm:$0xff] %v2449
        %2466 = vst [vmem:[#allocation2 + $0x40] sm:$0xff] %v2450
        %2467 = vst [vmem:[#allocation2 + $0x48] sm:$0xff] %v2451
        %2468 = vst [vmem:[#allocation2 + $0x50] sm:$0xff] %v2452
        %2469 = vst [vmem:[#allocation2 + $0x58] sm:$0xff] %v2453
        %2470 = vst [vmem:[#allocation2 + $0x60] sm:$0xff] %v2454
        %2471 = vst [vmem:[#allocation2 + $0x68] sm:$0xff] %v2455
        %2472 = vst [vmem:[#allocation2 + $0x70] sm:$0xff] %v2456
        %2473 = vst [vmem:[#allocation2 + $0x78] sm:$0xff] %v2457
        %2474 = vrot.lane.b32.xlu0 %v900, 32
        %v2475 = vpop.permute.xlu0 %2474
        %2476 = vrot.lane.b32.xlu0 %v901, 32
        %v2477 = vpop.permute.xlu0 %2476
        %2478 = vrot.lane.b32.xlu0 %v902, 32
        %v2479 = vpop.permute.xlu0 %2478
        %2480 = vrot.lane.b32.xlu0 %v903, 32
        %v2481 = vpop.permute.xlu0 %2480
        %2482 = vrot.lane.b32.xlu0 %v904, 32
        %v2483 = vpop.permute.xlu0 %2482
        %2484 = vrot.lane.b32.xlu0 %v905, 32
        %v2485 = vpop.permute.xlu0 %2484
        %2486 = vrot.lane.b32.xlu0 %v906, 32
        %v2487 = vpop.permute.xlu0 %2486
        %2488 = vrot.lane.b32.xlu0 %v907, 32
        %v2489 = vpop.permute.xlu0 %2488
        %2490 = vrot.lane.b32.xlu0 %v924, 32
        %v2491 = vpop.permute.xlu0 %2490
        %2492 = vrot.lane.b32.xlu0 %v925, 32
        %v2493 = vpop.permute.xlu0 %2492
        %2494 = vrot.lane.b32.xlu0 %v926, 32
        %v2495 = vpop.permute.xlu0 %2494
        %2496 = vrot.lane.b32.xlu0 %v927, 32
        %v2497 = vpop.permute.xlu0 %2496
        %2498 = vrot.lane.b32.xlu0 %v928, 32
        %v2499 = vpop.permute.xlu0 %2498
        %2500 = vrot.lane.b32.xlu0 %v929, 32
        %v2501 = vpop.permute.xlu0 %2500
        %2502 = vrot.lane.b32.xlu0 %v930, 32
        %v2503 = vpop.permute.xlu0 %2502
        %2504 = vrot.lane.b32.xlu0 %v931, 32
        %v2505 = vpop.permute.xlu0 %2504
        %v2507 = vsel %vm932, %v2475, 0
        %v2510 = vsel %vm932, %v2477, 0
        %v2513 = vsel %vm932, %v2479, 0
        %v2516 = vsel %vm932, %v2481, 0
        %v2519 = vsel %vm932, %v2483, 0
        %v2522 = vsel %vm932, %v2485, 0
        %v2525 = vsel %vm932, %v2487, 0
        %v2528 = vsel %vm932, %v2489, 0
        %v2531 = vsel %vm932, %v2491, 0
        %v2534 = vsel %vm932, %v2493, 0
        %v2537 = vsel %vm932, %v2495, 0
        %v2540 = vsel %vm932, %v2497, 0
        %v2543 = vsel %vm932, %v2499, 0
        %v2546 = vsel %vm932, %v2501, 0
        %v2549 = vsel %vm932, %v2503, 0
        %v2552 = vsel %vm932, %v2505, 0
        %2554 = vmatpush.bf16.xpose.msra.mxu0 %v2552
        %2555 = vmatpush.bf16.xpose.msra.mxu0 %v2549
        %2556 = vmatpush.bf16.xpose.msra.mxu0 %v2546
        %2557 = vmatpush.bf16.xpose.msra.mxu0 %v2543
        %2558 = vmatpush.bf16.xpose.msra.mxu0 %v2540
        %2559 = vmatpush.bf16.xpose.msra.mxu0 %v2537
        %2560 = vmatpush.bf16.xpose.msra.mxu0 %v2534
        %2561 = vmatpush.bf16.xpose.msra.mxu0 %v2531
        %2562 = vmatmul.bf16.gmra.mxu0 %v2507
        %v2563 = vpop.f32.mrf.mxu0
        %v2564 = vadd.f32 0.0, %v2563
        %v2565 = vpop.f32.mrf.mxu0
        %v2566 = vadd.f32 0.0, %v2565
        %2567 = vmatmul.bf16.gmra.mxu0 %v2510
        %v2568 = vpop.f32.mrf.mxu0
        %v2569 = vadd.f32 0.0, %v2568
        %v2570 = vpop.f32.mrf.mxu0
        %v2571 = vadd.f32 0.0, %v2570
        %2572 = vmatmul.bf16.gmra.mxu0 %v2513
        %v2573 = vpop.f32.mrf.mxu0
        %v2574 = vadd.f32 0.0, %v2573
        %v2575 = vpop.f32.mrf.mxu0
        %v2576 = vadd.f32 0.0, %v2575
        %2577 = vmatmul.bf16.gmra.mxu0 %v2516
        %v2578 = vpop.f32.mrf.mxu0
        %v2579 = vadd.f32 0.0, %v2578
        %v2580 = vpop.f32.mrf.mxu0
        %v2581 = vadd.f32 0.0, %v2580
        %2582 = vmatmul.bf16.gmra.mxu0 %v2519
        %v2583 = vpop.f32.mrf.mxu0
        %v2584 = vadd.f32 0.0, %v2583
        %v2585 = vpop.f32.mrf.mxu0
        %v2586 = vadd.f32 0.0, %v2585
        %2587 = vmatmul.bf16.gmra.mxu0 %v2522
        %v2588 = vpop.f32.mrf.mxu0
        %v2589 = vadd.f32 0.0, %v2588
        %v2590 = vpop.f32.mrf.mxu0
        %v2591 = vadd.f32 0.0, %v2590
        %2592 = vmatmul.bf16.gmra.mxu0 %v2525
        %v2593 = vpop.f32.mrf.mxu0
        %v2594 = vadd.f32 0.0, %v2593
        %v2595 = vpop.f32.mrf.mxu0
        %v2596 = vadd.f32 0.0, %v2595
        %2597 = vmatmul.bf16.gmra.mxu0 %v2528
        %v2598 = vpop.f32.mrf.mxu0
        %v2599 = vadd.f32 0.0, %v2598
        %v2600 = vpop.f32.mrf.mxu0
        %v2601 = vadd.f32 0.0, %v2600
        %2602 = vdwg.mxu0
        %v2603 = vsel %vm1030, %v2564, -1e+30
        %v2604 = vsel %vm1031, %v2566, -1e+30
        %v2605 = vsel %vm1032, %v2569, -1e+30
        %v2606 = vsel %vm1033, %v2571, -1e+30
        %v2607 = vsel %vm1034, %v2574, -1e+30
        %v2608 = vsel %vm1035, %v2576, -1e+30
        %v2609 = vsel %vm1036, %v2579, -1e+30
        %v2610 = vsel %vm1037, %v2581, -1e+30
        %v2611 = vsel %vm1038, %v2584, -1e+30
        %v2612 = vsel %vm1039, %v2586, -1e+30
        %v2613 = vsel %vm1040, %v2589, -1e+30
        %v2614 = vsel %vm1041, %v2591, -1e+30
        %v2615 = vsel %vm1042, %v2594, -1e+30
        %v2616 = vsel %vm1043, %v2596, -1e+30
        %v2617 = vsel %vm1044, %v2599, -1e+30
        %v2618 = vsel %vm1045, %v2601, -1e+30
        %2619 = vmax.xlane.f32.xlu0 %v2603
        %v2620 = vpop.xlane.xlu0 %2619
        %2621 = vmax.xlane.f32.xlu0 %v2604
        %v2622 = vpop.xlane.xlu0 %2621
        %2623 = vmax.xlane.f32.xlu0 %v2605
        %v2624 = vpop.xlane.xlu0 %2623
        %2625 = vmax.xlane.f32.xlu0 %v2606
        %v2626 = vpop.xlane.xlu0 %2625
        %2627 = vmax.xlane.f32.xlu0 %v2607
        %v2628 = vpop.xlane.xlu0 %2627
        %2629 = vmax.xlane.f32.xlu0 %v2608
        %v2630 = vpop.xlane.xlu0 %2629
        %2631 = vmax.xlane.f32.xlu0 %v2609
        %v2632 = vpop.xlane.xlu0 %2631
        %2633 = vmax.xlane.f32.xlu0 %v2610
        %v2634 = vpop.xlane.xlu0 %2633
        %2635 = vmax.xlane.f32.xlu0 %v2611
        %v2636 = vpop.xlane.xlu0 %2635
        %2637 = vmax.xlane.f32.xlu0 %v2612
        %v2638 = vpop.xlane.xlu0 %2637
        %2639 = vmax.xlane.f32.xlu0 %v2613
        %v2640 = vpop.xlane.xlu0 %2639
        %2641 = vmax.xlane.f32.xlu0 %v2614
        %v2642 = vpop.xlane.xlu0 %2641
        %2643 = vmax.xlane.f32.xlu0 %v2615
        %v2644 = vpop.xlane.xlu0 %2643
        %2645 = vmax.xlane.f32.xlu0 %v2616
        %v2646 = vpop.xlane.xlu0 %2645
        %2647 = vmax.xlane.f32.xlu0 %v2617
        %v2648 = vpop.xlane.xlu0 %2647
        %2649 = vmax.xlane.f32.xlu0 %v2618
        %v2650 = vpop.xlane.xlu0 %2649
        %v2651 = vsub.f32 %v2603, %v2620
        %v2652 = vsub.f32 %v2604, %v2622
        %v2653 = vsub.f32 %v2605, %v2624
        %v2654 = vsub.f32 %v2606, %v2626
        %v2655 = vsub.f32 %v2607, %v2628
        %v2656 = vsub.f32 %v2608, %v2630
        %v2657 = vsub.f32 %v2609, %v2632
        %v2658 = vsub.f32 %v2610, %v2634
        %v2659 = vsub.f32 %v2611, %v2636
        %v2660 = vsub.f32 %v2612, %v2638
        %v2661 = vsub.f32 %v2613, %v2640
        %v2662 = vsub.f32 %v2614, %v2642
        %v2663 = vsub.f32 %v2615, %v2644
        %v2664 = vsub.f32 %v2616, %v2646
        %v2665 = vsub.f32 %v2617, %v2648
        %v2666 = vsub.f32 %v2618, %v2650
        %v2667 = vmul.f32 %v2651, 1.442695
        %v2668 = vpow.pop %v2667
        %v2669 = vmul.f32 %v2652, 1.442695
        %v2670 = vpow.pop %v2669
        %v2671 = vmul.f32 %v2653, 1.442695
        %v2672 = vpow.pop %v2671
        %v2673 = vmul.f32 %v2654, 1.442695
        %v2674 = vpow.pop %v2673
        %v2675 = vmul.f32 %v2655, 1.442695
        %v2676 = vpow.pop %v2675
        %v2677 = vmul.f32 %v2656, 1.442695
        %v2678 = vpow.pop %v2677
        %v2679 = vmul.f32 %v2657, 1.442695
        %v2680 = vpow.pop %v2679
        %v2681 = vmul.f32 %v2658, 1.442695
        %v2682 = vpow.pop %v2681
        %v2683 = vmul.f32 %v2659, 1.442695
        %v2684 = vpow.pop %v2683
        %v2685 = vmul.f32 %v2660, 1.442695
        %v2686 = vpow.pop %v2685
        %v2687 = vmul.f32 %v2661, 1.442695
        %v2688 = vpow.pop %v2687
        %v2689 = vmul.f32 %v2662, 1.442695
        %v2690 = vpow.pop %v2689
        %v2691 = vmul.f32 %v2663, 1.442695
        %v2692 = vpow.pop %v2691
        %v2693 = vmul.f32 %v2664, 1.442695
        %v2694 = vpow.pop %v2693
        %v2695 = vmul.f32 %v2665, 1.442695
        %v2696 = vpow.pop %v2695
        %v2697 = vmul.f32 %v2666, 1.442695
        %v2698 = vpow.pop %v2697
        %2699 = vadd.xlane.f32.xlu0 %v2668
        %v2700 = vpop.xlane.xlu0 %2699
        %2701 = vadd.xlane.f32.xlu0 %v2670
        %v2702 = vpop.xlane.xlu0 %2701
        %2703 = vadd.xlane.f32.xlu0 %v2672
        %v2704 = vpop.xlane.xlu0 %2703
        %2705 = vadd.xlane.f32.xlu0 %v2674
        %v2706 = vpop.xlane.xlu0 %2705
        %2707 = vadd.xlane.f32.xlu0 %v2676
        %v2708 = vpop.xlane.xlu0 %2707
        %2709 = vadd.xlane.f32.xlu0 %v2678
        %v2710 = vpop.xlane.xlu0 %2709
        %2711 = vadd.xlane.f32.xlu0 %v2680
        %v2712 = vpop.xlane.xlu0 %2711
        %2713 = vadd.xlane.f32.xlu0 %v2682
        %v2714 = vpop.xlane.xlu0 %2713
        %2715 = vadd.xlane.f32.xlu0 %v2684
        %v2716 = vpop.xlane.xlu0 %2715
        %2717 = vadd.xlane.f32.xlu0 %v2686
        %v2718 = vpop.xlane.xlu0 %2717
        %2719 = vadd.xlane.f32.xlu0 %v2688
        %v2720 = vpop.xlane.xlu0 %2719
        %2721 = vadd.xlane.f32.xlu0 %v2690
        %v2722 = vpop.xlane.xlu0 %2721
        %2723 = vadd.xlane.f32.xlu0 %v2692
        %v2724 = vpop.xlane.xlu0 %2723
        %2725 = vadd.xlane.f32.xlu0 %v2694
        %v2726 = vpop.xlane.xlu0 %2725
        %2727 = vadd.xlane.f32.xlu0 %v2696
        %v2728 = vpop.xlane.xlu0 %2727
        %2729 = vadd.xlane.f32.xlu0 %v2698
        %v2730 = vpop.xlane.xlu0 %2729
        %v2731 = vrcp.pop %v2700
        %v2732 = vrcp.pop %v2702
        %v2733 = vrcp.pop %v2704
        %v2734 = vrcp.pop %v2706
        %v2735 = vrcp.pop %v2708
        %v2736 = vrcp.pop %v2710
        %v2737 = vrcp.pop %v2712
        %v2738 = vrcp.pop %v2714
        %v2739 = vrcp.pop %v2716
        %v2740 = vrcp.pop %v2718
        %v2741 = vrcp.pop %v2720
        %v2742 = vrcp.pop %v2722
        %v2743 = vrcp.pop %v2724
        %v2744 = vrcp.pop %v2726
        %v2745 = vrcp.pop %v2728
        %v2746 = vrcp.pop %v2730
        %v2747 = vmul.f32 %v2668, %v2731
        %v2748 = vmul.f32 %v2670, %v2732
        %v2749 = vmul.f32 %v2672, %v2733
        %v2750 = vmul.f32 %v2674, %v2734
        %v2751 = vmul.f32 %v2676, %v2735
        %v2752 = vmul.f32 %v2678, %v2736
        %v2753 = vmul.f32 %v2680, %v2737
        %v2754 = vmul.f32 %v2682, %v2738
        %v2755 = vmul.f32 %v2684, %v2739
        %v2756 = vmul.f32 %v2686, %v2740
        %v2757 = vmul.f32 %v2688, %v2741
        %v2758 = vmul.f32 %v2690, %v2742
        %v2759 = vmul.f32 %v2692, %v2743
        %v2760 = vmul.f32 %v2694, %v2744
        %v2761 = vmul.f32 %v2696, %v2745
        %v2762 = vmul.f32 %v2698, %v2746
        %v2763 = vpack.c.bf16 %v2748, %v2747
        %v2764 = vpack.c.bf16 %v2750, %v2749
        %v2765 = vpack.c.bf16 %v2752, %v2751
        %v2766 = vpack.c.bf16 %v2754, %v2753
        %v2767 = vpack.c.bf16 %v2756, %v2755
        %v2768 = vpack.c.bf16 %v2758, %v2757
        %v2769 = vpack.c.bf16 %v2760, %v2759
        %v2770 = vpack.c.bf16 %v2762, %v2761
        %2771 = vrot.lane.b32.xlu0 %v1246, 32
        %v2772 = vpop.permute.xlu0 %2771
        %2773 = vrot.lane.b32.xlu0 %v1247, 32
        %v2774 = vpop.permute.xlu0 %2773
        %2775 = vrot.lane.b32.xlu0 %v1248, 32
        %v2776 = vpop.permute.xlu0 %2775
        %2777 = vrot.lane.b32.xlu0 %v1249, 32
        %v2778 = vpop.permute.xlu0 %2777
        %2779 = vrot.lane.b32.xlu0 %v1250, 32
        %v2780 = vpop.permute.xlu0 %2779
        %2781 = vrot.lane.b32.xlu0 %v1251, 32
        %v2782 = vpop.permute.xlu0 %2781
        %2783 = vrot.lane.b32.xlu0 %v1252, 32
        %v2784 = vpop.permute.xlu0 %2783
        %2785 = vrot.lane.b32.xlu0 %v1253, 32
        %v2786 = vpop.permute.xlu0 %2785
        %2795 = vmatpush.bf16.msra.mxu0 %v2786
        %2796 = vmatpush.bf16.msra.mxu0 %v2784
        %2797 = vmatpush.bf16.msra.mxu0 %v2782
        %2798 = vmatpush.bf16.msra.mxu0 %v2780
        %2799 = vmatpush.bf16.msra.mxu0 %v2778
        %2800 = vmatpush.bf16.msra.mxu0 %v2776
        %2801 = vmatpush.bf16.msra.mxu0 %v2774
        %2802 = vmatpush.bf16.msra.mxu0 %v2772
        %2803 = vmatmul.bf16.gmra.mxu0 %v2763
        %v2804 = vpop.f32.mrf.mxu0
        %v2805 = vadd.f32 0.0, %v2804
        %v2806 = vpop.f32.mrf.mxu0
        %v2807 = vadd.f32 0.0, %v2806
        %2808 = vmatmul.bf16.gmra.mxu0 %v2764
        %v2809 = vpop.f32.mrf.mxu0
        %v2810 = vadd.f32 0.0, %v2809
        %v2811 = vpop.f32.mrf.mxu0
        %v2812 = vadd.f32 0.0, %v2811
        %2813 = vmatmul.bf16.gmra.mxu0 %v2765
        %v2814 = vpop.f32.mrf.mxu0
        %v2815 = vadd.f32 0.0, %v2814
        %v2816 = vpop.f32.mrf.mxu0
        %v2817 = vadd.f32 0.0, %v2816
        %2818 = vmatmul.bf16.gmra.mxu0 %v2766
        %v2819 = vpop.f32.mrf.mxu0
        %v2820 = vadd.f32 0.0, %v2819
        %v2821 = vpop.f32.mrf.mxu0
        %v2822 = vadd.f32 0.0, %v2821
        %2823 = vmatmul.bf16.gmra.mxu0 %v2767
        %v2824 = vpop.f32.mrf.mxu0
        %v2825 = vadd.f32 0.0, %v2824
        %v2826 = vpop.f32.mrf.mxu0
        %v2827 = vadd.f32 0.0, %v2826
        %2828 = vmatmul.bf16.gmra.mxu0 %v2768
        %v2829 = vpop.f32.mrf.mxu0
        %v2830 = vadd.f32 0.0, %v2829
        %v2831 = vpop.f32.mrf.mxu0
        %v2832 = vadd.f32 0.0, %v2831
        %2833 = vmatmul.bf16.gmra.mxu0 %v2769
        %v2834 = vpop.f32.mrf.mxu0
        %v2835 = vadd.f32 0.0, %v2834
        %v2836 = vpop.f32.mrf.mxu0
        %v2837 = vadd.f32 0.0, %v2836
        %2838 = vmatmul.bf16.gmra.mxu0 %v2770
        %v2839 = vpop.f32.mrf.mxu0
        %v2840 = vadd.f32 0.0, %v2839
        %v2841 = vpop.f32.mrf.mxu0
        %v2842 = vadd.f32 0.0, %v2841
        %2843 = vdwg.mxu0
        %v2844 = vld [vmem:[#allocation2] sm:$0xff]
        %v2845 = vld [vmem:[#allocation2 + $0x8] sm:$0xff]
        %v2846 = vld [vmem:[#allocation2 + $0x10] sm:$0xff]
        %v2847 = vld [vmem:[#allocation2 + $0x18] sm:$0xff]
        %v2848 = vld [vmem:[#allocation2 + $0x20] sm:$0xff]
        %v2849 = vld [vmem:[#allocation2 + $0x28] sm:$0xff]
        %v2850 = vld [vmem:[#allocation2 + $0x30] sm:$0xff]
        %v2851 = vld [vmem:[#allocation2 + $0x38] sm:$0xff]
        %v2852 = vld [vmem:[#allocation2 + $0x40] sm:$0xff]
        %v2853 = vld [vmem:[#allocation2 + $0x48] sm:$0xff]
        %v2854 = vld [vmem:[#allocation2 + $0x50] sm:$0xff]
        %v2855 = vld [vmem:[#allocation2 + $0x58] sm:$0xff]
        %v2856 = vld [vmem:[#allocation2 + $0x60] sm:$0xff]
        %v2857 = vld [vmem:[#allocation2 + $0x68] sm:$0xff]
        %v2858 = vld [vmem:[#allocation2 + $0x70] sm:$0xff]
        %v2859 = vld [vmem:[#allocation2 + $0x78] sm:$0xff]
        %v2860 = vpack.c.bf16 %v2807, %v2805
        %v2861 = vpack.c.bf16 %v2812, %v2810
        %v2862 = vpack.c.bf16 %v2817, %v2815
        %v2863 = vpack.c.bf16 %v2822, %v2820
        %v2864 = vpack.c.bf16 %v2827, %v2825
        %v2865 = vpack.c.bf16 %v2832, %v2830
        %v2866 = vpack.c.bf16 %v2837, %v2835
        %v2867 = vpack.c.bf16 %v2842, %v2840
        %v2872 = vunpack.c.l.b16 %v828
        %v2873 = vunpack.c.l.b16 %v829
        %v2874 = vunpack.c.l.b16 %v830
        %v2875 = vunpack.c.l.b16 %v831
        %v2876 = vpack.c.b16 %v2873, %v2872
        %v2877 = vpack.c.b16 %v2875, %v2874
        %v2881 = vsel %vm932, %v2860, 0
        %v2884 = vsel %vm932, %v2861, 0
        %v2887 = vsel %vm932, %v2862, 0
        %v2890 = vsel %vm932, %v2863, 0
        %v2893 = vsel %vm932, %v2864, 0
        %v2896 = vsel %vm932, %v2865, 0
        %v2899 = vsel %vm932, %v2866, 0
        %v2902 = vsel %vm932, %v2867, 0
        %2904 = vmatpush.bf16.msra.mxu0 0
        %2905 = vmatpush.bf16.msra.mxu0 0
        %2906 = vmatpush.bf16.msra.mxu0 0
        %2907 = vmatpush.bf16.msra.mxu0 0
        %2908 = vmatpush.bf16.msra.mxu0 0
        %2909 = vmatpush.bf16.msra.mxu0 0
        %2910 = vmatpush.bf16.msra.mxu0 %v2877
        %2911 = vmatpush.bf16.msra.mxu0 %v2876
        %2912 = vmatmul.bf16.gmra.mxu0 %v2881
        %v2913 = vpop.f32.mrf.mxu0
        %v2914 = vadd.f32 0.0, %v2913
        %v2915 = vpop.f32.mrf.mxu0
        %v2916 = vadd.f32 0.0, %v2915
        %2917 = vmatmul.bf16.gmra.mxu0 %v2884
        %v2918 = vpop.f32.mrf.mxu0
        %v2919 = vadd.f32 0.0, %v2918
        %v2920 = vpop.f32.mrf.mxu0
        %v2921 = vadd.f32 0.0, %v2920
        %2922 = vmatmul.bf16.gmra.mxu0 %v2887
        %v2923 = vpop.f32.mrf.mxu0
        %v2924 = vadd.f32 0.0, %v2923
        %v2925 = vpop.f32.mrf.mxu0
        %v2926 = vadd.f32 0.0, %v2925
        %2927 = vmatmul.bf16.gmra.mxu0 %v2890
        %v2928 = vpop.f32.mrf.mxu0
        %v2929 = vadd.f32 0.0, %v2928
        %v2930 = vpop.f32.mrf.mxu0
        %v2931 = vadd.f32 0.0, %v2930
        %2932 = vmatmul.bf16.gmra.mxu0 %v2893
        %v2933 = vpop.f32.mrf.mxu0
        %v2934 = vadd.f32 0.0, %v2933
        %v2935 = vpop.f32.mrf.mxu0
        %v2936 = vadd.f32 0.0, %v2935
        %2937 = vmatmul.bf16.gmra.mxu0 %v2896
        %v2938 = vpop.f32.mrf.mxu0
        %v2939 = vadd.f32 0.0, %v2938
        %v2940 = vpop.f32.mrf.mxu0
        %v2941 = vadd.f32 0.0, %v2940
        %2942 = vmatmul.bf16.gmra.mxu0 %v2899
        %v2943 = vpop.f32.mrf.mxu0
        %v2944 = vadd.f32 0.0, %v2943
        %v2945 = vpop.f32.mrf.mxu0
        %v2946 = vadd.f32 0.0, %v2945
        %2947 = vmatmul.bf16.gmra.mxu0 %v2902
        %v2948 = vpop.f32.mrf.mxu0
        %v2949 = vadd.f32 0.0, %v2948
        %v2950 = vpop.f32.mrf.mxu0
        %v2951 = vadd.f32 0.0, %v2950
        %2952 = vdwg.mxu0
        %v2953 = vadd.f32 %v2844, %v2914
        %v2954 = vadd.f32 %v2845, %v2916
        %v2955 = vadd.f32 %v2846, %v2919
        %v2956 = vadd.f32 %v2847, %v2921
        %v2957 = vadd.f32 %v2848, %v2924
        %v2958 = vadd.f32 %v2849, %v2926
        %v2959 = vadd.f32 %v2850, %v2929
        %v2960 = vadd.f32 %v2851, %v2931
        %v2961 = vadd.f32 %v2852, %v2934
        %v2962 = vadd.f32 %v2853, %v2936
        %v2963 = vadd.f32 %v2854, %v2939
        %v2964 = vadd.f32 %v2855, %v2941
        %v2965 = vadd.f32 %v2856, %v2944
        %v2966 = vadd.f32 %v2857, %v2946
        %v2967 = vadd.f32 %v2858, %v2949
        %v2968 = vadd.f32 %v2859, %v2951
        %2969 = vst [vmem:[#allocation2] sm:$0xff] %v2953
        %2970 = vst [vmem:[#allocation2 + $0x8] sm:$0xff] %v2954
        %2971 = vst [vmem:[#allocation2 + $0x10] sm:$0xff] %v2955
        %2972 = vst [vmem:[#allocation2 + $0x18] sm:$0xff] %v2956
        %2973 = vst [vmem:[#allocation2 + $0x20] sm:$0xff] %v2957
        %2974 = vst [vmem:[#allocation2 + $0x28] sm:$0xff] %v2958
        %2975 = vst [vmem:[#allocation2 + $0x30] sm:$0xff] %v2959
        %2976 = vst [vmem:[#allocation2 + $0x38] sm:$0xff] %v2960
        %2977 = vst [vmem:[#allocation2 + $0x40] sm:$0xff] %v2961
        %2978 = vst [vmem:[#allocation2 + $0x48] sm:$0xff] %v2962
        %2979 = vst [vmem:[#allocation2 + $0x50] sm:$0xff] %v2963
        %2980 = vst [vmem:[#allocation2 + $0x58] sm:$0xff] %v2964
        %2981 = vst [vmem:[#allocation2 + $0x60] sm:$0xff] %v2965
        %2982 = vst [vmem:[#allocation2 + $0x68] sm:$0xff] %v2966
        %2983 = vst [vmem:[#allocation2 + $0x70] sm:$0xff] %v2967
        %2984 = vst [vmem:[#allocation2 + $0x78] sm:$0xff] %v2968
        %v2985 = vld [vmem:[#allocation2] sm:$0xff]
        %v2986 = vld [vmem:[#allocation2 + $0x8] sm:$0xff]
        %v2987 = vld [vmem:[#allocation2 + $0x10] sm:$0xff]
        %v2988 = vld [vmem:[#allocation2 + $0x18] sm:$0xff]
        %v2989 = vld [vmem:[#allocation2 + $0x20] sm:$0xff]
        %v2990 = vld [vmem:[#allocation2 + $0x28] sm:$0xff]
        %v2991 = vld [vmem:[#allocation2 + $0x30] sm:$0xff]
        %v2992 = vld [vmem:[#allocation2 + $0x38] sm:$0xff]
        %v2993 = vld [vmem:[#allocation2 + $0x40] sm:$0xff]
        %v2994 = vld [vmem:[#allocation2 + $0x48] sm:$0xff]
        %v2995 = vld [vmem:[#allocation2 + $0x50] sm:$0xff]
        %v2996 = vld [vmem:[#allocation2 + $0x58] sm:$0xff]
        %v2997 = vld [vmem:[#allocation2 + $0x60] sm:$0xff]
        %v2998 = vld [vmem:[#allocation2 + $0x68] sm:$0xff]
        %v2999 = vld [vmem:[#allocation2 + $0x70] sm:$0xff]
        %v3000 = vld [vmem:[#allocation2 + $0x78] sm:$0xff]
        %v3002 = vperm.slane %v832, 0
        %v3004 = vadd.f32 %v2985, %v3002
        %v3005 = vadd.f32 %v2986, %v3002
        %v3006 = vadd.f32 %v2987, %v3002
        %v3007 = vadd.f32 %v2988, %v3002
        %v3008 = vadd.f32 %v2989, %v3002
        %v3009 = vadd.f32 %v2990, %v3002
        %v3010 = vadd.f32 %v2991, %v3002
        %v3011 = vadd.f32 %v2992, %v3002
        %v3012 = vadd.f32 %v2993, %v3002
        %v3013 = vadd.f32 %v2994, %v3002
        %v3014 = vadd.f32 %v2995, %v3002
        %v3015 = vadd.f32 %v2996, %v3002
        %v3016 = vadd.f32 %v2997, %v3002
        %v3017 = vadd.f32 %v2998, %v3002
        %v3018 = vadd.f32 %v2999, %v3002
        %v3019 = vadd.f32 %v3000, %v3002
        %3020 = vst [vmem:[%s190] sm:$0xff] %v3004
        %3021 = vst [vmem:[%s190 + $0x8] sm:$0xff] %v3005
        %3022 = vst [vmem:[%s190 + $0x10] sm:$0xff] %v3006
        %3023 = vst [vmem:[%s190 + $0x18] sm:$0xff] %v3007
        %3024 = vst [vmem:[%s190 + $0x20] sm:$0xff] %v3008
        %3025 = vst [vmem:[%s190 + $0x28] sm:$0xff] %v3009
        %3026 = vst [vmem:[%s190 + $0x30] sm:$0xff] %v3010
        %3027 = vst [vmem:[%s190 + $0x38] sm:$0xff] %v3011
        %3028 = vst [vmem:[%s190 + $0x40] sm:$0xff] %v3012
        %3029 = vst [vmem:[%s190 + $0x48] sm:$0xff] %v3013
        %3030 = vst [vmem:[%s190 + $0x50] sm:$0xff] %v3014
        %3031 = vst [vmem:[%s190 + $0x58] sm:$0xff] %v3015
        %3032 = vst [vmem:[%s190 + $0x60] sm:$0xff] %v3016
        %3033 = vst [vmem:[%s190 + $0x68] sm:$0xff] %v3017
        %3034 = vst [vmem:[%s190 + $0x70] sm:$0xff] %v3018
        %3035 = vst [vmem:[%s190 + $0x78] sm:$0xff] %v3019
        %v3036 = vadd.s32 %v834, 128
        %v3037 = vadd.s32 %v835, 128
        %v3038 = vadd.s32 %v836, 128
        %v3039 = vadd.s32 %v837, 128
        %v3040 = vadd.s32 %v838, 128
        %v3041 = vadd.s32 %v839, 128
        %v3042 = vadd.s32 %v840, 128
        %v3043 = vadd.s32 %v841, 128
        %v3044 = vadd.s32 %v842, 128
        %v3045 = vadd.s32 %v843, 128
        %v3046 = vadd.s32 %v844, 128
        %v3047 = vadd.s32 %v845, 128
        %v3048 = vadd.s32 %v846, 128
        %v3049 = vadd.s32 %v847, 128
        %v3050 = vadd.s32 %v848, 128
        %v3051 = vadd.s32 %v849, 128
        %v3052 = vadd.s32 %v851, 128
        %3053 = vst [vmem:[#allocation2] sm:$0xff] 0.0
        %3054 = vst [vmem:[#allocation2 + $0x8] sm:$0xff] 0.0
        %3055 = vst [vmem:[#allocation2 + $0x10] sm:$0xff] 0.0
        %3056 = vst [vmem:[#allocation2 + $0x18] sm:$0xff] 0.0
        %3057 = vst [vmem:[#allocation2 + $0x20] sm:$0xff] 0.0
        %3058 = vst [vmem:[#allocation2 + $0x28] sm:$0xff] 0.0
        %3059 = vst [vmem:[#allocation2 + $0x30] sm:$0xff] 0.0
        %3060 = vst [vmem:[#allocation2 + $0x38] sm:$0xff] 0.0
        %3061 = vst [vmem:[#allocation2 + $0x40] sm:$0xff] 0.0
        %3062 = vst [vmem:[#allocation2 + $0x48] sm:$0xff] 0.0
        %3063 = vst [vmem:[#allocation2 + $0x50] sm:$0xff] 0.0
        %3064 = vst [vmem:[#allocation2 + $0x58] sm:$0xff] 0.0
        %3065 = vst [vmem:[#allocation2 + $0x60] sm:$0xff] 0.0
        %3066 = vst [vmem:[#allocation2 + $0x68] sm:$0xff] 0.0
        %3067 = vst [vmem:[#allocation2 + $0x70] sm:$0xff] 0.0
        %3068 = vst [vmem:[#allocation2 + $0x78] sm:$0xff] 0.0
        %v3085 = vunpack.c.l.b16 %v784
        %v3086 = vunpack.c.l.b16 %v786
        %v3087 = vunpack.c.l.b16 %v788
        %v3088 = vunpack.c.l.b16 %v790
        %v3089 = vunpack.c.l.b16 %v792
        %v3090 = vunpack.c.l.b16 %v794
        %v3091 = vunpack.c.l.b16 %v796
        %v3092 = vunpack.c.l.b16 %v798
        %v3093 = vunpack.c.l.b16 %v800
        %v3094 = vunpack.c.l.b16 %v802
        %v3095 = vunpack.c.l.b16 %v804
        %v3096 = vunpack.c.l.b16 %v806
        %v3097 = vunpack.c.l.b16 %v808
        %v3098 = vunpack.c.l.b16 %v810
        %v3099 = vunpack.c.l.b16 %v812
        %v3100 = vunpack.c.l.b16 %v814
        %v3101 = vpack.c.b16 %v3086, %v3085
        %v3102 = vpack.c.b16 %v3088, %v3087
        %v3103 = vpack.c.b16 %v3090, %v3089
        %v3104 = vpack.c.b16 %v3092, %v3091
        %v3105 = vpack.c.b16 %v3094, %v3093
        %v3106 = vpack.c.b16 %v3096, %v3095
        %v3107 = vpack.c.b16 %v3098, %v3097
        %v3108 = vpack.c.b16 %v3100, %v3099
        %v3109 = vunpack.c.h.b16 %v784
        %v3110 = vunpack.c.h.b16 %v786
        %v3111 = vunpack.c.h.b16 %v788
        %v3112 = vunpack.c.h.b16 %v790
        %v3113 = vunpack.c.h.b16 %v792
        %v3114 = vunpack.c.h.b16 %v794
        %v3115 = vunpack.c.h.b16 %v796
        %v3116 = vunpack.c.h.b16 %v798
        %v3117 = vunpack.c.h.b16 %v800
        %v3118 = vunpack.c.h.b16 %v802
        %v3119 = vunpack.c.h.b16 %v804
        %v3120 = vunpack.c.h.b16 %v806
        %v3121 = vunpack.c.h.b16 %v808
        %v3122 = vunpack.c.h.b16 %v810
        %v3123 = vunpack.c.h.b16 %v812
        %v3124 = vunpack.c.h.b16 %v814
        %v3125 = vpack.c.b16 %v3110, %v3109
        %v3126 = vpack.c.b16 %v3112, %v3111
        %v3127 = vpack.c.b16 %v3114, %v3113
        %v3128 = vpack.c.b16 %v3116, %v3115
        %v3129 = vpack.c.b16 %v3118, %v3117
        %v3130 = vpack.c.b16 %v3120, %v3119
        %v3131 = vpack.c.b16 %v3122, %v3121
        %v3132 = vpack.c.b16 %v3124, %v3123
        %v3134 = vsel %vm932, %v3101, 0
        %v3137 = vsel %vm932, %v3102, 0
        %v3140 = vsel %vm932, %v3103, 0
        %v3143 = vsel %vm932, %v3104, 0
        %v3146 = vsel %vm932, %v3105, 0
        %v3149 = vsel %vm932, %v3106, 0
        %v3152 = vsel %vm932, %v3107, 0
        %v3155 = vsel %vm932, %v3108, 0
        %v3158 = vsel %vm932, %v3125, 0
        %v3161 = vsel %vm932, %v3126, 0
        %v3164 = vsel %vm932, %v3127, 0
        %v3167 = vsel %vm932, %v3128, 0
        %v3170 = vsel %vm932, %v3129, 0
        %v3173 = vsel %vm932, %v3130, 0
        %v3176 = vsel %vm932, %v3131, 0
        %v3179 = vsel %vm932, %v3132, 0
        %3181 = vmatpush.bf16.xpose.msra.mxu0 %v979
        %3182 = vmatpush.bf16.xpose.msra.mxu0 %v976
        %3183 = vmatpush.bf16.xpose.msra.mxu0 %v973
        %3184 = vmatpush.bf16.xpose.msra.mxu0 %v970
        %3185 = vmatpush.bf16.xpose.msra.mxu0 %v967
        %3186 = vmatpush.bf16.xpose.msra.mxu0 %v964
        %3187 = vmatpush.bf16.xpose.msra.mxu0 %v961
        %3188 = vmatpush.bf16.xpose.msra.mxu0 %v958
        %3189 = vmatmul.bf16.gmra.mxu0 %v3134
        %v3190 = vpop.f32.mrf.mxu0
        %v3191 = vadd.f32 0.0, %v3190
        %v3192 = vpop.f32.mrf.mxu0
        %v3193 = vadd.f32 0.0, %v3192
        %3194 = vmatmul.bf16.gmra.mxu0 %v3137
        %v3195 = vpop.f32.mrf.mxu0
        %v3196 = vadd.f32 0.0, %v3195
        %v3197 = vpop.f32.mrf.mxu0
        %v3198 = vadd.f32 0.0, %v3197
        %3199 = vmatmul.bf16.gmra.mxu0 %v3140
        %v3200 = vpop.f32.mrf.mxu0
        %v3201 = vadd.f32 0.0, %v3200
        %v3202 = vpop.f32.mrf.mxu0
        %v3203 = vadd.f32 0.0, %v3202
        %3204 = vmatmul.bf16.gmra.mxu0 %v3143
        %v3205 = vpop.f32.mrf.mxu0
        %v3206 = vadd.f32 0.0, %v3205
        %v3207 = vpop.f32.mrf.mxu0
        %v3208 = vadd.f32 0.0, %v3207
        %3209 = vmatmul.bf16.gmra.mxu0 %v3146
        %v3210 = vpop.f32.mrf.mxu0
        %v3211 = vadd.f32 0.0, %v3210
        %v3212 = vpop.f32.mrf.mxu0
        %v3213 = vadd.f32 0.0, %v3212
        %3214 = vmatmul.bf16.gmra.mxu0 %v3149
        %v3215 = vpop.f32.mrf.mxu0
        %v3216 = vadd.f32 0.0, %v3215
        %v3217 = vpop.f32.mrf.mxu0
        %v3218 = vadd.f32 0.0, %v3217
        %3219 = vmatmul.bf16.gmra.mxu0 %v3152
        %v3220 = vpop.f32.mrf.mxu0
        %v3221 = vadd.f32 0.0, %v3220
        %v3222 = vpop.f32.mrf.mxu0
        %v3223 = vadd.f32 0.0, %v3222
        %3224 = vmatmul.bf16.gmra.mxu0 %v3155
        %v3225 = vpop.f32.mrf.mxu0
        %v3226 = vadd.f32 0.0, %v3225
        %v3227 = vpop.f32.mrf.mxu0
        %v3228 = vadd.f32 0.0, %v3227
        %3229 = vdwg.mxu0
        %3230 = vmatpush.bf16.xpose.msra.mxu0 %v3179
        %3231 = vmatpush.bf16.xpose.msra.mxu0 %v3176
        %3232 = vmatpush.bf16.xpose.msra.mxu0 %v3173
        %3233 = vmatpush.bf16.xpose.msra.mxu0 %v3170
        %3234 = vmatpush.bf16.xpose.msra.mxu0 %v3167
        %3235 = vmatpush.bf16.xpose.msra.mxu0 %v3164
        %3236 = vmatpush.bf16.xpose.msra.mxu0 %v3161
        %3237 = vmatpush.bf16.xpose.msra.mxu0 %v3158
        %3238 = vmatmul.bf16.gmra.mxu0 %v3134
        %v3239 = vpop.f32.mrf.mxu0
        %v3240 = vadd.f32 0.0, %v3239
        %v3241 = vpop.f32.mrf.mxu0
        %v3242 = vadd.f32 0.0, %v3241
        %3243 = vmatmul.bf16.gmra.mxu0 %v3137
        %v3244 = vpop.f32.mrf.mxu0
        %v3245 = vadd.f32 0.0, %v3244
        %v3246 = vpop.f32.mrf.mxu0
        %v3247 = vadd.f32 0.0, %v3246
        %3248 = vmatmul.bf16.gmra.mxu0 %v3140
        %v3249 = vpop.f32.mrf.mxu0
        %v3250 = vadd.f32 0.0, %v3249
        %v3251 = vpop.f32.mrf.mxu0
        %v3252 = vadd.f32 0.0, %v3251
        %3253 = vmatmul.bf16.gmra.mxu0 %v3143
        %v3254 = vpop.f32.mrf.mxu0
        %v3255 = vadd.f32 0.0, %v3254
        %v3256 = vpop.f32.mrf.mxu0
        %v3257 = vadd.f32 0.0, %v3256
        %3258 = vmatmul.bf16.gmra.mxu0 %v3146
        %v3259 = vpop.f32.mrf.mxu0
        %v3260 = vadd.f32 0.0, %v3259
        %v3261 = vpop.f32.mrf.mxu0
        %v3262 = vadd.f32 0.0, %v3261
        %3263 = vmatmul.bf16.gmra.mxu0 %v3149
        %v3264 = vpop.f32.mrf.mxu0
        %v3265 = vadd.f32 0.0, %v3264
        %v3266 = vpop.f32.mrf.mxu0
        %v3267 = vadd.f32 0.0, %v3266
        %3268 = vmatmul.bf16.gmra.mxu0 %v3152
        %v3269 = vpop.f32.mrf.mxu0
        %v3270 = vadd.f32 0.0, %v3269
        %v3271 = vpop.f32.mrf.mxu0
        %v3272 = vadd.f32 0.0, %v3271
        %3273 = vmatmul.bf16.gmra.mxu0 %v3155
        %v3274 = vpop.f32.mrf.mxu0
        %v3275 = vadd.f32 0.0, %v3274
        %v3276 = vpop.f32.mrf.mxu0
        %v3277 = vadd.f32 0.0, %v3276
        %3278 = vdwg.mxu0
        %vm3279 = vcmp.le.s32.totalorder %v851, %v3036
        %vm3280 = vcmp.le.s32.totalorder %v3052, %v3036
        %vm3281 = vcmp.le.s32.totalorder %v851, %v3037
        %vm3282 = vcmp.le.s32.totalorder %v3052, %v3037
        %vm3283 = vcmp.le.s32.totalorder %v851, %v3038
        %vm3284 = vcmp.le.s32.totalorder %v3052, %v3038
        %vm3285 = vcmp.le.s32.totalorder %v851, %v3039
        %vm3286 = vcmp.le.s32.totalorder %v3052, %v3039
        %vm3287 = vcmp.le.s32.totalorder %v851, %v3040
        %vm3288 = vcmp.le.s32.totalorder %v3052, %v3040
        %vm3289 = vcmp.le.s32.totalorder %v851, %v3041
        %vm3290 = vcmp.le.s32.totalorder %v3052, %v3041
        %vm3291 = vcmp.le.s32.totalorder %v851, %v3042
        %vm3292 = vcmp.le.s32.totalorder %v3052, %v3042
        %vm3293 = vcmp.le.s32.totalorder %v851, %v3043
        %vm3294 = vcmp.le.s32.totalorder %v3052, %v3043
        %vm3295 = vcmp.le.s32.totalorder %v851, %v3044
        %vm3296 = vcmp.le.s32.totalorder %v3052, %v3044
        %vm3297 = vcmp.le.s32.totalorder %v851, %v3045
        %vm3298 = vcmp.le.s32.totalorder %v3052, %v3045
        %vm3299 = vcmp.le.s32.totalorder %v851, %v3046
        %vm3300 = vcmp.le.s32.totalorder %v3052, %v3046
        %vm3301 = vcmp.le.s32.totalorder %v851, %v3047
        %vm3302 = vcmp.le.s32.totalorder %v3052, %v3047
        %vm3303 = vcmp.le.s32.totalorder %v851, %v3048
        %vm3304 = vcmp.le.s32.totalorder %v3052, %v3048
        %vm3305 = vcmp.le.s32.totalorder %v851, %v3049
        %vm3306 = vcmp.le.s32.totalorder %v3052, %v3049
        %vm3307 = vcmp.le.s32.totalorder %v851, %v3050
        %vm3308 = vcmp.le.s32.totalorder %v3052, %v3050
        %vm3309 = vcmp.le.s32.totalorder %v851, %v3051
        %vm3310 = vcmp.le.s32.totalorder %v3052, %v3051
        %v3311 = vsel %vm3279, %v3191, -1e+30
        %v3312 = vsel %vm3280, %v3240, -1e+30
        %v3313 = vsel %vm3281, %v3193, -1e+30
        %v3314 = vsel %vm3282, %v3242, -1e+30
        %v3315 = vsel %vm3283, %v3196, -1e+30
        %v3316 = vsel %vm3284, %v3245, -1e+30
        %v3317 = vsel %vm3285, %v3198, -1e+30
        %v3318 = vsel %vm3286, %v3247, -1e+30
        %v3319 = vsel %vm3287, %v3201, -1e+30
        %v3320 = vsel %vm3288, %v3250, -1e+30
        %v3321 = vsel %vm3289, %v3203, -1e+30
        %v3322 = vsel %vm3290, %v3252, -1e+30
        %v3323 = vsel %vm3291, %v3206, -1e+30
        %v3324 = vsel %vm3292, %v3255, -1e+30
        %v3325 = vsel %vm3293, %v3208, -1e+30
        %v3326 = vsel %vm3294, %v3257, -1e+30
        %v3327 = vsel %vm3295, %v3211, -1e+30
        %v3328 = vsel %vm3296, %v3260, -1e+30
        %v3329 = vsel %vm3297, %v3213, -1e+30
        %v3330 = vsel %vm3298, %v3262, -1e+30
        %v3331 = vsel %vm3299, %v3216, -1e+30
        %v3332 = vsel %vm3300, %v3265, -1e+30
        %v3333 = vsel %vm3301, %v3218, -1e+30
        %v3334 = vsel %vm3302, %v3267, -1e+30
        %v3335 = vsel %vm3303, %v3221, -1e+30
        %v3336 = vsel %vm3304, %v3270, -1e+30
        %v3337 = vsel %vm3305, %v3223, -1e+30
        %v3338 = vsel %vm3306, %v3272, -1e+30
        %v3339 = vsel %vm3307, %v3226, -1e+30
        %v3340 = vsel %vm3308, %v3275, -1e+30
        %v3341 = vsel %vm3309, %v3228, -1e+30
        %v3342 = vsel %vm3310, %v3277, -1e+30
        %v3343 = vmax.f32 %v3311, %v3312
        %3344 = vmax.xlane.f32.xlu0 %v3343
        %v3345 = vpop.xlane.xlu0 %3344
        %v3346 = vmax.f32 %v3313, %v3314
        %3347 = vmax.xlane.f32.xlu0 %v3346
        %v3348 = vpop.xlane.xlu0 %3347
        %v3349 = vmax.f32 %v3315, %v3316
        %3350 = vmax.xlane.f32.xlu0 %v3349
        %v3351 = vpop.xlane.xlu0 %3350
        %v3352 = vmax.f32 %v3317, %v3318
        %3353 = vmax.xlane.f32.xlu0 %v3352
        %v3354 = vpop.xlane.xlu0 %3353
        %v3355 = vmax.f32 %v3319, %v3320
        %3356 = vmax.xlane.f32.xlu0 %v3355
        %v3357 = vpop.xlane.xlu0 %3356
        %v3358 = vmax.f32 %v3321, %v3322
        %3359 = vmax.xlane.f32.xlu0 %v3358
        %v3360 = vpop.xlane.xlu0 %3359
        %v3361 = vmax.f32 %v3323, %v3324
        %3362 = vmax.xlane.f32.xlu0 %v3361
        %v3363 = vpop.xlane.xlu0 %3362
        %v3364 = vmax.f32 %v3325, %v3326
        %3365 = vmax.xlane.f32.xlu0 %v3364
        %v3366 = vpop.xlane.xlu0 %3365
        %v3367 = vmax.f32 %v3327, %v3328
        %3368 = vmax.xlane.f32.xlu0 %v3367
        %v3369 = vpop.xlane.xlu0 %3368
        %v3370 = vmax.f32 %v3329, %v3330
        %3371 = vmax.xlane.f32.xlu0 %v3370
        %v3372 = vpop.xlane.xlu0 %3371
        %v3373 = vmax.f32 %v3331, %v3332
        %3374 = vmax.xlane.f32.xlu0 %v3373
        %v3375 = vpop.xlane.xlu0 %3374
        %v3376 = vmax.f32 %v3333, %v3334
        %3377 = vmax.xlane.f32.xlu0 %v3376
        %v3378 = vpop.xlane.xlu0 %3377
        %v3379 = vmax.f32 %v3335, %v3336
        %3380 = vmax.xlane.f32.xlu0 %v3379
        %v3381 = vpop.xlane.xlu0 %3380
        %v3382 = vmax.f32 %v3337, %v3338
        %3383 = vmax.xlane.f32.xlu0 %v3382
        %v3384 = vpop.xlane.xlu0 %3383
        %v3385 = vmax.f32 %v3339, %v3340
        %3386 = vmax.xlane.f32.xlu0 %v3385
        %v3387 = vpop.xlane.xlu0 %3386
        %v3388 = vmax.f32 %v3341, %v3342
        %3389 = vmax.xlane.f32.xlu0 %v3388
        %v3390 = vpop.xlane.xlu0 %3389
        %v3391 = vsub.f32 %v3311, %v3345
        %v3392 = vsub.f32 %v3312, %v3345
        %v3393 = vsub.f32 %v3313, %v3348
        %v3394 = vsub.f32 %v3314, %v3348
        %v3395 = vsub.f32 %v3315, %v3351
        %v3396 = vsub.f32 %v3316, %v3351
        %v3397 = vsub.f32 %v3317, %v3354
        %v3398 = vsub.f32 %v3318, %v3354
        %v3399 = vsub.f32 %v3319, %v3357
        %v3400 = vsub.f32 %v3320, %v3357
        %v3401 = vsub.f32 %v3321, %v3360
        %v3402 = vsub.f32 %v3322, %v3360
        %v3403 = vsub.f32 %v3323, %v3363
        %v3404 = vsub.f32 %v3324, %v3363
        %v3405 = vsub.f32 %v3325, %v3366
        %v3406 = vsub.f32 %v3326, %v3366
        %v3407 = vsub.f32 %v3327, %v3369
        %v3408 = vsub.f32 %v3328, %v3369
        %v3409 = vsub.f32 %v3329, %v3372
        %v3410 = vsub.f32 %v3330, %v3372
        %v3411 = vsub.f32 %v3331, %v3375
        %v3412 = vsub.f32 %v3332, %v3375
        %v3413 = vsub.f32 %v3333, %v3378
        %v3414 = vsub.f32 %v3334, %v3378
        %v3415 = vsub.f32 %v3335, %v3381
        %v3416 = vsub.f32 %v3336, %v3381
        %v3417 = vsub.f32 %v3337, %v3384
        %v3418 = vsub.f32 %v3338, %v3384
        %v3419 = vsub.f32 %v3339, %v3387
        %v3420 = vsub.f32 %v3340, %v3387
        %v3421 = vsub.f32 %v3341, %v3390
        %v3422 = vsub.f32 %v3342, %v3390
        %v3423 = vmul.f32 %v3391, 1.442695
        %v3424 = vpow.pop %v3423
        %v3425 = vmul.f32 %v3392, 1.442695
        %v3426 = vpow.pop %v3425
        %v3427 = vmul.f32 %v3393, 1.442695
        %v3428 = vpow.pop %v3427
        %v3429 = vmul.f32 %v3394, 1.442695
        %v3430 = vpow.pop %v3429
        %v3431 = vmul.f32 %v3395, 1.442695
        %v3432 = vpow.pop %v3431
        %v3433 = vmul.f32 %v3396, 1.442695
        %v3434 = vpow.pop %v3433
        %v3435 = vmul.f32 %v3397, 1.442695
        %v3436 = vpow.pop %v3435
        %v3437 = vmul.f32 %v3398, 1.442695
        %v3438 = vpow.pop %v3437
        %v3439 = vmul.f32 %v3399, 1.442695
        %v3440 = vpow.pop %v3439
        %v3441 = vmul.f32 %v3400, 1.442695
        %v3442 = vpow.pop %v3441
        %v3443 = vmul.f32 %v3401, 1.442695
        %v3444 = vpow.pop %v3443
        %v3445 = vmul.f32 %v3402, 1.442695
        %v3446 = vpow.pop %v3445
        %v3447 = vmul.f32 %v3403, 1.442695
        %v3448 = vpow.pop %v3447
        %v3449 = vmul.f32 %v3404, 1.442695
        %v3450 = vpow.pop %v3449
        %v3451 = vmul.f32 %v3405, 1.442695
        %v3452 = vpow.pop %v3451
        %v3453 = vmul.f32 %v3406, 1.442695
        %v3454 = vpow.pop %v3453
        %v3455 = vmul.f32 %v3407, 1.442695
        %v3456 = vpow.pop %v3455
        %v3457 = vmul.f32 %v3408, 1.442695
        %v3458 = vpow.pop %v3457
        %v3459 = vmul.f32 %v3409, 1.442695
        %v3460 = vpow.pop %v3459
        %v3461 = vmul.f32 %v3410, 1.442695
        %v3462 = vpow.pop %v3461
        %v3463 = vmul.f32 %v3411, 1.442695
        %v3464 = vpow.pop %v3463
        %v3465 = vmul.f32 %v3412, 1.442695
        %v3466 = vpow.pop %v3465
        %v3467 = vmul.f32 %v3413, 1.442695
        %v3468 = vpow.pop %v3467
        %v3469 = vmul.f32 %v3414, 1.442695
        %v3470 = vpow.pop %v3469
        %v3471 = vmul.f32 %v3415, 1.442695
        %v3472 = vpow.pop %v3471
        %v3473 = vmul.f32 %v3416, 1.442695
        %v3474 = vpow.pop %v3473
        %v3475 = vmul.f32 %v3417, 1.442695
        %v3476 = vpow.pop %v3475
        %v3477 = vmul.f32 %v3418, 1.442695
        %v3478 = vpow.pop %v3477
        %v3479 = vmul.f32 %v3419, 1.442695
        %v3480 = vpow.pop %v3479
        %v3481 = vmul.f32 %v3420, 1.442695
        %v3482 = vpow.pop %v3481
        %v3483 = vmul.f32 %v3421, 1.442695
        %v3484 = vpow.pop %v3483
        %v3485 = vmul.f32 %v3422, 1.442695
        %v3486 = vpow.pop %v3485
        %v3487 = vadd.f32 %v3424, %v3426
        %3488 = vadd.xlane.f32.xlu0 %v3487
        %v3489 = vpop.xlane.xlu0 %3488
        %v3490 = vadd.f32 %v3428, %v3430
        %3491 = vadd.xlane.f32.xlu0 %v3490
        %v3492 = vpop.xlane.xlu0 %3491
        %v3493 = vadd.f32 %v3432, %v3434
        %3494 = vadd.xlane.f32.xlu0 %v3493
        %v3495 = vpop.xlane.xlu0 %3494
        %v3496 = vadd.f32 %v3436, %v3438
        %3497 = vadd.xlane.f32.xlu0 %v3496
        %v3498 = vpop.xlane.xlu0 %3497
        %v3499 = vadd.f32 %v3440, %v3442
        %3500 = vadd.xlane.f32.xlu0 %v3499
        %v3501 = vpop.xlane.xlu0 %3500
        %v3502 = vadd.f32 %v3444, %v3446
        %3503 = vadd.xlane.f32.xlu0 %v3502
        %v3504 = vpop.xlane.xlu0 %3503
        %v3505 = vadd.f32 %v3448, %v3450
        %3506 = vadd.xlane.f32.xlu0 %v3505
        %v3507 = vpop.xlane.xlu0 %3506
        %v3508 = vadd.f32 %v3452, %v3454
        %3509 = vadd.xlane.f32.xlu0 %v3508
        %v3510 = vpop.xlane.xlu0 %3509
        %v3511 = vadd.f32 %v3456, %v3458
        %3512 = vadd.xlane.f32.xlu0 %v3511
        %v3513 = vpop.xlane.xlu0 %3512
        %v3514 = vadd.f32 %v3460, %v3462
        %3515 = vadd.xlane.f32.xlu0 %v3514
        %v3516 = vpop.xlane.xlu0 %3515
        %v3517 = vadd.f32 %v3464, %v3466
        %3518 = vadd.xlane.f32.xlu0 %v3517
        %v3519 = vpop.xlane.xlu0 %3518
        %v3520 = vadd.f32 %v3468, %v3470
        %3521 = vadd.xlane.f32.xlu0 %v3520
        %v3522 = vpop.xlane.xlu0 %3521
        %v3523 = vadd.f32 %v3472, %v3474
        %3524 = vadd.xlane.f32.xlu0 %v3523
        %v3525 = vpop.xlane.xlu0 %3524
        %v3526 = vadd.f32 %v3476, %v3478
        %3527 = vadd.xlane.f32.xlu0 %v3526
        %v3528 = vpop.xlane.xlu0 %3527
        %v3529 = vadd.f32 %v3480, %v3482
        %3530 = vadd.xlane.f32.xlu0 %v3529
        %v3531 = vpop.xlane.xlu0 %3530
        %v3532 = vadd.f32 %v3484, %v3486
        %3533 = vadd.xlane.f32.xlu0 %v3532
        %v3534 = vpop.xlane.xlu0 %3533
        %v3535 = vrcp.pop %v3489
        %v3536 = vrcp.pop %v3492
        %v3537 = vrcp.pop %v3495
        %v3538 = vrcp.pop %v3498
        %v3539 = vrcp.pop %v3501
        %v3540 = vrcp.pop %v3504
        %v3541 = vrcp.pop %v3507
        %v3542 = vrcp.pop %v3510
        %v3543 = vrcp.pop %v3513
        %v3544 = vrcp.pop %v3516
        %v3545 = vrcp.pop %v3519
        %v3546 = vrcp.pop %v3522
        %v3547 = vrcp.pop %v3525
        %v3548 = vrcp.pop %v3528
        %v3549 = vrcp.pop %v3531
        %v3550 = vrcp.pop %v3534
        %v3551 = vmul.f32 %v3424, %v3535
        %v3552 = vmul.f32 %v3426, %v3535
        %v3553 = vmul.f32 %v3428, %v3536
        %v3554 = vmul.f32 %v3430, %v3536
        %v3555 = vmul.f32 %v3432, %v3537
        %v3556 = vmul.f32 %v3434, %v3537
        %v3557 = vmul.f32 %v3436, %v3538
        %v3558 = vmul.f32 %v3438, %v3538
        %v3559 = vmul.f32 %v3440, %v3539
        %v3560 = vmul.f32 %v3442, %v3539
        %v3561 = vmul.f32 %v3444, %v3540
        %v3562 = vmul.f32 %v3446, %v3540
        %v3563 = vmul.f32 %v3448, %v3541
        %v3564 = vmul.f32 %v3450, %v3541
        %v3565 = vmul.f32 %v3452, %v3542
        %v3566 = vmul.f32 %v3454, %v3542
        %v3567 = vmul.f32 %v3456, %v3543
        %v3568 = vmul.f32 %v3458, %v3543
        %v3569 = vmul.f32 %v3460, %v3544
        %v3570 = vmul.f32 %v3462, %v3544
        %v3571 = vmul.f32 %v3464, %v3545
        %v3572 = vmul.f32 %v3466, %v3545
        %v3573 = vmul.f32 %v3468, %v3546
        %v3574 = vmul.f32 %v3470, %v3546
        %v3575 = vmul.f32 %v3472, %v3547
        %v3576 = vmul.f32 %v3474, %v3547
        %v3577 = vmul.f32 %v3476, %v3548
        %v3578 = vmul.f32 %v3478, %v3548
        %v3579 = vmul.f32 %v3480, %v3549
        %v3580 = vmul.f32 %v3482, %v3549
        %v3581 = vmul.f32 %v3484, %v3550
        %v3582 = vmul.f32 %v3486, %v3550
        %v3583 = vpack.c.bf16 %v3553, %v3551
        %v3584 = vpack.c.bf16 %v3554, %v3552
        %v3585 = vpack.c.bf16 %v3557, %v3555
        %v3586 = vpack.c.bf16 %v3558, %v3556
        %v3587 = vpack.c.bf16 %v3561, %v3559
        %v3588 = vpack.c.bf16 %v3562, %v3560
        %v3589 = vpack.c.bf16 %v3565, %v3563
        %v3590 = vpack.c.bf16 %v3566, %v3564
        %v3591 = vpack.c.bf16 %v3569, %v3567
        %v3592 = vpack.c.bf16 %v3570, %v3568
        %v3593 = vpack.c.bf16 %v3573, %v3571
        %v3594 = vpack.c.bf16 %v3574, %v3572
        %v3595 = vpack.c.bf16 %v3577, %v3575
        %v3596 = vpack.c.bf16 %v3578, %v3576
        %v3597 = vpack.c.bf16 %v3581, %v3579
        %v3598 = vpack.c.bf16 %v3582, %v3580
        %v3615 = vunpack.c.l.b16 %v785
        %v3616 = vunpack.c.l.b16 %v787
        %v3617 = vunpack.c.l.b16 %v789
        %v3618 = vunpack.c.l.b16 %v791
        %v3619 = vunpack.c.l.b16 %v793
        %v3620 = vunpack.c.l.b16 %v795
        %v3621 = vunpack.c.l.b16 %v797
        %v3622 = vunpack.c.l.b16 %v799
        %v3623 = vunpack.c.l.b16 %v801
        %v3624 = vunpack.c.l.b16 %v803
        %v3625 = vunpack.c.l.b16 %v805
        %v3626 = vunpack.c.l.b16 %v807
        %v3627 = vunpack.c.l.b16 %v809
        %v3628 = vunpack.c.l.b16 %v811
        %v3629 = vunpack.c.l.b16 %v813
        %v3630 = vunpack.c.l.b16 %v815
        %v3631 = vpack.c.b16 %v3616, %v3615
        %v3632 = vpack.c.b16 %v3618, %v3617
        %v3633 = vpack.c.b16 %v3620, %v3619
        %v3634 = vpack.c.b16 %v3622, %v3621
        %v3635 = vpack.c.b16 %v3624, %v3623
        %v3636 = vpack.c.b16 %v3626, %v3625
        %v3637 = vpack.c.b16 %v3628, %v3627
        %v3638 = vpack.c.b16 %v3630, %v3629
        %3647 = vmatpush.bf16.msra.mxu0 %v1253
        %3648 = vmatpush.bf16.msra.mxu0 %v1252
        %3649 = vmatpush.bf16.msra.mxu0 %v1251
        %3650 = vmatpush.bf16.msra.mxu0 %v1250
        %3651 = vmatpush.bf16.msra.mxu0 %v1249
        %3652 = vmatpush.bf16.msra.mxu0 %v1248
        %3653 = vmatpush.bf16.msra.mxu0 %v1247
        %3654 = vmatpush.bf16.msra.mxu0 %v1246
        %3655 = vmatmul.bf16.gmra.mxu0 %v3583
        %v3656 = vpop.f32.mrf.mxu0
        %v3657 = vadd.f32 0.0, %v3656
        %v3658 = vpop.f32.mrf.mxu0
        %v3659 = vadd.f32 0.0, %v3658
        %3660 = vmatmul.bf16.gmra.mxu0 %v3585
        %v3661 = vpop.f32.mrf.mxu0
        %v3662 = vadd.f32 0.0, %v3661
        %v3663 = vpop.f32.mrf.mxu0
        %v3664 = vadd.f32 0.0, %v3663
        %3665 = vmatmul.bf16.gmra.mxu0 %v3587
        %v3666 = vpop.f32.mrf.mxu0
        %v3667 = vadd.f32 0.0, %v3666
        %v3668 = vpop.f32.mrf.mxu0
        %v3669 = vadd.f32 0.0, %v3668
        %3670 = vmatmul.bf16.gmra.mxu0 %v3589
        %v3671 = vpop.f32.mrf.mxu0
        %v3672 = vadd.f32 0.0, %v3671
        %v3673 = vpop.f32.mrf.mxu0
        %v3674 = vadd.f32 0.0, %v3673
        %3675 = vmatmul.bf16.gmra.mxu0 %v3591
        %v3676 = vpop.f32.mrf.mxu0
        %v3677 = vadd.f32 0.0, %v3676
        %v3678 = vpop.f32.mrf.mxu0
        %v3679 = vadd.f32 0.0, %v3678
        %3680 = vmatmul.bf16.gmra.mxu0 %v3593
        %v3681 = vpop.f32.mrf.mxu0
        %v3682 = vadd.f32 0.0, %v3681
        %v3683 = vpop.f32.mrf.mxu0
        %v3684 = vadd.f32 0.0, %v3683
        %3685 = vmatmul.bf16.gmra.mxu0 %v3595
        %v3686 = vpop.f32.mrf.mxu0
        %v3687 = vadd.f32 0.0, %v3686
        %v3688 = vpop.f32.mrf.mxu0
        %v3689 = vadd.f32 0.0, %v3688
        %3690 = vmatmul.bf16.gmra.mxu0 %v3597
        %v3691 = vpop.f32.mrf.mxu0
        %v3692 = vadd.f32 0.0, %v3691
        %v3693 = vpop.f32.mrf.mxu0
        %v3694 = vadd.f32 0.0, %v3693
        %3695 = vdwg.mxu0
        %3696 = vmatpush.bf16.msra.mxu0 %v3638
        %3697 = vmatpush.bf16.msra.mxu0 %v3637
        %3698 = vmatpush.bf16.msra.mxu0 %v3636
        %3699 = vmatpush.bf16.msra.mxu0 %v3635
        %3700 = vmatpush.bf16.msra.mxu0 %v3634
        %3701 = vmatpush.bf16.msra.mxu0 %v3633
        %3702 = vmatpush.bf16.msra.mxu0 %v3632
        %3703 = vmatpush.bf16.msra.mxu0 %v3631
        %3704 = vmatmul.bf16.gmra.mxu0 %v3584
        %v3705 = vpop.f32.mrf.mxu0
        %v3706 = vadd.f32 %v3657, %v3705
        %v3707 = vpop.f32.mrf.mxu0
        %v3708 = vadd.f32 %v3659, %v3707
        %3709 = vmatmul.bf16.gmra.mxu0 %v3586
        %v3710 = vpop.f32.mrf.mxu0
        %v3711 = vadd.f32 %v3662, %v3710
        %v3712 = vpop.f32.mrf.mxu0
        %v3713 = vadd.f32 %v3664, %v3712
        %3714 = vmatmul.bf16.gmra.mxu0 %v3588
        %v3715 = vpop.f32.mrf.mxu0
        %v3716 = vadd.f32 %v3667, %v3715
        %v3717 = vpop.f32.mrf.mxu0
        %v3718 = vadd.f32 %v3669, %v3717
        %3719 = vmatmul.bf16.gmra.mxu0 %v3590
        %v3720 = vpop.f32.mrf.mxu0
        %v3721 = vadd.f32 %v3672, %v3720
        %v3722 = vpop.f32.mrf.mxu0
        %v3723 = vadd.f32 %v3674, %v3722
        %3724 = vmatmul.bf16.gmra.mxu0 %v3592
        %v3725 = vpop.f32.mrf.mxu0
        %v3726 = vadd.f32 %v3677, %v3725
        %v3727 = vpop.f32.mrf.mxu0
        %v3728 = vadd.f32 %v3679, %v3727
        %3729 = vmatmul.bf16.gmra.mxu0 %v3594
        %v3730 = vpop.f32.mrf.mxu0
        %v3731 = vadd.f32 %v3682, %v3730
        %v3732 = vpop.f32.mrf.mxu0
        %v3733 = vadd.f32 %v3684, %v3732
        %3734 = vmatmul.bf16.gmra.mxu0 %v3596
        %v3735 = vpop.f32.mrf.mxu0
        %v3736 = vadd.f32 %v3687, %v3735
        %v3737 = vpop.f32.mrf.mxu0
        %v3738 = vadd.f32 %v3689, %v3737
        %3739 = vmatmul.bf16.gmra.mxu0 %v3598
        %v3740 = vpop.f32.mrf.mxu0
        %v3741 = vadd.f32 %v3692, %v3740
        %v3742 = vpop.f32.mrf.mxu0
        %v3743 = vadd.f32 %v3694, %v3742
        %3744 = vdwg.mxu0
        %v3745 = vld [vmem:[#allocation2] sm:$0xff]
        %v3746 = vld [vmem:[#allocation2 + $0x8] sm:$0xff]
        %v3747 = vld [vmem:[#allocation2 + $0x10] sm:$0xff]
        %v3748 = vld [vmem:[#allocation2 + $0x18] sm:$0xff]
        %v3749 = vld [vmem:[#allocation2 + $0x20] sm:$0xff]
        %v3750 = vld [vmem:[#allocation2 + $0x28] sm:$0xff]
        %v3751 = vld [vmem:[#allocation2 + $0x30] sm:$0xff]
        %v3752 = vld [vmem:[#allocation2 + $0x38] sm:$0xff]
        %v3753 = vld [vmem:[#allocation2 + $0x40] sm:$0xff]
        %v3754 = vld [vmem:[#allocation2 + $0x48] sm:$0xff]
        %v3755 = vld [vmem:[#allocation2 + $0x50] sm:$0xff]
        %v3756 = vld [vmem:[#allocation2 + $0x58] sm:$0xff]
        %v3757 = vld [vmem:[#allocation2 + $0x60] sm:$0xff]
        %v3758 = vld [vmem:[#allocation2 + $0x68] sm:$0xff]
        %v3759 = vld [vmem:[#allocation2 + $0x70] sm:$0xff]
        %v3760 = vld [vmem:[#allocation2 + $0x78] sm:$0xff]
        %v3761 = vpack.c.bf16 %v3708, %v3706
        %v3762 = vpack.c.bf16 %v3713, %v3711
        %v3763 = vpack.c.bf16 %v3718, %v3716
        %v3764 = vpack.c.bf16 %v3723, %v3721
        %v3765 = vpack.c.bf16 %v3728, %v3726
        %v3766 = vpack.c.bf16 %v3733, %v3731
        %v3767 = vpack.c.bf16 %v3738, %v3736
        %v3768 = vpack.c.bf16 %v3743, %v3741
        %v3770 = vsel %vm932, %v3761, 0
        %v3773 = vsel %vm932, %v3762, 0
        %v3776 = vsel %vm932, %v3763, 0
        %v3779 = vsel %vm932, %v3764, 0
        %v3782 = vsel %vm932, %v3765, 0
        %v3785 = vsel %vm932, %v3766, 0
        %v3788 = vsel %vm932, %v3767, 0
        %v3791 = vsel %vm932, %v3768, 0
        %3793 = vmatpush.bf16.msra.mxu0 0
        %3794 = vmatpush.bf16.msra.mxu0 0
        %3795 = vmatpush.bf16.msra.mxu0 0
        %3796 = vmatpush.bf16.msra.mxu0 0
        %3797 = vmatpush.bf16.msra.mxu0 0
        %3798 = vmatpush.bf16.msra.mxu0 0
        %3799 = vmatpush.bf16.msra.mxu0 %v1344
        %3800 = vmatpush.bf16.msra.mxu0 %v1343
        %3801 = vmatmul.bf16.gmra.mxu0 %v3770
        %v3802 = vpop.f32.mrf.mxu0
        %v3803 = vadd.f32 0.0, %v3802
        %v3804 = vpop.f32.mrf.mxu0
        %v3805 = vadd.f32 0.0, %v3804
        %3806 = vmatmul.bf16.gmra.mxu0 %v3773
        %v3807 = vpop.f32.mrf.mxu0
        %v3808 = vadd.f32 0.0, %v3807
        %v3809 = vpop.f32.mrf.mxu0
        %v3810 = vadd.f32 0.0, %v3809
        %3811 = vmatmul.bf16.gmra.mxu0 %v3776
        %v3812 = vpop.f32.mrf.mxu0
        %v3813 = vadd.f32 0.0, %v3812
        %v3814 = vpop.f32.mrf.mxu0
        %v3815 = vadd.f32 0.0, %v3814
        %3816 = vmatmul.bf16.gmra.mxu0 %v3779
        %v3817 = vpop.f32.mrf.mxu0
        %v3818 = vadd.f32 0.0, %v3817
        %v3819 = vpop.f32.mrf.mxu0
        %v3820 = vadd.f32 0.0, %v3819
        %3821 = vmatmul.bf16.gmra.mxu0 %v3782
        %v3822 = vpop.f32.mrf.mxu0
        %v3823 = vadd.f32 0.0, %v3822
        %v3824 = vpop.f32.mrf.mxu0
        %v3825 = vadd.f32 0.0, %v3824
        %3826 = vmatmul.bf16.gmra.mxu0 %v3785
        %v3827 = vpop.f32.mrf.mxu0
        %v3828 = vadd.f32 0.0, %v3827
        %v3829 = vpop.f32.mrf.mxu0
        %v3830 = vadd.f32 0.0, %v3829
        %3831 = vmatmul.bf16.gmra.mxu0 %v3788
        %v3832 = vpop.f32.mrf.mxu0
        %v3833 = vadd.f32 0.0, %v3832
        %v3834 = vpop.f32.mrf.mxu0
        %v3835 = vadd.f32 0.0, %v3834
        %3836 = vmatmul.bf16.gmra.mxu0 %v3791
        %v3837 = vpop.f32.mrf.mxu0
        %v3838 = vadd.f32 0.0, %v3837
        %v3839 = vpop.f32.mrf.mxu0
        %v3840 = vadd.f32 0.0, %v3839
        %3841 = vdwg.mxu0
        %v3842 = vadd.f32 %v3745, %v3803
        %v3843 = vadd.f32 %v3746, %v3805
        %v3844 = vadd.f32 %v3747, %v3808
        %v3845 = vadd.f32 %v3748, %v3810
        %v3846 = vadd.f32 %v3749, %v3813
        %v3847 = vadd.f32 %v3750, %v3815
        %v3848 = vadd.f32 %v3751, %v3818
        %v3849 = vadd.f32 %v3752, %v3820
        %v3850 = vadd.f32 %v3753, %v3823
        %v3851 = vadd.f32 %v3754, %v3825
        %v3852 = vadd.f32 %v3755, %v3828
        %v3853 = vadd.f32 %v3756, %v3830
        %v3854 = vadd.f32 %v3757, %v3833
        %v3855 = vadd.f32 %v3758, %v3835
        %v3856 = vadd.f32 %v3759, %v3838
        %v3857 = vadd.f32 %v3760, %v3840
        %3858 = vst [vmem:[#allocation2] sm:$0xff] %v3842
        %3859 = vst [vmem:[#allocation2 + $0x8] sm:$0xff] %v3843
        %3860 = vst [vmem:[#allocation2 + $0x10] sm:$0xff] %v3844
        %3861 = vst [vmem:[#allocation2 + $0x18] sm:$0xff] %v3845
        %3862 = vst [vmem:[#allocation2 + $0x20] sm:$0xff] %v3846
        %3863 = vst [vmem:[#allocation2 + $0x28] sm:$0xff] %v3847
        %3864 = vst [vmem:[#allocation2 + $0x30] sm:$0xff] %v3848
        %3865 = vst [vmem:[#allocation2 + $0x38] sm:$0xff] %v3849
        %3866 = vst [vmem:[#allocation2 + $0x40] sm:$0xff] %v3850
        %3867 = vst [vmem:[#allocation2 + $0x48] sm:$0xff] %v3851
        %3868 = vst [vmem:[#allocation2 + $0x50] sm:$0xff] %v3852
        %3869 = vst [vmem:[#allocation2 + $0x58] sm:$0xff] %v3853
        %3870 = vst [vmem:[#allocation2 + $0x60] sm:$0xff] %v3854
        %3871 = vst [vmem:[#allocation2 + $0x68] sm:$0xff] %v3855
        %3872 = vst [vmem:[#allocation2 + $0x70] sm:$0xff] %v3856
        %3873 = vst [vmem:[#allocation2 + $0x78] sm:$0xff] %v3857
        %3874 = vrot.lane.b32.xlu0 %v3101, 96
        %v3875 = vpop.permute.xlu0 %3874
        %3876 = vrot.lane.b32.xlu0 %v3102, 96
        %v3877 = vpop.permute.xlu0 %3876
        %3878 = vrot.lane.b32.xlu0 %v3103, 96
        %v3879 = vpop.permute.xlu0 %3878
        %3880 = vrot.lane.b32.xlu0 %v3104, 96
        %v3881 = vpop.permute.xlu0 %3880
        %3882 = vrot.lane.b32.xlu0 %v3105, 96
        %v3883 = vpop.permute.xlu0 %3882
        %3884 = vrot.lane.b32.xlu0 %v3106, 96
        %v3885 = vpop.permute.xlu0 %3884
        %3886 = vrot.lane.b32.xlu0 %v3107, 96
        %v3887 = vpop.permute.xlu0 %3886
        %3888 = vrot.lane.b32.xlu0 %v3108, 96
        %v3889 = vpop.permute.xlu0 %3888
        %3890 = vrot.lane.b32.xlu0 %v3125, 96
        %v3891 = vpop.permute.xlu0 %3890
        %3892 = vrot.lane.b32.xlu0 %v3126, 96
        %v3893 = vpop.permute.xlu0 %3892
        %3894 = vrot.lane.b32.xlu0 %v3127, 96
        %v3895 = vpop.permute.xlu0 %3894
        %3896 = vrot.lane.b32.xlu0 %v3128, 96
        %v3897 = vpop.permute.xlu0 %3896
        %3898 = vrot.lane.b32.xlu0 %v3129, 96
        %v3899 = vpop.permute.xlu0 %3898
        %3900 = vrot.lane.b32.xlu0 %v3130, 96
        %v3901 = vpop.permute.xlu0 %3900
        %3902 = vrot.lane.b32.xlu0 %v3131, 96
        %v3903 = vpop.permute.xlu0 %3902
        %3904 = vrot.lane.b32.xlu0 %v3132, 96
        %v3905 = vpop.permute.xlu0 %3904
        %v3907 = vsel %vm932, %v3875, 0
        %v3910 = vsel %vm932, %v3877, 0
        %v3913 = vsel %vm932, %v3879, 0
        %v3916 = vsel %vm932, %v3881, 0
        %v3919 = vsel %vm932, %v3883, 0
        %v3922 = vsel %vm932, %v3885, 0
        %v3925 = vsel %vm932, %v3887, 0
        %v3928 = vsel %vm932, %v3889, 0
        %v3931 = vsel %vm932, %v3891, 0
        %v3934 = vsel %vm932, %v3893, 0
        %v3937 = vsel %vm932, %v3895, 0
        %v3940 = vsel %vm932, %v3897, 0
        %v3943 = vsel %vm932, %v3899, 0
        %v3946 = vsel %vm932, %v3901, 0
        %v3949 = vsel %vm932, %v3903, 0
        %v3952 = vsel %vm932, %v3905, 0
        %3954 = vmatpush.bf16.xpose.msra.mxu0 %v1530
        %3955 = vmatpush.bf16.xpose.msra.mxu0 %v1527
        %3956 = vmatpush.bf16.xpose.msra.mxu0 %v1524
        %3957 = vmatpush.bf16.xpose.msra.mxu0 %v1521
        %3958 = vmatpush.bf16.xpose.msra.mxu0 %v1518
        %3959 = vmatpush.bf16.xpose.msra.mxu0 %v1515
        %3960 = vmatpush.bf16.xpose.msra.mxu0 %v1512
        %3961 = vmatpush.bf16.xpose.msra.mxu0 %v1509
        %3962 = vmatmul.bf16.gmra.mxu0 %v3907
        %v3963 = vpop.f32.mrf.mxu0
        %v3964 = vadd.f32 0.0, %v3963
        %v3965 = vpop.f32.mrf.mxu0
        %v3966 = vadd.f32 0.0, %v3965
        %3967 = vmatmul.bf16.gmra.mxu0 %v3910
        %v3968 = vpop.f32.mrf.mxu0
        %v3969 = vadd.f32 0.0, %v3968
        %v3970 = vpop.f32.mrf.mxu0
        %v3971 = vadd.f32 0.0, %v3970
        %3972 = vmatmul.bf16.gmra.mxu0 %v3913
        %v3973 = vpop.f32.mrf.mxu0
        %v3974 = vadd.f32 0.0, %v3973
        %v3975 = vpop.f32.mrf.mxu0
        %v3976 = vadd.f32 0.0, %v3975
        %3977 = vmatmul.bf16.gmra.mxu0 %v3916
        %v3978 = vpop.f32.mrf.mxu0
        %v3979 = vadd.f32 0.0, %v3978
        %v3980 = vpop.f32.mrf.mxu0
        %v3981 = vadd.f32 0.0, %v3980
        %3982 = vmatmul.bf16.gmra.mxu0 %v3919
        %v3983 = vpop.f32.mrf.mxu0
        %v3984 = vadd.f32 0.0, %v3983
        %v3985 = vpop.f32.mrf.mxu0
        %v3986 = vadd.f32 0.0, %v3985
        %3987 = vmatmul.bf16.gmra.mxu0 %v3922
        %v3988 = vpop.f32.mrf.mxu0
        %v3989 = vadd.f32 0.0, %v3988
        %v3990 = vpop.f32.mrf.mxu0
        %v3991 = vadd.f32 0.0, %v3990
        %3992 = vmatmul.bf16.gmra.mxu0 %v3925
        %v3993 = vpop.f32.mrf.mxu0
        %v3994 = vadd.f32 0.0, %v3993
        %v3995 = vpop.f32.mrf.mxu0
        %v3996 = vadd.f32 0.0, %v3995
        %3997 = vmatmul.bf16.gmra.mxu0 %v3928
        %v3998 = vpop.f32.mrf.mxu0
        %v3999 = vadd.f32 0.0, %v3998
        %v4000 = vpop.f32.mrf.mxu0
        %v4001 = vadd.f32 0.0, %v4000
        %4002 = vdwg.mxu0
        %4003 = vmatpush.bf16.xpose.msra.mxu0 %v3952
        %4004 = vmatpush.bf16.xpose.msra.mxu0 %v3949
        %4005 = vmatpush.bf16.xpose.msra.mxu0 %v3946
        %4006 = vmatpush.bf16.xpose.msra.mxu0 %v3943
        %4007 = vmatpush.bf16.xpose.msra.mxu0 %v3940
        %4008 = vmatpush.bf16.xpose.msra.mxu0 %v3937
        %4009 = vmatpush.bf16.xpose.msra.mxu0 %v3934
        %4010 = vmatpush.bf16.xpose.msra.mxu0 %v3931
        %4011 = vmatmul.bf16.gmra.mxu0 %v3907
        %v4012 = vpop.f32.mrf.mxu0
        %v4013 = vadd.f32 0.0, %v4012
        %v4014 = vpop.f32.mrf.mxu0
        %v4015 = vadd.f32 0.0, %v4014
        %4016 = vmatmul.bf16.gmra.mxu0 %v3910
        %v4017 = vpop.f32.mrf.mxu0
        %v4018 = vadd.f32 0.0, %v4017
        %v4019 = vpop.f32.mrf.mxu0
        %v4020 = vadd.f32 0.0, %v4019
        %4021 = vmatmul.bf16.gmra.mxu0 %v3913
        %v4022 = vpop.f32.mrf.mxu0
        %v4023 = vadd.f32 0.0, %v4022
        %v4024 = vpop.f32.mrf.mxu0
        %v4025 = vadd.f32 0.0, %v4024
        %4026 = vmatmul.bf16.gmra.mxu0 %v3916
        %v4027 = vpop.f32.mrf.mxu0
        %v4028 = vadd.f32 0.0, %v4027
        %v4029 = vpop.f32.mrf.mxu0
        %v4030 = vadd.f32 0.0, %v4029
        %4031 = vmatmul.bf16.gmra.mxu0 %v3919
        %v4032 = vpop.f32.mrf.mxu0
        %v4033 = vadd.f32 0.0, %v4032
        %v4034 = vpop.f32.mrf.mxu0
        %v4035 = vadd.f32 0.0, %v4034
        %4036 = vmatmul.bf16.gmra.mxu0 %v3922
        %v4037 = vpop.f32.mrf.mxu0
        %v4038 = vadd.f32 0.0, %v4037
        %v4039 = vpop.f32.mrf.mxu0
        %v4040 = vadd.f32 0.0, %v4039
        %4041 = vmatmul.bf16.gmra.mxu0 %v3925
        %v4042 = vpop.f32.mrf.mxu0
        %v4043 = vadd.f32 0.0, %v4042
        %v4044 = vpop.f32.mrf.mxu0
        %v4045 = vadd.f32 0.0, %v4044
        %4046 = vmatmul.bf16.gmra.mxu0 %v3928
        %v4047 = vpop.f32.mrf.mxu0
        %v4048 = vadd.f32 0.0, %v4047
        %v4049 = vpop.f32.mrf.mxu0
        %v4050 = vadd.f32 0.0, %v4049
        %4051 = vdwg.mxu0
        %v4052 = vsel %vm3279, %v3964, -1e+30
        %v4053 = vsel %vm3280, %v4013, -1e+30
        %v4054 = vsel %vm3281, %v3966, -1e+30
        %v4055 = vsel %vm3282, %v4015, -1e+30
        %v4056 = vsel %vm3283, %v3969, -1e+30
        %v4057 = vsel %vm3284, %v4018, -1e+30
        %v4058 = vsel %vm3285, %v3971, -1e+30
        %v4059 = vsel %vm3286, %v4020, -1e+30
        %v4060 = vsel %vm3287, %v3974, -1e+30
        %v4061 = vsel %vm3288, %v4023, -1e+30
        %v4062 = vsel %vm3289, %v3976, -1e+30
        %v4063 = vsel %vm3290, %v4025, -1e+30
        %v4064 = vsel %vm3291, %v3979, -1e+30
        %v4065 = vsel %vm3292, %v4028, -1e+30
        %v4066 = vsel %vm3293, %v3981, -1e+30
        %v4067 = vsel %vm3294, %v4030, -1e+30
        %v4068 = vsel %vm3295, %v3984, -1e+30
        %v4069 = vsel %vm3296, %v4033, -1e+30
        %v4070 = vsel %vm3297, %v3986, -1e+30
        %v4071 = vsel %vm3298, %v4035, -1e+30
        %v4072 = vsel %vm3299, %v3989, -1e+30
        %v4073 = vsel %vm3300, %v4038, -1e+30
        %v4074 = vsel %vm3301, %v3991, -1e+30
        %v4075 = vsel %vm3302, %v4040, -1e+30
        %v4076 = vsel %vm3303, %v3994, -1e+30
        %v4077 = vsel %vm3304, %v4043, -1e+30
        %v4078 = vsel %vm3305, %v3996, -1e+30
        %v4079 = vsel %vm3306, %v4045, -1e+30
        %v4080 = vsel %vm3307, %v3999, -1e+30
        %v4081 = vsel %vm3308, %v4048, -1e+30
        %v4082 = vsel %vm3309, %v4001, -1e+30
        %v4083 = vsel %vm3310, %v4050, -1e+30
        %v4084 = vmax.f32 %v4052, %v4053
        %4085 = vmax.xlane.f32.xlu0 %v4084
        %v4086 = vpop.xlane.xlu0 %4085
        %v4087 = vmax.f32 %v4054, %v4055
        %4088 = vmax.xlane.f32.xlu0 %v4087
        %v4089 = vpop.xlane.xlu0 %4088
        %v4090 = vmax.f32 %v4056, %v4057
        %4091 = vmax.xlane.f32.xlu0 %v4090
        %v4092 = vpop.xlane.xlu0 %4091
        %v4093 = vmax.f32 %v4058, %v4059
        %4094 = vmax.xlane.f32.xlu0 %v4093
        %v4095 = vpop.xlane.xlu0 %4094
        %v4096 = vmax.f32 %v4060, %v4061
        %4097 = vmax.xlane.f32.xlu0 %v4096
        %v4098 = vpop.xlane.xlu0 %4097
        %v4099 = vmax.f32 %v4062, %v4063
        %4100 = vmax.xlane.f32.xlu0 %v4099
        %v4101 = vpop.xlane.xlu0 %4100
        %v4102 = vmax.f32 %v4064, %v4065
        %4103 = vmax.xlane.f32.xlu0 %v4102
        %v4104 = vpop.xlane.xlu0 %4103
        %v4105 = vmax.f32 %v4066, %v4067
        %4106 = vmax.xlane.f32.xlu0 %v4105
        %v4107 = vpop.xlane.xlu0 %4106
        %v4108 = vmax.f32 %v4068, %v4069
        %4109 = vmax.xlane.f32.xlu0 %v4108
        %v4110 = vpop.xlane.xlu0 %4109
        %v4111 = vmax.f32 %v4070, %v4071
        %4112 = vmax.xlane.f32.xlu0 %v4111
        %v4113 = vpop.xlane.xlu0 %4112
        %v4114 = vmax.f32 %v4072, %v4073
        %4115 = vmax.xlane.f32.xlu0 %v4114
        %v4116 = vpop.xlane.xlu0 %4115
        %v4117 = vmax.f32 %v4074, %v4075
        %4118 = vmax.xlane.f32.xlu0 %v4117
        %v4119 = vpop.xlane.xlu0 %4118
        %v4120 = vmax.f32 %v4076, %v4077
        %4121 = vmax.xlane.f32.xlu0 %v4120
        %v4122 = vpop.xlane.xlu0 %4121
        %v4123 = vmax.f32 %v4078, %v4079
        %4124 = vmax.xlane.f32.xlu0 %v4123
        %v4125 = vpop.xlane.xlu0 %4124
        %v4126 = vmax.f32 %v4080, %v4081
        %4127 = vmax.xlane.f32.xlu0 %v4126
        %v4128 = vpop.xlane.xlu0 %4127
        %v4129 = vmax.f32 %v4082, %v4083
        %4130 = vmax.xlane.f32.xlu0 %v4129
        %v4131 = vpop.xlane.xlu0 %4130
        %v4132 = vsub.f32 %v4052, %v4086
        %v4133 = vsub.f32 %v4053, %v4086
        %v4134 = vsub.f32 %v4054, %v4089
        %v4135 = vsub.f32 %v4055, %v4089
        %v4136 = vsub.f32 %v4056, %v4092
        %v4137 = vsub.f32 %v4057, %v4092
        %v4138 = vsub.f32 %v4058, %v4095
        %v4139 = vsub.f32 %v4059, %v4095
        %v4140 = vsub.f32 %v4060, %v4098
        %v4141 = vsub.f32 %v4061, %v4098
        %v4142 = vsub.f32 %v4062, %v4101
        %v4143 = vsub.f32 %v4063, %v4101
        %v4144 = vsub.f32 %v4064, %v4104
        %v4145 = vsub.f32 %v4065, %v4104
        %v4146 = vsub.f32 %v4066, %v4107
        %v4147 = vsub.f32 %v4067, %v4107
        %v4148 = vsub.f32 %v4068, %v4110
        %v4149 = vsub.f32 %v4069, %v4110
        %v4150 = vsub.f32 %v4070, %v4113
        %v4151 = vsub.f32 %v4071, %v4113
        %v4152 = vsub.f32 %v4072, %v4116
        %v4153 = vsub.f32 %v4073, %v4116
        %v4154 = vsub.f32 %v4074, %v4119
        %v4155 = vsub.f32 %v4075, %v4119
        %v4156 = vsub.f32 %v4076, %v4122
        %v4157 = vsub.f32 %v4077, %v4122
        %v4158 = vsub.f32 %v4078, %v4125
        %v4159 = vsub.f32 %v4079, %v4125
        %v4160 = vsub.f32 %v4080, %v4128
        %v4161 = vsub.f32 %v4081, %v4128
        %v4162 = vsub.f32 %v4082, %v4131
        %v4163 = vsub.f32 %v4083, %v4131
        %v4164 = vmul.f32 %v4132, 1.442695
        %v4165 = vpow.pop %v4164
        %v4166 = vmul.f32 %v4133, 1.442695
        %v4167 = vpow.pop %v4166
        %v4168 = vmul.f32 %v4134, 1.442695
        %v4169 = vpow.pop %v4168
        %v4170 = vmul.f32 %v4135, 1.442695
        %v4171 = vpow.pop %v4170
        %v4172 = vmul.f32 %v4136, 1.442695
        %v4173 = vpow.pop %v4172
        %v4174 = vmul.f32 %v4137, 1.442695
        %v4175 = vpow.pop %v4174
        %v4176 = vmul.f32 %v4138, 1.442695
        %v4177 = vpow.pop %v4176
        %v4178 = vmul.f32 %v4139, 1.442695
        %v4179 = vpow.pop %v4178
        %v4180 = vmul.f32 %v4140, 1.442695
        %v4181 = vpow.pop %v4180
        %v4182 = vmul.f32 %v4141, 1.442695
        %v4183 = vpow.pop %v4182
        %v4184 = vmul.f32 %v4142, 1.442695
        %v4185 = vpow.pop %v4184
        %v4186 = vmul.f32 %v4143, 1.442695
        %v4187 = vpow.pop %v4186
        %v4188 = vmul.f32 %v4144, 1.442695
        %v4189 = vpow.pop %v4188
        %v4190 = vmul.f32 %v4145, 1.442695
        %v4191 = vpow.pop %v4190
        %v4192 = vmul.f32 %v4146, 1.442695
        %v4193 = vpow.pop %v4192
        %v4194 = vmul.f32 %v4147, 1.442695
        %v4195 = vpow.pop %v4194
        %v4196 = vmul.f32 %v4148, 1.442695
        %v4197 = vpow.pop %v4196
        %v4198 = vmul.f32 %v4149, 1.442695
        %v4199 = vpow.pop %v4198
        %v4200 = vmul.f32 %v4150, 1.442695
        %v4201 = vpow.pop %v4200
        %v4202 = vmul.f32 %v4151, 1.442695
        %v4203 = vpow.pop %v4202
        %v4204 = vmul.f32 %v4152, 1.442695
        %v4205 = vpow.pop %v4204
        %v4206 = vmul.f32 %v4153, 1.442695
        %v4207 = vpow.pop %v4206
        %v4208 = vmul.f32 %v4154, 1.442695
        %v4209 = vpow.pop %v4208
        %v4210 = vmul.f32 %v4155, 1.442695
        %v4211 = vpow.pop %v4210
        %v4212 = vmul.f32 %v4156, 1.442695
        %v4213 = vpow.pop %v4212
        %v4214 = vmul.f32 %v4157, 1.442695
        %v4215 = vpow.pop %v4214
        %v4216 = vmul.f32 %v4158, 1.442695
        %v4217 = vpow.pop %v4216
        %v4218 = vmul.f32 %v4159, 1.442695
        %v4219 = vpow.pop %v4218
        %v4220 = vmul.f32 %v4160, 1.442695
        %v4221 = vpow.pop %v4220
        %v4222 = vmul.f32 %v4161, 1.442695
        %v4223 = vpow.pop %v4222
        %v4224 = vmul.f32 %v4162, 1.442695
        %v4225 = vpow.pop %v4224
        %v4226 = vmul.f32 %v4163, 1.442695
        %v4227 = vpow.pop %v4226
        %v4228 = vadd.f32 %v4165, %v4167
        %4229 = vadd.xlane.f32.xlu0 %v4228
        %v4230 = vpop.xlane.xlu0 %4229
        %v4231 = vadd.f32 %v4169, %v4171
        %4232 = vadd.xlane.f32.xlu0 %v4231
        %v4233 = vpop.xlane.xlu0 %4232
        %v4234 = vadd.f32 %v4173, %v4175
        %4235 = vadd.xlane.f32.xlu0 %v4234
        %v4236 = vpop.xlane.xlu0 %4235
        %v4237 = vadd.f32 %v4177, %v4179
        %4238 = vadd.xlane.f32.xlu0 %v4237
        %v4239 = vpop.xlane.xlu0 %4238
        %v4240 = vadd.f32 %v4181, %v4183
        %4241 = vadd.xlane.f32.xlu0 %v4240
        %v4242 = vpop.xlane.xlu0 %4241
        %v4243 = vadd.f32 %v4185, %v4187
        %4244 = vadd.xlane.f32.xlu0 %v4243
        %v4245 = vpop.xlane.xlu0 %4244
        %v4246 = vadd.f32 %v4189, %v4191
        %4247 = vadd.xlane.f32.xlu0 %v4246
        %v4248 = vpop.xlane.xlu0 %4247
        %v4249 = vadd.f32 %v4193, %v4195
        %4250 = vadd.xlane.f32.xlu0 %v4249
        %v4251 = vpop.xlane.xlu0 %4250
        %v4252 = vadd.f32 %v4197, %v4199
        %4253 = vadd.xlane.f32.xlu0 %v4252
        %v4254 = vpop.xlane.xlu0 %4253
        %v4255 = vadd.f32 %v4201, %v4203
        %4256 = vadd.xlane.f32.xlu0 %v4255
        %v4257 = vpop.xlane.xlu0 %4256
        %v4258 = vadd.f32 %v4205, %v4207
        %4259 = vadd.xlane.f32.xlu0 %v4258
        %v4260 = vpop.xlane.xlu0 %4259
        %v4261 = vadd.f32 %v4209, %v4211
        %4262 = vadd.xlane.f32.xlu0 %v4261
        %v4263 = vpop.xlane.xlu0 %4262
        %v4264 = vadd.f32 %v4213, %v4215
        %4265 = vadd.xlane.f32.xlu0 %v4264
        %v4266 = vpop.xlane.xlu0 %4265
        %v4267 = vadd.f32 %v4217, %v4219
        %4268 = vadd.xlane.f32.xlu0 %v4267
        %v4269 = vpop.xlane.xlu0 %4268
        %v4270 = vadd.f32 %v4221, %v4223
        %4271 = vadd.xlane.f32.xlu0 %v4270
        %v4272 = vpop.xlane.xlu0 %4271
        %v4273 = vadd.f32 %v4225, %v4227
        %4274 = vadd.xlane.f32.xlu0 %v4273
        %v4275 = vpop.xlane.xlu0 %4274
        %v4276 = vrcp.pop %v4230
        %v4277 = vrcp.pop %v4233
        %v4278 = vrcp.pop %v4236
        %v4279 = vrcp.pop %v4239
        %v4280 = vrcp.pop %v4242
        %v4281 = vrcp.pop %v4245
        %v4282 = vrcp.pop %v4248
        %v4283 = vrcp.pop %v4251
        %v4284 = vrcp.pop %v4254
        %v4285 = vrcp.pop %v4257
        %v4286 = vrcp.pop %v4260
        %v4287 = vrcp.pop %v4263
        %v4288 = vrcp.pop %v4266
        %v4289 = vrcp.pop %v4269
        %v4290 = vrcp.pop %v4272
        %v4291 = vrcp.pop %v4275
        %v4292 = vmul.f32 %v4165, %v4276
        %v4293 = vmul.f32 %v4167, %v4276
        %v4294 = vmul.f32 %v4169, %v4277
        %v4295 = vmul.f32 %v4171, %v4277
        %v4296 = vmul.f32 %v4173, %v4278
        %v4297 = vmul.f32 %v4175, %v4278
        %v4298 = vmul.f32 %v4177, %v4279
        %v4299 = vmul.f32 %v4179, %v4279
        %v4300 = vmul.f32 %v4181, %v4280
        %v4301 = vmul.f32 %v4183, %v4280
        %v4302 = vmul.f32 %v4185, %v4281
        %v4303 = vmul.f32 %v4187, %v4281
        %v4304 = vmul.f32 %v4189, %v4282
        %v4305 = vmul.f32 %v4191, %v4282
        %v4306 = vmul.f32 %v4193, %v4283
        %v4307 = vmul.f32 %v4195, %v4283
        %v4308 = vmul.f32 %v4197, %v4284
        %v4309 = vmul.f32 %v4199, %v4284
        %v4310 = vmul.f32 %v4201, %v4285
        %v4311 = vmul.f32 %v4203, %v4285
        %v4312 = vmul.f32 %v4205, %v4286
        %v4313 = vmul.f32 %v4207, %v4286
        %v4314 = vmul.f32 %v4209, %v4287
        %v4315 = vmul.f32 %v4211, %v4287
        %v4316 = vmul.f32 %v4213, %v4288
        %v4317 = vmul.f32 %v4215, %v4288
        %v4318 = vmul.f32 %v4217, %v4289
        %v4319 = vmul.f32 %v4219, %v4289
        %v4320 = vmul.f32 %v4221, %v4290
        %v4321 = vmul.f32 %v4223, %v4290
        %v4322 = vmul.f32 %v4225, %v4291
        %v4323 = vmul.f32 %v4227, %v4291
        %v4324 = vpack.c.bf16 %v4294, %v4292
        %v4325 = vpack.c.bf16 %v4295, %v4293
        %v4326 = vpack.c.bf16 %v4298, %v4296
        %v4327 = vpack.c.bf16 %v4299, %v4297
        %v4328 = vpack.c.bf16 %v4302, %v4300
        %v4329 = vpack.c.bf16 %v4303, %v4301
        %v4330 = vpack.c.bf16 %v4306, %v4304
        %v4331 = vpack.c.bf16 %v4307, %v4305
        %v4332 = vpack.c.bf16 %v4310, %v4308
        %v4333 = vpack.c.bf16 %v4311, %v4309
        %v4334 = vpack.c.bf16 %v4314, %v4312
        %v4335 = vpack.c.bf16 %v4315, %v4313
        %v4336 = vpack.c.bf16 %v4318, %v4316
        %v4337 = vpack.c.bf16 %v4319, %v4317
        %v4338 = vpack.c.bf16 %v4322, %v4320
        %v4339 = vpack.c.bf16 %v4323, %v4321
        %4340 = vrot.lane.b32.xlu0 %v3631, 96
        %v4341 = vpop.permute.xlu0 %4340
        %4342 = vrot.lane.b32.xlu0 %v3632, 96
        %v4343 = vpop.permute.xlu0 %4342
        %4344 = vrot.lane.b32.xlu0 %v3633, 96
        %v4345 = vpop.permute.xlu0 %4344
        %4346 = vrot.lane.b32.xlu0 %v3634, 96
        %v4347 = vpop.permute.xlu0 %4346
        %4348 = vrot.lane.b32.xlu0 %v3635, 96
        %v4349 = vpop.permute.xlu0 %4348
        %4350 = vrot.lane.b32.xlu0 %v3636, 96
        %v4351 = vpop.permute.xlu0 %4350
        %4352 = vrot.lane.b32.xlu0 %v3637, 96
        %v4353 = vpop.permute.xlu0 %4352
        %4354 = vrot.lane.b32.xlu0 %v3638, 96
        %v4355 = vpop.permute.xlu0 %4354
        %4364 = vmatpush.bf16.msra.mxu0 %v1764
        %4365 = vmatpush.bf16.msra.mxu0 %v1762
        %4366 = vmatpush.bf16.msra.mxu0 %v1760
        %4367 = vmatpush.bf16.msra.mxu0 %v1758
        %4368 = vmatpush.bf16.msra.mxu0 %v1756
        %4369 = vmatpush.bf16.msra.mxu0 %v1754
        %4370 = vmatpush.bf16.msra.mxu0 %v1752
        %4371 = vmatpush.bf16.msra.mxu0 %v1750
        %4372 = vmatmul.bf16.gmra.mxu0 %v4324
        %v4373 = vpop.f32.mrf.mxu0
        %v4374 = vadd.f32 0.0, %v4373
        %v4375 = vpop.f32.mrf.mxu0
        %v4376 = vadd.f32 0.0, %v4375
        %4377 = vmatmul.bf16.gmra.mxu0 %v4326
        %v4378 = vpop.f32.mrf.mxu0
        %v4379 = vadd.f32 0.0, %v4378
        %v4380 = vpop.f32.mrf.mxu0
        %v4381 = vadd.f32 0.0, %v4380
        %4382 = vmatmul.bf16.gmra.mxu0 %v4328
        %v4383 = vpop.f32.mrf.mxu0
        %v4384 = vadd.f32 0.0, %v4383
        %v4385 = vpop.f32.mrf.mxu0
        %v4386 = vadd.f32 0.0, %v4385
        %4387 = vmatmul.bf16.gmra.mxu0 %v4330
        %v4388 = vpop.f32.mrf.mxu0
        %v4389 = vadd.f32 0.0, %v4388
        %v4390 = vpop.f32.mrf.mxu0
        %v4391 = vadd.f32 0.0, %v4390
        %4392 = vmatmul.bf16.gmra.mxu0 %v4332
        %v4393 = vpop.f32.mrf.mxu0
        %v4394 = vadd.f32 0.0, %v4393
        %v4395 = vpop.f32.mrf.mxu0
        %v4396 = vadd.f32 0.0, %v4395
        %4397 = vmatmul.bf16.gmra.mxu0 %v4334
        %v4398 = vpop.f32.mrf.mxu0
        %v4399 = vadd.f32 0.0, %v4398
        %v4400 = vpop.f32.mrf.mxu0
        %v4401 = vadd.f32 0.0, %v4400
        %4402 = vmatmul.bf16.gmra.mxu0 %v4336
        %v4403 = vpop.f32.mrf.mxu0
        %v4404 = vadd.f32 0.0, %v4403
        %v4405 = vpop.f32.mrf.mxu0
        %v4406 = vadd.f32 0.0, %v4405
        %4407 = vmatmul.bf16.gmra.mxu0 %v4338
        %v4408 = vpop.f32.mrf.mxu0
        %v4409 = vadd.f32 0.0, %v4408
        %v4410 = vpop.f32.mrf.mxu0
        %v4411 = vadd.f32 0.0, %v4410
        %4412 = vdwg.mxu0
        %4413 = vmatpush.bf16.msra.mxu0 %v4355
        %4414 = vmatpush.bf16.msra.mxu0 %v4353
        %4415 = vmatpush.bf16.msra.mxu0 %v4351
        %4416 = vmatpush.bf16.msra.mxu0 %v4349
        %4417 = vmatpush.bf16.msra.mxu0 %v4347
        %4418 = vmatpush.bf16.msra.mxu0 %v4345
        %4419 = vmatpush.bf16.msra.mxu0 %v4343
        %4420 = vmatpush.bf16.msra.mxu0 %v4341
        %4421 = vmatmul.bf16.gmra.mxu0 %v4325
        %v4422 = vpop.f32.mrf.mxu0
        %v4423 = vadd.f32 %v4374, %v4422
        %v4424 = vpop.f32.mrf.mxu0
        %v4425 = vadd.f32 %v4376, %v4424
        %4426 = vmatmul.bf16.gmra.mxu0 %v4327
        %v4427 = vpop.f32.mrf.mxu0
        %v4428 = vadd.f32 %v4379, %v4427
        %v4429 = vpop.f32.mrf.mxu0
        %v4430 = vadd.f32 %v4381, %v4429
        %4431 = vmatmul.bf16.gmra.mxu0 %v4329
        %v4432 = vpop.f32.mrf.mxu0
        %v4433 = vadd.f32 %v4384, %v4432
        %v4434 = vpop.f32.mrf.mxu0
        %v4435 = vadd.f32 %v4386, %v4434
        %4436 = vmatmul.bf16.gmra.mxu0 %v4331
        %v4437 = vpop.f32.mrf.mxu0
        %v4438 = vadd.f32 %v4389, %v4437
        %v4439 = vpop.f32.mrf.mxu0
        %v4440 = vadd.f32 %v4391, %v4439
        %4441 = vmatmul.bf16.gmra.mxu0 %v4333
        %v4442 = vpop.f32.mrf.mxu0
        %v4443 = vadd.f32 %v4394, %v4442
        %v4444 = vpop.f32.mrf.mxu0
        %v4445 = vadd.f32 %v4396, %v4444
        %4446 = vmatmul.bf16.gmra.mxu0 %v4335
        %v4447 = vpop.f32.mrf.mxu0
        %v4448 = vadd.f32 %v4399, %v4447
        %v4449 = vpop.f32.mrf.mxu0
        %v4450 = vadd.f32 %v4401, %v4449
        %4451 = vmatmul.bf16.gmra.mxu0 %v4337
        %v4452 = vpop.f32.mrf.mxu0
        %v4453 = vadd.f32 %v4404, %v4452
        %v4454 = vpop.f32.mrf.mxu0
        %v4455 = vadd.f32 %v4406, %v4454
        %4456 = vmatmul.bf16.gmra.mxu0 %v4339
        %v4457 = vpop.f32.mrf.mxu0
        %v4458 = vadd.f32 %v4409, %v4457
        %v4459 = vpop.f32.mrf.mxu0
        %v4460 = vadd.f32 %v4411, %v4459
        %4461 = vdwg.mxu0
        %v4462 = vld [vmem:[#allocation2] sm:$0xff]
        %v4463 = vld [vmem:[#allocation2 + $0x8] sm:$0xff]
        %v4464 = vld [vmem:[#allocation2 + $0x10] sm:$0xff]
        %v4465 = vld [vmem:[#allocation2 + $0x18] sm:$0xff]
        %v4466 = vld [vmem:[#allocation2 + $0x20] sm:$0xff]
        %v4467 = vld [vmem:[#allocation2 + $0x28] sm:$0xff]
        %v4468 = vld [vmem:[#allocation2 + $0x30] sm:$0xff]
        %v4469 = vld [vmem:[#allocation2 + $0x38] sm:$0xff]
        %v4470 = vld [vmem:[#allocation2 + $0x40] sm:$0xff]
        %v4471 = vld [vmem:[#allocation2 + $0x48] sm:$0xff]
        %v4472 = vld [vmem:[#allocation2 + $0x50] sm:$0xff]
        %v4473 = vld [vmem:[#allocation2 + $0x58] sm:$0xff]
        %v4474 = vld [vmem:[#allocation2 + $0x60] sm:$0xff]
        %v4475 = vld [vmem:[#allocation2 + $0x68] sm:$0xff]
        %v4476 = vld [vmem:[#allocation2 + $0x70] sm:$0xff]
        %v4477 = vld [vmem:[#allocation2 + $0x78] sm:$0xff]
        %v4478 = vpack.c.bf16 %v4425, %v4423
        %v4479 = vpack.c.bf16 %v4430, %v4428
        %v4480 = vpack.c.bf16 %v4435, %v4433
        %v4481 = vpack.c.bf16 %v4440, %v4438
        %v4482 = vpack.c.bf16 %v4445, %v4443
        %v4483 = vpack.c.bf16 %v4450, %v4448
        %v4484 = vpack.c.bf16 %v4455, %v4453
        %v4485 = vpack.c.bf16 %v4460, %v4458
        %v4487 = vsel %vm932, %v4478, 0
        %v4490 = vsel %vm932, %v4479, 0
        %v4493 = vsel %vm932, %v4480, 0
        %v4496 = vsel %vm932, %v4481, 0
        %v4499 = vsel %vm932, %v4482, 0
        %v4502 = vsel %vm932, %v4483, 0
        %v4505 = vsel %vm932, %v4484, 0
        %v4508 = vsel %vm932, %v4485, 0
        %4510 = vmatpush.bf16.msra.mxu0 0
        %4511 = vmatpush.bf16.msra.mxu0 0
        %4512 = vmatpush.bf16.msra.mxu0 0
        %4513 = vmatpush.bf16.msra.mxu0 0
        %4514 = vmatpush.bf16.msra.mxu0 0
        %4515 = vmatpush.bf16.msra.mxu0 0
        %4516 = vmatpush.bf16.msra.mxu0 %v1855
        %4517 = vmatpush.bf16.msra.mxu0 %v1854
        %4518 = vmatmul.bf16.gmra.mxu0 %v4487
        %v4519 = vpop.f32.mrf.mxu0
        %v4520 = vadd.f32 0.0, %v4519
        %v4521 = vpop.f32.mrf.mxu0
        %v4522 = vadd.f32 0.0, %v4521
        %4523 = vmatmul.bf16.gmra.mxu0 %v4490
        %v4524 = vpop.f32.mrf.mxu0
        %v4525 = vadd.f32 0.0, %v4524
        %v4526 = vpop.f32.mrf.mxu0
        %v4527 = vadd.f32 0.0, %v4526
        %4528 = vmatmul.bf16.gmra.mxu0 %v4493
        %v4529 = vpop.f32.mrf.mxu0
        %v4530 = vadd.f32 0.0, %v4529
        %v4531 = vpop.f32.mrf.mxu0
        %v4532 = vadd.f32 0.0, %v4531
        %4533 = vmatmul.bf16.gmra.mxu0 %v4496
        %v4534 = vpop.f32.mrf.mxu0
        %v4535 = vadd.f32 0.0, %v4534
        %v4536 = vpop.f32.mrf.mxu0
        %v4537 = vadd.f32 0.0, %v4536
        %4538 = vmatmul.bf16.gmra.mxu0 %v4499
        %v4539 = vpop.f32.mrf.mxu0
        %v4540 = vadd.f32 0.0, %v4539
        %v4541 = vpop.f32.mrf.mxu0
        %v4542 = vadd.f32 0.0, %v4541
        %4543 = vmatmul.bf16.gmra.mxu0 %v4502
        %v4544 = vpop.f32.mrf.mxu0
        %v4545 = vadd.f32 0.0, %v4544
        %v4546 = vpop.f32.mrf.mxu0
        %v4547 = vadd.f32 0.0, %v4546
        %4548 = vmatmul.bf16.gmra.mxu0 %v4505
        %v4549 = vpop.f32.mrf.mxu0
        %v4550 = vadd.f32 0.0, %v4549
        %v4551 = vpop.f32.mrf.mxu0
        %v4552 = vadd.f32 0.0, %v4551
        %4553 = vmatmul.bf16.gmra.mxu0 %v4508
        %v4554 = vpop.f32.mrf.mxu0
        %v4555 = vadd.f32 0.0, %v4554
        %v4556 = vpop.f32.mrf.mxu0
        %v4557 = vadd.f32 0.0, %v4556
        %4558 = vdwg.mxu0
        %v4559 = vadd.f32 %v4462, %v4520
        %v4560 = vadd.f32 %v4463, %v4522
        %v4561 = vadd.f32 %v4464, %v4525
        %v4562 = vadd.f32 %v4465, %v4527
        %v4563 = vadd.f32 %v4466, %v4530
        %v4564 = vadd.f32 %v4467, %v4532
        %v4565 = vadd.f32 %v4468, %v4535
        %v4566 = vadd.f32 %v4469, %v4537
        %v4567 = vadd.f32 %v4470, %v4540
        %v4568 = vadd.f32 %v4471, %v4542
        %v4569 = vadd.f32 %v4472, %v4545
        %v4570 = vadd.f32 %v4473, %v4547
        %v4571 = vadd.f32 %v4474, %v4550
        %v4572 = vadd.f32 %v4475, %v4552
        %v4573 = vadd.f32 %v4476, %v4555
        %v4574 = vadd.f32 %v4477, %v4557
        %4575 = vst [vmem:[#allocation2] sm:$0xff] %v4559
        %4576 = vst [vmem:[#allocation2 + $0x8] sm:$0xff] %v4560
        %4577 = vst [vmem:[#allocation2 + $0x10] sm:$0xff] %v4561
        %4578 = vst [vmem:[#allocation2 + $0x18] sm:$0xff] %v4562
        %4579 = vst [vmem:[#allocation2 + $0x20] sm:$0xff] %v4563
        %4580 = vst [vmem:[#allocation2 + $0x28] sm:$0xff] %v4564
        %4581 = vst [vmem:[#allocation2 + $0x30] sm:$0xff] %v4565
        %4582 = vst [vmem:[#allocation2 + $0x38] sm:$0xff] %v4566
        %4583 = vst [vmem:[#allocation2 + $0x40] sm:$0xff] %v4567
        %4584 = vst [vmem:[#allocation2 + $0x48] sm:$0xff] %v4568
        %4585 = vst [vmem:[#allocation2 + $0x50] sm:$0xff] %v4569
        %4586 = vst [vmem:[#allocation2 + $0x58] sm:$0xff] %v4570
        %4587 = vst [vmem:[#allocation2 + $0x60] sm:$0xff] %v4571
        %4588 = vst [vmem:[#allocation2 + $0x68] sm:$0xff] %v4572
        %4589 = vst [vmem:[#allocation2 + $0x70] sm:$0xff] %v4573
        %4590 = vst [vmem:[#allocation2 + $0x78] sm:$0xff] %v4574
        %4591 = vrot.lane.b32.xlu0 %v3101, 64
        %v4592 = vpop.permute.xlu0 %4591
        %4593 = vrot.lane.b32.xlu0 %v3102, 64
        %v4594 = vpop.permute.xlu0 %4593
        %4595 = vrot.lane.b32.xlu0 %v3103, 64
        %v4596 = vpop.permute.xlu0 %4595
        %4597 = vrot.lane.b32.xlu0 %v3104, 64
        %v4598 = vpop.permute.xlu0 %4597
        %4599 = vrot.lane.b32.xlu0 %v3105, 64
        %v4600 = vpop.permute.xlu0 %4599
        %4601 = vrot.lane.b32.xlu0 %v3106, 64
        %v4602 = vpop.permute.xlu0 %4601
        %4603 = vrot.lane.b32.xlu0 %v3107, 64
        %v4604 = vpop.permute.xlu0 %4603
        %4605 = vrot.lane.b32.xlu0 %v3108, 64
        %v4606 = vpop.permute.xlu0 %4605
        %4607 = vrot.lane.b32.xlu0 %v3125, 64
        %v4608 = vpop.permute.xlu0 %4607
        %4609 = vrot.lane.b32.xlu0 %v3126, 64
        %v4610 = vpop.permute.xlu0 %4609
        %4611 = vrot.lane.b32.xlu0 %v3127, 64
        %v4612 = vpop.permute.xlu0 %4611
        %4613 = vrot.lane.b32.xlu0 %v3128, 64
        %v4614 = vpop.permute.xlu0 %4613
        %4615 = vrot.lane.b32.xlu0 %v3129, 64
        %v4616 = vpop.permute.xlu0 %4615
        %4617 = vrot.lane.b32.xlu0 %v3130, 64
        %v4618 = vpop.permute.xlu0 %4617
        %4619 = vrot.lane.b32.xlu0 %v3131, 64
        %v4620 = vpop.permute.xlu0 %4619
        %4621 = vrot.lane.b32.xlu0 %v3132, 64
        %v4622 = vpop.permute.xlu0 %4621
        %v4624 = vsel %vm932, %v4592, 0
        %v4627 = vsel %vm932, %v4594, 0
        %v4630 = vsel %vm932, %v4596, 0
        %v4633 = vsel %vm932, %v4598, 0
        %v4636 = vsel %vm932, %v4600, 0
        %v4639 = vsel %vm932, %v4602, 0
        %v4642 = vsel %vm932, %v4604, 0
        %v4645 = vsel %vm932, %v4606, 0
        %v4648 = vsel %vm932, %v4608, 0
        %v4651 = vsel %vm932, %v4610, 0
        %v4654 = vsel %vm932, %v4612, 0
        %v4657 = vsel %vm932, %v4614, 0
        %v4660 = vsel %vm932, %v4616, 0
        %v4663 = vsel %vm932, %v4618, 0
        %v4666 = vsel %vm932, %v4620, 0
        %v4669 = vsel %vm932, %v4622, 0
        %4671 = vmatpush.bf16.xpose.msra.mxu0 %v2041
        %4672 = vmatpush.bf16.xpose.msra.mxu0 %v2038
        %4673 = vmatpush.bf16.xpose.msra.mxu0 %v2035
        %4674 = vmatpush.bf16.xpose.msra.mxu0 %v2032
        %4675 = vmatpush.bf16.xpose.msra.mxu0 %v2029
        %4676 = vmatpush.bf16.xpose.msra.mxu0 %v2026
        %4677 = vmatpush.bf16.xpose.msra.mxu0 %v2023
        %4678 = vmatpush.bf16.xpose.msra.mxu0 %v2020
        %4679 = vmatmul.bf16.gmra.mxu0 %v4624
        %v4680 = vpop.f32.mrf.mxu0
        %v4681 = vadd.f32 0.0, %v4680
        %v4682 = vpop.f32.mrf.mxu0
        %v4683 = vadd.f32 0.0, %v4682
        %4684 = vmatmul.bf16.gmra.mxu0 %v4627
        %v4685 = vpop.f32.mrf.mxu0
        %v4686 = vadd.f32 0.0, %v4685
        %v4687 = vpop.f32.mrf.mxu0
        %v4688 = vadd.f32 0.0, %v4687
        %4689 = vmatmul.bf16.gmra.mxu0 %v4630
        %v4690 = vpop.f32.mrf.mxu0
        %v4691 = vadd.f32 0.0, %v4690
        %v4692 = vpop.f32.mrf.mxu0
        %v4693 = vadd.f32 0.0, %v4692
        %4694 = vmatmul.bf16.gmra.mxu0 %v4633
        %v4695 = vpop.f32.mrf.mxu0
        %v4696 = vadd.f32 0.0, %v4695
        %v4697 = vpop.f32.mrf.mxu0
        %v4698 = vadd.f32 0.0, %v4697
        %4699 = vmatmul.bf16.gmra.mxu0 %v4636
        %v4700 = vpop.f32.mrf.mxu0
        %v4701 = vadd.f32 0.0, %v4700
        %v4702 = vpop.f32.mrf.mxu0
        %v4703 = vadd.f32 0.0, %v4702
        %4704 = vmatmul.bf16.gmra.mxu0 %v4639
        %v4705 = vpop.f32.mrf.mxu0
        %v4706 = vadd.f32 0.0, %v4705
        %v4707 = vpop.f32.mrf.mxu0
        %v4708 = vadd.f32 0.0, %v4707
        %4709 = vmatmul.bf16.gmra.mxu0 %v4642
        %v4710 = vpop.f32.mrf.mxu0
        %v4711 = vadd.f32 0.0, %v4710
        %v4712 = vpop.f32.mrf.mxu0
        %v4713 = vadd.f32 0.0, %v4712
        %4714 = vmatmul.bf16.gmra.mxu0 %v4645
        %v4715 = vpop.f32.mrf.mxu0
        %v4716 = vadd.f32 0.0, %v4715
        %v4717 = vpop.f32.mrf.mxu0
        %v4718 = vadd.f32 0.0, %v4717
        %4719 = vdwg.mxu0
        %4720 = vmatpush.bf16.xpose.msra.mxu0 %v4669
        %4721 = vmatpush.bf16.xpose.msra.mxu0 %v4666
        %4722 = vmatpush.bf16.xpose.msra.mxu0 %v4663
        %4723 = vmatpush.bf16.xpose.msra.mxu0 %v4660
        %4724 = vmatpush.bf16.xpose.msra.mxu0 %v4657
        %4725 = vmatpush.bf16.xpose.msra.mxu0 %v4654
        %4726 = vmatpush.bf16.xpose.msra.mxu0 %v4651
        %4727 = vmatpush.bf16.xpose.msra.mxu0 %v4648
        %4728 = vmatmul.bf16.gmra.mxu0 %v4624
        %v4729 = vpop.f32.mrf.mxu0
        %v4730 = vadd.f32 0.0, %v4729
        %v4731 = vpop.f32.mrf.mxu0
        %v4732 = vadd.f32 0.0, %v4731
        %4733 = vmatmul.bf16.gmra.mxu0 %v4627
        %v4734 = vpop.f32.mrf.mxu0
        %v4735 = vadd.f32 0.0, %v4734
        %v4736 = vpop.f32.mrf.mxu0
        %v4737 = vadd.f32 0.0, %v4736
        %4738 = vmatmul.bf16.gmra.mxu0 %v4630
        %v4739 = vpop.f32.mrf.mxu0
        %v4740 = vadd.f32 0.0, %v4739
        %v4741 = vpop.f32.mrf.mxu0
        %v4742 = vadd.f32 0.0, %v4741
        %4743 = vmatmul.bf16.gmra.mxu0 %v4633
        %v4744 = vpop.f32.mrf.mxu0
        %v4745 = vadd.f32 0.0, %v4744
        %v4746 = vpop.f32.mrf.mxu0
        %v4747 = vadd.f32 0.0, %v4746
        %4748 = vmatmul.bf16.gmra.mxu0 %v4636
        %v4749 = vpop.f32.mrf.mxu0
        %v4750 = vadd.f32 0.0, %v4749
        %v4751 = vpop.f32.mrf.mxu0
        %v4752 = vadd.f32 0.0, %v4751
        %4753 = vmatmul.bf16.gmra.mxu0 %v4639
        %v4754 = vpop.f32.mrf.mxu0
        %v4755 = vadd.f32 0.0, %v4754
        %v4756 = vpop.f32.mrf.mxu0
        %v4757 = vadd.f32 0.0, %v4756
        %4758 = vmatmul.bf16.gmra.mxu0 %v4642
        %v4759 = vpop.f32.mrf.mxu0
        %v4760 = vadd.f32 0.0, %v4759
        %v4761 = vpop.f32.mrf.mxu0
        %v4762 = vadd.f32 0.0, %v4761
        %4763 = vmatmul.bf16.gmra.mxu0 %v4645
        %v4764 = vpop.f32.mrf.mxu0
        %v4765 = vadd.f32 0.0, %v4764
        %v4766 = vpop.f32.mrf.mxu0
        %v4767 = vadd.f32 0.0, %v4766
        %4768 = vdwg.mxu0
        %v4769 = vsel %vm3279, %v4681, -1e+30
        %v4770 = vsel %vm3280, %v4730, -1e+30
        %v4771 = vsel %vm3281, %v4683, -1e+30
        %v4772 = vsel %vm3282, %v4732, -1e+30
        %v4773 = vsel %vm3283, %v4686, -1e+30
        %v4774 = vsel %vm3284, %v4735, -1e+30
        %v4775 = vsel %vm3285, %v4688, -1e+30
        %v4776 = vsel %vm3286, %v4737, -1e+30
        %v4777 = vsel %vm3287, %v4691, -1e+30
        %v4778 = vsel %vm3288, %v4740, -1e+30
        %v4779 = vsel %vm3289, %v4693, -1e+30
        %v4780 = vsel %vm3290, %v4742, -1e+30
        %v4781 = vsel %vm3291, %v4696, -1e+30
        %v4782 = vsel %vm3292, %v4745, -1e+30
        %v4783 = vsel %vm3293, %v4698, -1e+30
        %v4784 = vsel %vm3294, %v4747, -1e+30
        %v4785 = vsel %vm3295, %v4701, -1e+30
        %v4786 = vsel %vm3296, %v4750, -1e+30
        %v4787 = vsel %vm3297, %v4703, -1e+30
        %v4788 = vsel %vm3298, %v4752, -1e+30
        %v4789 = vsel %vm3299, %v4706, -1e+30
        %v4790 = vsel %vm3300, %v4755, -1e+30
        %v4791 = vsel %vm3301, %v4708, -1e+30
        %v4792 = vsel %vm3302, %v4757, -1e+30
        %v4793 = vsel %vm3303, %v4711, -1e+30
        %v4794 = vsel %vm3304, %v4760, -1e+30
        %v4795 = vsel %vm3305, %v4713, -1e+30
        %v4796 = vsel %vm3306, %v4762, -1e+30
        %v4797 = vsel %vm3307, %v4716, -1e+30
        %v4798 = vsel %vm3308, %v4765, -1e+30
        %v4799 = vsel %vm3309, %v4718, -1e+30
        %v4800 = vsel %vm3310, %v4767, -1e+30
        %v4801 = vmax.f32 %v4769, %v4770
        %4802 = vmax.xlane.f32.xlu0 %v4801
        %v4803 = vpop.xlane.xlu0 %4802
        %v4804 = vmax.f32 %v4771, %v4772
        %4805 = vmax.xlane.f32.xlu0 %v4804
        %v4806 = vpop.xlane.xlu0 %4805
        %v4807 = vmax.f32 %v4773, %v4774
        %4808 = vmax.xlane.f32.xlu0 %v4807
        %v4809 = vpop.xlane.xlu0 %4808
        %v4810 = vmax.f32 %v4775, %v4776
        %4811 = vmax.xlane.f32.xlu0 %v4810
        %v4812 = vpop.xlane.xlu0 %4811
        %v4813 = vmax.f32 %v4777, %v4778
        %4814 = vmax.xlane.f32.xlu0 %v4813
        %v4815 = vpop.xlane.xlu0 %4814
        %v4816 = vmax.f32 %v4779, %v4780
        %4817 = vmax.xlane.f32.xlu0 %v4816
        %v4818 = vpop.xlane.xlu0 %4817
        %v4819 = vmax.f32 %v4781, %v4782
        %4820 = vmax.xlane.f32.xlu0 %v4819
        %v4821 = vpop.xlane.xlu0 %4820
        %v4822 = vmax.f32 %v4783, %v4784
        %4823 = vmax.xlane.f32.xlu0 %v4822
        %v4824 = vpop.xlane.xlu0 %4823
        %v4825 = vmax.f32 %v4785, %v4786
        %4826 = vmax.xlane.f32.xlu0 %v4825
        %v4827 = vpop.xlane.xlu0 %4826
        %v4828 = vmax.f32 %v4787, %v4788
        %4829 = vmax.xlane.f32.xlu0 %v4828
        %v4830 = vpop.xlane.xlu0 %4829
        %v4831 = vmax.f32 %v4789, %v4790
        %4832 = vmax.xlane.f32.xlu0 %v4831
        %v4833 = vpop.xlane.xlu0 %4832
        %v4834 = vmax.f32 %v4791, %v4792
        %4835 = vmax.xlane.f32.xlu0 %v4834
        %v4836 = vpop.xlane.xlu0 %4835
        %v4837 = vmax.f32 %v4793, %v4794
        %4838 = vmax.xlane.f32.xlu0 %v4837
        %v4839 = vpop.xlane.xlu0 %4838
        %v4840 = vmax.f32 %v4795, %v4796
        %4841 = vmax.xlane.f32.xlu0 %v4840
        %v4842 = vpop.xlane.xlu0 %4841
        %v4843 = vmax.f32 %v4797, %v4798
        %4844 = vmax.xlane.f32.xlu0 %v4843
        %v4845 = vpop.xlane.xlu0 %4844
        %v4846 = vmax.f32 %v4799, %v4800
        %4847 = vmax.xlane.f32.xlu0 %v4846
        %v4848 = vpop.xlane.xlu0 %4847
        %v4849 = vsub.f32 %v4769, %v4803
        %v4850 = vsub.f32 %v4770, %v4803
        %v4851 = vsub.f32 %v4771, %v4806
        %v4852 = vsub.f32 %v4772, %v4806
        %v4853 = vsub.f32 %v4773, %v4809
        %v4854 = vsub.f32 %v4774, %v4809
        %v4855 = vsub.f32 %v4775, %v4812
        %v4856 = vsub.f32 %v4776, %v4812
        %v4857 = vsub.f32 %v4777, %v4815
        %v4858 = vsub.f32 %v4778, %v4815
        %v4859 = vsub.f32 %v4779, %v4818
        %v4860 = vsub.f32 %v4780, %v4818
        %v4861 = vsub.f32 %v4781, %v4821
        %v4862 = vsub.f32 %v4782, %v4821
        %v4863 = vsub.f32 %v4783, %v4824
        %v4864 = vsub.f32 %v4784, %v4824
        %v4865 = vsub.f32 %v4785, %v4827
        %v4866 = vsub.f32 %v4786, %v4827
        %v4867 = vsub.f32 %v4787, %v4830
        %v4868 = vsub.f32 %v4788, %v4830
        %v4869 = vsub.f32 %v4789, %v4833
        %v4870 = vsub.f32 %v4790, %v4833
        %v4871 = vsub.f32 %v4791, %v4836
        %v4872 = vsub.f32 %v4792, %v4836
        %v4873 = vsub.f32 %v4793, %v4839
        %v4874 = vsub.f32 %v4794, %v4839
        %v4875 = vsub.f32 %v4795, %v4842
        %v4876 = vsub.f32 %v4796, %v4842
        %v4877 = vsub.f32 %v4797, %v4845
        %v4878 = vsub.f32 %v4798, %v4845
        %v4879 = vsub.f32 %v4799, %v4848
        %v4880 = vsub.f32 %v4800, %v4848
        %v4881 = vmul.f32 %v4849, 1.442695
        %v4882 = vpow.pop %v4881
        %v4883 = vmul.f32 %v4850, 1.442695
        %v4884 = vpow.pop %v4883
        %v4885 = vmul.f32 %v4851, 1.442695
        %v4886 = vpow.pop %v4885
        %v4887 = vmul.f32 %v4852, 1.442695
        %v4888 = vpow.pop %v4887
        %v4889 = vmul.f32 %v4853, 1.442695
        %v4890 = vpow.pop %v4889
        %v4891 = vmul.f32 %v4854, 1.442695
        %v4892 = vpow.pop %v4891
        %v4893 = vmul.f32 %v4855, 1.442695
        %v4894 = vpow.pop %v4893
        %v4895 = vmul.f32 %v4856, 1.442695
        %v4896 = vpow.pop %v4895
        %v4897 = vmul.f32 %v4857, 1.442695
        %v4898 = vpow.pop %v4897
        %v4899 = vmul.f32 %v4858, 1.442695
        %v4900 = vpow.pop %v4899
        %v4901 = vmul.f32 %v4859, 1.442695
        %v4902 = vpow.pop %v4901
        %v4903 = vmul.f32 %v4860, 1.442695
        %v4904 = vpow.pop %v4903
        %v4905 = vmul.f32 %v4861, 1.442695
        %v4906 = vpow.pop %v4905
        %v4907 = vmul.f32 %v4862, 1.442695
        %v4908 = vpow.pop %v4907
        %v4909 = vmul.f32 %v4863, 1.442695
        %v4910 = vpow.pop %v4909
        %v4911 = vmul.f32 %v4864, 1.442695
        %v4912 = vpow.pop %v4911
        %v4913 = vmul.f32 %v4865, 1.442695
        %v4914 = vpow.pop %v4913
        %v4915 = vmul.f32 %v4866, 1.442695
        %v4916 = vpow.pop %v4915
        %v4917 = vmul.f32 %v4867, 1.442695
        %v4918 = vpow.pop %v4917
        %v4919 = vmul.f32 %v4868, 1.442695
        %v4920 = vpow.pop %v4919
        %v4921 = vmul.f32 %v4869, 1.442695
        %v4922 = vpow.pop %v4921
        %v4923 = vmul.f32 %v4870, 1.442695
        %v4924 = vpow.pop %v4923
        %v4925 = vmul.f32 %v4871, 1.442695
        %v4926 = vpow.pop %v4925
        %v4927 = vmul.f32 %v4872, 1.442695
        %v4928 = vpow.pop %v4927
        %v4929 = vmul.f32 %v4873, 1.442695
        %v4930 = vpow.pop %v4929
        %v4931 = vmul.f32 %v4874, 1.442695
        %v4932 = vpow.pop %v4931
        %v4933 = vmul.f32 %v4875, 1.442695
        %v4934 = vpow.pop %v4933
        %v4935 = vmul.f32 %v4876, 1.442695
        %v4936 = vpow.pop %v4935
        %v4937 = vmul.f32 %v4877, 1.442695
        %v4938 = vpow.pop %v4937
        %v4939 = vmul.f32 %v4878, 1.442695
        %v4940 = vpow.pop %v4939
        %v4941 = vmul.f32 %v4879, 1.442695
        %v4942 = vpow.pop %v4941
        %v4943 = vmul.f32 %v4880, 1.442695
        %v4944 = vpow.pop %v4943
        %v4945 = vadd.f32 %v4882, %v4884
        %4946 = vadd.xlane.f32.xlu0 %v4945
        %v4947 = vpop.xlane.xlu0 %4946
        %v4948 = vadd.f32 %v4886, %v4888
        %4949 = vadd.xlane.f32.xlu0 %v4948
        %v4950 = vpop.xlane.xlu0 %4949
        %v4951 = vadd.f32 %v4890, %v4892
        %4952 = vadd.xlane.f32.xlu0 %v4951
        %v4953 = vpop.xlane.xlu0 %4952
        %v4954 = vadd.f32 %v4894, %v4896
        %4955 = vadd.xlane.f32.xlu0 %v4954
        %v4956 = vpop.xlane.xlu0 %4955
        %v4957 = vadd.f32 %v4898, %v4900
        %4958 = vadd.xlane.f32.xlu0 %v4957
        %v4959 = vpop.xlane.xlu0 %4958
        %v4960 = vadd.f32 %v4902, %v4904
        %4961 = vadd.xlane.f32.xlu0 %v4960
        %v4962 = vpop.xlane.xlu0 %4961
        %v4963 = vadd.f32 %v4906, %v4908
        %4964 = vadd.xlane.f32.xlu0 %v4963
        %v4965 = vpop.xlane.xlu0 %4964
        %v4966 = vadd.f32 %v4910, %v4912
        %4967 = vadd.xlane.f32.xlu0 %v4966
        %v4968 = vpop.xlane.xlu0 %4967
        %v4969 = vadd.f32 %v4914, %v4916
        %4970 = vadd.xlane.f32.xlu0 %v4969
        %v4971 = vpop.xlane.xlu0 %4970
        %v4972 = vadd.f32 %v4918, %v4920
        %4973 = vadd.xlane.f32.xlu0 %v4972
        %v4974 = vpop.xlane.xlu0 %4973
        %v4975 = vadd.f32 %v4922, %v4924
        %4976 = vadd.xlane.f32.xlu0 %v4975
        %v4977 = vpop.xlane.xlu0 %4976
        %v4978 = vadd.f32 %v4926, %v4928
        %4979 = vadd.xlane.f32.xlu0 %v4978
        %v4980 = vpop.xlane.xlu0 %4979
        %v4981 = vadd.f32 %v4930, %v4932
        %4982 = vadd.xlane.f32.xlu0 %v4981
        %v4983 = vpop.xlane.xlu0 %4982
        %v4984 = vadd.f32 %v4934, %v4936
        %4985 = vadd.xlane.f32.xlu0 %v4984
        %v4986 = vpop.xlane.xlu0 %4985
        %v4987 = vadd.f32 %v4938, %v4940
        %4988 = vadd.xlane.f32.xlu0 %v4987
        %v4989 = vpop.xlane.xlu0 %4988
        %v4990 = vadd.f32 %v4942, %v4944
        %4991 = vadd.xlane.f32.xlu0 %v4990
        %v4992 = vpop.xlane.xlu0 %4991
        %v4993 = vrcp.pop %v4947
        %v4994 = vrcp.pop %v4950
        %v4995 = vrcp.pop %v4953
        %v4996 = vrcp.pop %v4956
        %v4997 = vrcp.pop %v4959
        %v4998 = vrcp.pop %v4962
        %v4999 = vrcp.pop %v4965
        %v5000 = vrcp.pop %v4968
        %v5001 = vrcp.pop %v4971
        %v5002 = vrcp.pop %v4974
        %v5003 = vrcp.pop %v4977
        %v5004 = vrcp.pop %v4980
        %v5005 = vrcp.pop %v4983
        %v5006 = vrcp.pop %v4986
        %v5007 = vrcp.pop %v4989
        %v5008 = vrcp.pop %v4992
        %v5009 = vmul.f32 %v4882, %v4993
        %v5010 = vmul.f32 %v4884, %v4993
        %v5011 = vmul.f32 %v4886, %v4994
        %v5012 = vmul.f32 %v4888, %v4994
        %v5013 = vmul.f32 %v4890, %v4995
        %v5014 = vmul.f32 %v4892, %v4995
        %v5015 = vmul.f32 %v4894, %v4996
        %v5016 = vmul.f32 %v4896, %v4996
        %v5017 = vmul.f32 %v4898, %v4997
        %v5018 = vmul.f32 %v4900, %v4997
        %v5019 = vmul.f32 %v4902, %v4998
        %v5020 = vmul.f32 %v4904, %v4998
        %v5021 = vmul.f32 %v4906, %v4999
        %v5022 = vmul.f32 %v4908, %v4999
        %v5023 = vmul.f32 %v4910, %v5000
        %v5024 = vmul.f32 %v4912, %v5000
        %v5025 = vmul.f32 %v4914, %v5001
        %v5026 = vmul.f32 %v4916, %v5001
        %v5027 = vmul.f32 %v4918, %v5002
        %v5028 = vmul.f32 %v4920, %v5002
        %v5029 = vmul.f32 %v4922, %v5003
        %v5030 = vmul.f32 %v4924, %v5003
        %v5031 = vmul.f32 %v4926, %v5004
        %v5032 = vmul.f32 %v4928, %v5004
        %v5033 = vmul.f32 %v4930, %v5005
        %v5034 = vmul.f32 %v4932, %v5005
        %v5035 = vmul.f32 %v4934, %v5006
        %v5036 = vmul.f32 %v4936, %v5006
        %v5037 = vmul.f32 %v4938, %v5007
        %v5038 = vmul.f32 %v4940, %v5007
        %v5039 = vmul.f32 %v4942, %v5008
        %v5040 = vmul.f32 %v4944, %v5008
        %v5041 = vpack.c.bf16 %v5011, %v5009
        %v5042 = vpack.c.bf16 %v5012, %v5010
        %v5043 = vpack.c.bf16 %v5015, %v5013
        %v5044 = vpack.c.bf16 %v5016, %v5014
        %v5045 = vpack.c.bf16 %v5019, %v5017
        %v5046 = vpack.c.bf16 %v5020, %v5018
        %v5047 = vpack.c.bf16 %v5023, %v5021
        %v5048 = vpack.c.bf16 %v5024, %v5022
        %v5049 = vpack.c.bf16 %v5027, %v5025
        %v5050 = vpack.c.bf16 %v5028, %v5026
        %v5051 = vpack.c.bf16 %v5031, %v5029
        %v5052 = vpack.c.bf16 %v5032, %v5030
        %v5053 = vpack.c.bf16 %v5035, %v5033
        %v5054 = vpack.c.bf16 %v5036, %v5034
        %v5055 = vpack.c.bf16 %v5039, %v5037
        %v5056 = vpack.c.bf16 %v5040, %v5038
        %5057 = vrot.lane.b32.xlu0 %v3631, 64
        %v5058 = vpop.permute.xlu0 %5057
        %5059 = vrot.lane.b32.xlu0 %v3632, 64
        %v5060 = vpop.permute.xlu0 %5059
        %5061 = vrot.lane.b32.xlu0 %v3633, 64
        %v5062 = vpop.permute.xlu0 %5061
        %5063 = vrot.lane.b32.xlu0 %v3634, 64
        %v5064 = vpop.permute.xlu0 %5063
        %5065 = vrot.lane.b32.xlu0 %v3635, 64
        %v5066 = vpop.permute.xlu0 %5065
        %5067 = vrot.lane.b32.xlu0 %v3636, 64
        %v5068 = vpop.permute.xlu0 %5067
        %5069 = vrot.lane.b32.xlu0 %v3637, 64
        %v5070 = vpop.permute.xlu0 %5069
        %5071 = vrot.lane.b32.xlu0 %v3638, 64
        %v5072 = vpop.permute.xlu0 %5071
        %5081 = vmatpush.bf16.msra.mxu0 %v2275
        %5082 = vmatpush.bf16.msra.mxu0 %v2273
        %5083 = vmatpush.bf16.msra.mxu0 %v2271
        %5084 = vmatpush.bf16.msra.mxu0 %v2269
        %5085 = vmatpush.bf16.msra.mxu0 %v2267
        %5086 = vmatpush.bf16.msra.mxu0 %v2265
        %5087 = vmatpush.bf16.msra.mxu0 %v2263
        %5088 = vmatpush.bf16.msra.mxu0 %v2261
        %5089 = vmatmul.bf16.gmra.mxu0 %v5041
        %v5090 = vpop.f32.mrf.mxu0
        %v5091 = vadd.f32 0.0, %v5090
        %v5092 = vpop.f32.mrf.mxu0
        %v5093 = vadd.f32 0.0, %v5092
        %5094 = vmatmul.bf16.gmra.mxu0 %v5043
        %v5095 = vpop.f32.mrf.mxu0
        %v5096 = vadd.f32 0.0, %v5095
        %v5097 = vpop.f32.mrf.mxu0
        %v5098 = vadd.f32 0.0, %v5097
        %5099 = vmatmul.bf16.gmra.mxu0 %v5045
        %v5100 = vpop.f32.mrf.mxu0
        %v5101 = vadd.f32 0.0, %v5100
        %v5102 = vpop.f32.mrf.mxu0
        %v5103 = vadd.f32 0.0, %v5102
        %5104 = vmatmul.bf16.gmra.mxu0 %v5047
        %v5105 = vpop.f32.mrf.mxu0
        %v5106 = vadd.f32 0.0, %v5105
        %v5107 = vpop.f32.mrf.mxu0
        %v5108 = vadd.f32 0.0, %v5107
        %5109 = vmatmul.bf16.gmra.mxu0 %v5049
        %v5110 = vpop.f32.mrf.mxu0
        %v5111 = vadd.f32 0.0, %v5110
        %v5112 = vpop.f32.mrf.mxu0
        %v5113 = vadd.f32 0.0, %v5112
        %5114 = vmatmul.bf16.gmra.mxu0 %v5051
        %v5115 = vpop.f32.mrf.mxu0
        %v5116 = vadd.f32 0.0, %v5115
        %v5117 = vpop.f32.mrf.mxu0
        %v5118 = vadd.f32 0.0, %v5117
        %5119 = vmatmul.bf16.gmra.mxu0 %v5053
        %v5120 = vpop.f32.mrf.mxu0
        %v5121 = vadd.f32 0.0, %v5120
        %v5122 = vpop.f32.mrf.mxu0
        %v5123 = vadd.f32 0.0, %v5122
        %5124 = vmatmul.bf16.gmra.mxu0 %v5055
        %v5125 = vpop.f32.mrf.mxu0
        %v5126 = vadd.f32 0.0, %v5125
        %v5127 = vpop.f32.mrf.mxu0
        %v5128 = vadd.f32 0.0, %v5127
        %5129 = vdwg.mxu0
        %5130 = vmatpush.bf16.msra.mxu0 %v5072
        %5131 = vmatpush.bf16.msra.mxu0 %v5070
        %5132 = vmatpush.bf16.msra.mxu0 %v5068
        %5133 = vmatpush.bf16.msra.mxu0 %v5066
        %5134 = vmatpush.bf16.msra.mxu0 %v5064
        %5135 = vmatpush.bf16.msra.mxu0 %v5062
        %5136 = vmatpush.bf16.msra.mxu0 %v5060
        %5137 = vmatpush.bf16.msra.mxu0 %v5058
        %5138 = vmatmul.bf16.gmra.mxu0 %v5042
        %v5139 = vpop.f32.mrf.mxu0
        %v5140 = vadd.f32 %v5091, %v5139
        %v5141 = vpop.f32.mrf.mxu0
        %v5142 = vadd.f32 %v5093, %v5141
        %5143 = vmatmul.bf16.gmra.mxu0 %v5044
        %v5144 = vpop.f32.mrf.mxu0
        %v5145 = vadd.f32 %v5096, %v5144
        %v5146 = vpop.f32.mrf.mxu0
        %v5147 = vadd.f32 %v5098, %v5146
        %5148 = vmatmul.bf16.gmra.mxu0 %v5046
        %v5149 = vpop.f32.mrf.mxu0
        %v5150 = vadd.f32 %v5101, %v5149
        %v5151 = vpop.f32.mrf.mxu0
        %v5152 = vadd.f32 %v5103, %v5151
        %5153 = vmatmul.bf16.gmra.mxu0 %v5048
        %v5154 = vpop.f32.mrf.mxu0
        %v5155 = vadd.f32 %v5106, %v5154
        %v5156 = vpop.f32.mrf.mxu0
        %v5157 = vadd.f32 %v5108, %v5156
        %5158 = vmatmul.bf16.gmra.mxu0 %v5050
        %v5159 = vpop.f32.mrf.mxu0
        %v5160 = vadd.f32 %v5111, %v5159
        %v5161 = vpop.f32.mrf.mxu0
        %v5162 = vadd.f32 %v5113, %v5161
        %5163 = vmatmul.bf16.gmra.mxu0 %v5052
        %v5164 = vpop.f32.mrf.mxu0
        %v5165 = vadd.f32 %v5116, %v5164
        %v5166 = vpop.f32.mrf.mxu0
        %v5167 = vadd.f32 %v5118, %v5166
        %5168 = vmatmul.bf16.gmra.mxu0 %v5054
        %v5169 = vpop.f32.mrf.mxu0
        %v5170 = vadd.f32 %v5121, %v5169
        %v5171 = vpop.f32.mrf.mxu0
        %v5172 = vadd.f32 %v5123, %v5171
        %5173 = vmatmul.bf16.gmra.mxu0 %v5056
        %v5174 = vpop.f32.mrf.mxu0
        %v5175 = vadd.f32 %v5126, %v5174
        %v5176 = vpop.f32.mrf.mxu0
        %v5177 = vadd.f32 %v5128, %v5176
        %5178 = vdwg.mxu0
        %v5179 = vld [vmem:[#allocation2] sm:$0xff]
        %v5180 = vld [vmem:[#allocation2 + $0x8] sm:$0xff]
        %v5181 = vld [vmem:[#allocation2 + $0x10] sm:$0xff]
        %v5182 = vld [vmem:[#allocation2 + $0x18] sm:$0xff]
        %v5183 = vld [vmem:[#allocation2 + $0x20] sm:$0xff]
        %v5184 = vld [vmem:[#allocation2 + $0x28] sm:$0xff]
        %v5185 = vld [vmem:[#allocation2 + $0x30] sm:$0xff]
        %v5186 = vld [vmem:[#allocation2 + $0x38] sm:$0xff]
        %v5187 = vld [vmem:[#allocation2 + $0x40] sm:$0xff]
        %v5188 = vld [vmem:[#allocation2 + $0x48] sm:$0xff]
        %v5189 = vld [vmem:[#allocation2 + $0x50] sm:$0xff]
        %v5190 = vld [vmem:[#allocation2 + $0x58] sm:$0xff]
        %v5191 = vld [vmem:[#allocation2 + $0x60] sm:$0xff]
        %v5192 = vld [vmem:[#allocation2 + $0x68] sm:$0xff]
        %v5193 = vld [vmem:[#allocation2 + $0x70] sm:$0xff]
        %v5194 = vld [vmem:[#allocation2 + $0x78] sm:$0xff]
        %v5195 = vpack.c.bf16 %v5142, %v5140
        %v5196 = vpack.c.bf16 %v5147, %v5145
        %v5197 = vpack.c.bf16 %v5152, %v5150
        %v5198 = vpack.c.bf16 %v5157, %v5155
        %v5199 = vpack.c.bf16 %v5162, %v5160
        %v5200 = vpack.c.bf16 %v5167, %v5165
        %v5201 = vpack.c.bf16 %v5172, %v5170
        %v5202 = vpack.c.bf16 %v5177, %v5175
        %v5204 = vsel %vm932, %v5195, 0
        %v5207 = vsel %vm932, %v5196, 0
        %v5210 = vsel %vm932, %v5197, 0
        %v5213 = vsel %vm932, %v5198, 0
        %v5216 = vsel %vm932, %v5199, 0
        %v5219 = vsel %vm932, %v5200, 0
        %v5222 = vsel %vm932, %v5201, 0
        %v5225 = vsel %vm932, %v5202, 0
        %5227 = vmatpush.bf16.msra.mxu0 0
        %5228 = vmatpush.bf16.msra.mxu0 0
        %5229 = vmatpush.bf16.msra.mxu0 0
        %5230 = vmatpush.bf16.msra.mxu0 0
        %5231 = vmatpush.bf16.msra.mxu0 0
        %5232 = vmatpush.bf16.msra.mxu0 0
        %5233 = vmatpush.bf16.msra.mxu0 %v2366
        %5234 = vmatpush.bf16.msra.mxu0 %v2365
        %5235 = vmatmul.bf16.gmra.mxu0 %v5204
        %v5236 = vpop.f32.mrf.mxu0
        %v5237 = vadd.f32 0.0, %v5236
        %v5238 = vpop.f32.mrf.mxu0
        %v5239 = vadd.f32 0.0, %v5238
        %5240 = vmatmul.bf16.gmra.mxu0 %v5207
        %v5241 = vpop.f32.mrf.mxu0
        %v5242 = vadd.f32 0.0, %v5241
        %v5243 = vpop.f32.mrf.mxu0
        %v5244 = vadd.f32 0.0, %v5243
        %5245 = vmatmul.bf16.gmra.mxu0 %v5210
        %v5246 = vpop.f32.mrf.mxu0
        %v5247 = vadd.f32 0.0, %v5246
        %v5248 = vpop.f32.mrf.mxu0
        %v5249 = vadd.f32 0.0, %v5248
        %5250 = vmatmul.bf16.gmra.mxu0 %v5213
        %v5251 = vpop.f32.mrf.mxu0
        %v5252 = vadd.f32 0.0, %v5251
        %v5253 = vpop.f32.mrf.mxu0
        %v5254 = vadd.f32 0.0, %v5253
        %5255 = vmatmul.bf16.gmra.mxu0 %v5216
        %v5256 = vpop.f32.mrf.mxu0
        %v5257 = vadd.f32 0.0, %v5256
        %v5258 = vpop.f32.mrf.mxu0
        %v5259 = vadd.f32 0.0, %v5258
        %5260 = vmatmul.bf16.gmra.mxu0 %v5219
        %v5261 = vpop.f32.mrf.mxu0
        %v5262 = vadd.f32 0.0, %v5261
        %v5263 = vpop.f32.mrf.mxu0
        %v5264 = vadd.f32 0.0, %v5263
        %5265 = vmatmul.bf16.gmra.mxu0 %v5222
        %v5266 = vpop.f32.mrf.mxu0
        %v5267 = vadd.f32 0.0, %v5266
        %v5268 = vpop.f32.mrf.mxu0
        %v5269 = vadd.f32 0.0, %v5268
        %5270 = vmatmul.bf16.gmra.mxu0 %v5225
        %v5271 = vpop.f32.mrf.mxu0
        %v5272 = vadd.f32 0.0, %v5271
        %v5273 = vpop.f32.mrf.mxu0
        %v5274 = vadd.f32 0.0, %v5273
        %5275 = vdwg.mxu0
        %v5276 = vadd.f32 %v5179, %v5237
        %v5277 = vadd.f32 %v5180, %v5239
        %v5278 = vadd.f32 %v5181, %v5242
        %v5279 = vadd.f32 %v5182, %v5244
        %v5280 = vadd.f32 %v5183, %v5247
        %v5281 = vadd.f32 %v5184, %v5249
        %v5282 = vadd.f32 %v5185, %v5252
        %v5283 = vadd.f32 %v5186, %v5254
        %v5284 = vadd.f32 %v5187, %v5257
        %v5285 = vadd.f32 %v5188, %v5259
        %v5286 = vadd.f32 %v5189, %v5262
        %v5287 = vadd.f32 %v5190, %v5264
        %v5288 = vadd.f32 %v5191, %v5267
        %v5289 = vadd.f32 %v5192, %v5269
        %v5290 = vadd.f32 %v5193, %v5272
        %v5291 = vadd.f32 %v5194, %v5274
        %5292 = vst [vmem:[#allocation2] sm:$0xff] %v5276
        %5293 = vst [vmem:[#allocation2 + $0x8] sm:$0xff] %v5277
        %5294 = vst [vmem:[#allocation2 + $0x10] sm:$0xff] %v5278
        %5295 = vst [vmem:[#allocation2 + $0x18] sm:$0xff] %v5279
        %5296 = vst [vmem:[#allocation2 + $0x20] sm:$0xff] %v5280
        %5297 = vst [vmem:[#allocation2 + $0x28] sm:$0xff] %v5281
        %5298 = vst [vmem:[#allocation2 + $0x30] sm:$0xff] %v5282
        %5299 = vst [vmem:[#allocation2 + $0x38] sm:$0xff] %v5283
        %5300 = vst [vmem:[#allocation2 + $0x40] sm:$0xff] %v5284
        %5301 = vst [vmem:[#allocation2 + $0x48] sm:$0xff] %v5285
        %5302 = vst [vmem:[#allocation2 + $0x50] sm:$0xff] %v5286
        %5303 = vst [vmem:[#allocation2 + $0x58] sm:$0xff] %v5287
        %5304 = vst [vmem:[#allocation2 + $0x60] sm:$0xff] %v5288
        %5305 = vst [vmem:[#allocation2 + $0x68] sm:$0xff] %v5289
        %5306 = vst [vmem:[#allocation2 + $0x70] sm:$0xff] %v5290
        %5307 = vst [vmem:[#allocation2 + $0x78] sm:$0xff] %v5291
        %5308 = vrot.lane.b32.xlu0 %v3101, 32
        %v5309 = vpop.permute.xlu0 %5308
        %5310 = vrot.lane.b32.xlu0 %v3102, 32
        %v5311 = vpop.permute.xlu0 %5310
        %5312 = vrot.lane.b32.xlu0 %v3103, 32
        %v5313 = vpop.permute.xlu0 %5312
        %5314 = vrot.lane.b32.xlu0 %v3104, 32
        %v5315 = vpop.permute.xlu0 %5314
        %5316 = vrot.lane.b32.xlu0 %v3105, 32
        %v5317 = vpop.permute.xlu0 %5316
        %5318 = vrot.lane.b32.xlu0 %v3106, 32
        %v5319 = vpop.permute.xlu0 %5318
        %5320 = vrot.lane.b32.xlu0 %v3107, 32
        %v5321 = vpop.permute.xlu0 %5320
        %5322 = vrot.lane.b32.xlu0 %v3108, 32
        %v5323 = vpop.permute.xlu0 %5322
        %5324 = vrot.lane.b32.xlu0 %v3125, 32
        %v5325 = vpop.permute.xlu0 %5324
        %5326 = vrot.lane.b32.xlu0 %v3126, 32
        %v5327 = vpop.permute.xlu0 %5326
        %5328 = vrot.lane.b32.xlu0 %v3127, 32
        %v5329 = vpop.permute.xlu0 %5328
        %5330 = vrot.lane.b32.xlu0 %v3128, 32
        %v5331 = vpop.permute.xlu0 %5330
        %5332 = vrot.lane.b32.xlu0 %v3129, 32
        %v5333 = vpop.permute.xlu0 %5332
        %5334 = vrot.lane.b32.xlu0 %v3130, 32
        %v5335 = vpop.permute.xlu0 %5334
        %5336 = vrot.lane.b32.xlu0 %v3131, 32
        %v5337 = vpop.permute.xlu0 %5336
        %5338 = vrot.lane.b32.xlu0 %v3132, 32
        %v5339 = vpop.permute.xlu0 %5338
        %v5341 = vsel %vm932, %v5309, 0
        %v5344 = vsel %vm932, %v5311, 0
        %v5347 = vsel %vm932, %v5313, 0
        %v5350 = vsel %vm932, %v5315, 0
        %v5353 = vsel %vm932, %v5317, 0
        %v5356 = vsel %vm932, %v5319, 0
        %v5359 = vsel %vm932, %v5321, 0
        %v5362 = vsel %vm932, %v5323, 0
        %v5365 = vsel %vm932, %v5325, 0
        %v5368 = vsel %vm932, %v5327, 0
        %v5371 = vsel %vm932, %v5329, 0
        %v5374 = vsel %vm932, %v5331, 0
        %v5377 = vsel %vm932, %v5333, 0
        %v5380 = vsel %vm932, %v5335, 0
        %v5383 = vsel %vm932, %v5337, 0
        %v5386 = vsel %vm932, %v5339, 0
        %5388 = vmatpush.bf16.xpose.msra.mxu0 %v2552
        %5389 = vmatpush.bf16.xpose.msra.mxu0 %v2549
        %5390 = vmatpush.bf16.xpose.msra.mxu0 %v2546
        %5391 = vmatpush.bf16.xpose.msra.mxu0 %v2543
        %5392 = vmatpush.bf16.xpose.msra.mxu0 %v2540
        %5393 = vmatpush.bf16.xpose.msra.mxu0 %v2537
        %5394 = vmatpush.bf16.xpose.msra.mxu0 %v2534
        %5395 = vmatpush.bf16.xpose.msra.mxu0 %v2531
        %5396 = vmatmul.bf16.gmra.mxu0 %v5341
        %v5397 = vpop.f32.mrf.mxu0
        %v5398 = vadd.f32 0.0, %v5397
        %v5399 = vpop.f32.mrf.mxu0
        %v5400 = vadd.f32 0.0, %v5399
        %5401 = vmatmul.bf16.gmra.mxu0 %v5344
        %v5402 = vpop.f32.mrf.mxu0
        %v5403 = vadd.f32 0.0, %v5402
        %v5404 = vpop.f32.mrf.mxu0
        %v5405 = vadd.f32 0.0, %v5404
        %5406 = vmatmul.bf16.gmra.mxu0 %v5347
        %v5407 = vpop.f32.mrf.mxu0
        %v5408 = vadd.f32 0.0, %v5407
        %v5409 = vpop.f32.mrf.mxu0
        %v5410 = vadd.f32 0.0, %v5409
        %5411 = vmatmul.bf16.gmra.mxu0 %v5350
        %v5412 = vpop.f32.mrf.mxu0
        %v5413 = vadd.f32 0.0, %v5412
        %v5414 = vpop.f32.mrf.mxu0
        %v5415 = vadd.f32 0.0, %v5414
        %5416 = vmatmul.bf16.gmra.mxu0 %v5353
        %v5417 = vpop.f32.mrf.mxu0
        %v5418 = vadd.f32 0.0, %v5417
        %v5419 = vpop.f32.mrf.mxu0
        %v5420 = vadd.f32 0.0, %v5419
        %5421 = vmatmul.bf16.gmra.mxu0 %v5356
        %v5422 = vpop.f32.mrf.mxu0
        %v5423 = vadd.f32 0.0, %v5422
        %v5424 = vpop.f32.mrf.mxu0
        %v5425 = vadd.f32 0.0, %v5424
        %5426 = vmatmul.bf16.gmra.mxu0 %v5359
        %v5427 = vpop.f32.mrf.mxu0
        %v5428 = vadd.f32 0.0, %v5427
        %v5429 = vpop.f32.mrf.mxu0
        %v5430 = vadd.f32 0.0, %v5429
        %5431 = vmatmul.bf16.gmra.mxu0 %v5362
        %v5432 = vpop.f32.mrf.mxu0
        %v5433 = vadd.f32 0.0, %v5432
        %v5434 = vpop.f32.mrf.mxu0
        %v5435 = vadd.f32 0.0, %v5434
        %5436 = vdwg.mxu0
        %5437 = vmatpush.bf16.xpose.msra.mxu0 %v5386
        %5438 = vmatpush.bf16.xpose.msra.mxu0 %v5383
        %5439 = vmatpush.bf16.xpose.msra.mxu0 %v5380
        %5440 = vmatpush.bf16.xpose.msra.mxu0 %v5377
        %5441 = vmatpush.bf16.xpose.msra.mxu0 %v5374
        %5442 = vmatpush.bf16.xpose.msra.mxu0 %v5371
        %5443 = vmatpush.bf16.xpose.msra.mxu0 %v5368
        %5444 = vmatpush.bf16.xpose.msra.mxu0 %v5365
        %5445 = vmatmul.bf16.gmra.mxu0 %v5341
        %v5446 = vpop.f32.mrf.mxu0
        %v5447 = vadd.f32 0.0, %v5446
        %v5448 = vpop.f32.mrf.mxu0
        %v5449 = vadd.f32 0.0, %v5448
        %5450 = vmatmul.bf16.gmra.mxu0 %v5344
        %v5451 = vpop.f32.mrf.mxu0
        %v5452 = vadd.f32 0.0, %v5451
        %v5453 = vpop.f32.mrf.mxu0
        %v5454 = vadd.f32 0.0, %v5453
        %5455 = vmatmul.bf16.gmra.mxu0 %v5347
        %v5456 = vpop.f32.mrf.mxu0
        %v5457 = vadd.f32 0.0, %v5456
        %v5458 = vpop.f32.mrf.mxu0
        %v5459 = vadd.f32 0.0, %v5458
        %5460 = vmatmul.bf16.gmra.mxu0 %v5350
        %v5461 = vpop.f32.mrf.mxu0
        %v5462 = vadd.f32 0.0, %v5461
        %v5463 = vpop.f32.mrf.mxu0
        %v5464 = vadd.f32 0.0, %v5463
        %5465 = vmatmul.bf16.gmra.mxu0 %v5353
        %v5466 = vpop.f32.mrf.mxu0
        %v5467 = vadd.f32 0.0, %v5466
        %v5468 = vpop.f32.mrf.mxu0
        %v5469 = vadd.f32 0.0, %v5468
        %5470 = vmatmul.bf16.gmra.mxu0 %v5356
        %v5471 = vpop.f32.mrf.mxu0
        %v5472 = vadd.f32 0.0, %v5471
        %v5473 = vpop.f32.mrf.mxu0
        %v5474 = vadd.f32 0.0, %v5473
        %5475 = vmatmul.bf16.gmra.mxu0 %v5359
        %v5476 = vpop.f32.mrf.mxu0
        %v5477 = vadd.f32 0.0, %v5476
        %v5478 = vpop.f32.mrf.mxu0
        %v5479 = vadd.f32 0.0, %v5478
        %5480 = vmatmul.bf16.gmra.mxu0 %v5362
        %v5481 = vpop.f32.mrf.mxu0
        %v5482 = vadd.f32 0.0, %v5481
        %v5483 = vpop.f32.mrf.mxu0
        %v5484 = vadd.f32 0.0, %v5483
        %5485 = vdwg.mxu0
        %v5486 = vsel %vm3279, %v5398, -1e+30
        %v5487 = vsel %vm3280, %v5447, -1e+30
        %v5488 = vsel %vm3281, %v5400, -1e+30
        %v5489 = vsel %vm3282, %v5449, -1e+30
        %v5490 = vsel %vm3283, %v5403, -1e+30
        %v5491 = vsel %vm3284, %v5452, -1e+30
        %v5492 = vsel %vm3285, %v5405, -1e+30
        %v5493 = vsel %vm3286, %v5454, -1e+30
        %v5494 = vsel %vm3287, %v5408, -1e+30
        %v5495 = vsel %vm3288, %v5457, -1e+30
        %v5496 = vsel %vm3289, %v5410, -1e+30
        %v5497 = vsel %vm3290, %v5459, -1e+30
        %v5498 = vsel %vm3291, %v5413, -1e+30
        %v5499 = vsel %vm3292, %v5462, -1e+30
        %v5500 = vsel %vm3293, %v5415, -1e+30
        %v5501 = vsel %vm3294, %v5464, -1e+30
        %v5502 = vsel %vm3295, %v5418, -1e+30
        %v5503 = vsel %vm3296, %v5467, -1e+30
        %v5504 = vsel %vm3297, %v5420, -1e+30
        %v5505 = vsel %vm3298, %v5469, -1e+30
        %v5506 = vsel %vm3299, %v5423, -1e+30
        %v5507 = vsel %vm3300, %v5472, -1e+30
        %v5508 = vsel %vm3301, %v5425, -1e+30
        %v5509 = vsel %vm3302, %v5474, -1e+30
        %v5510 = vsel %vm3303, %v5428, -1e+30
        %v5511 = vsel %vm3304, %v5477, -1e+30
        %v5512 = vsel %vm3305, %v5430, -1e+30
        %v5513 = vsel %vm3306, %v5479, -1e+30
        %v5514 = vsel %vm3307, %v5433, -1e+30
        %v5515 = vsel %vm3308, %v5482, -1e+30
        %v5516 = vsel %vm3309, %v5435, -1e+30
        %v5517 = vsel %vm3310, %v5484, -1e+30
        %v5518 = vmax.f32 %v5486, %v5487
        %5519 = vmax.xlane.f32.xlu0 %v5518
        %v5520 = vpop.xlane.xlu0 %5519
        %v5521 = vmax.f32 %v5488, %v5489
        %5522 = vmax.xlane.f32.xlu0 %v5521
        %v5523 = vpop.xlane.xlu0 %5522
        %v5524 = vmax.f32 %v5490, %v5491
        %5525 = vmax.xlane.f32.xlu0 %v5524
        %v5526 = vpop.xlane.xlu0 %5525
        %v5527 = vmax.f32 %v5492, %v5493
        %5528 = vmax.xlane.f32.xlu0 %v5527
        %v5529 = vpop.xlane.xlu0 %5528
        %v5530 = vmax.f32 %v5494, %v5495
        %5531 = vmax.xlane.f32.xlu0 %v5530
        %v5532 = vpop.xlane.xlu0 %5531
        %v5533 = vmax.f32 %v5496, %v5497
        %5534 = vmax.xlane.f32.xlu0 %v5533
        %v5535 = vpop.xlane.xlu0 %5534
        %v5536 = vmax.f32 %v5498, %v5499
        %5537 = vmax.xlane.f32.xlu0 %v5536
        %v5538 = vpop.xlane.xlu0 %5537
        %v5539 = vmax.f32 %v5500, %v5501
        %5540 = vmax.xlane.f32.xlu0 %v5539
        %v5541 = vpop.xlane.xlu0 %5540
        %v5542 = vmax.f32 %v5502, %v5503
        %5543 = vmax.xlane.f32.xlu0 %v5542
        %v5544 = vpop.xlane.xlu0 %5543
        %v5545 = vmax.f32 %v5504, %v5505
        %5546 = vmax.xlane.f32.xlu0 %v5545
        %v5547 = vpop.xlane.xlu0 %5546
        %v5548 = vmax.f32 %v5506, %v5507
        %5549 = vmax.xlane.f32.xlu0 %v5548
        %v5550 = vpop.xlane.xlu0 %5549
        %v5551 = vmax.f32 %v5508, %v5509
        %5552 = vmax.xlane.f32.xlu0 %v5551
        %v5553 = vpop.xlane.xlu0 %5552
        %v5554 = vmax.f32 %v5510, %v5511
        %5555 = vmax.xlane.f32.xlu0 %v5554
        %v5556 = vpop.xlane.xlu0 %5555
        %v5557 = vmax.f32 %v5512, %v5513
        %5558 = vmax.xlane.f32.xlu0 %v5557
        %v5559 = vpop.xlane.xlu0 %5558
        %v5560 = vmax.f32 %v5514, %v5515
        %5561 = vmax.xlane.f32.xlu0 %v5560
        %v5562 = vpop.xlane.xlu0 %5561
        %v5563 = vmax.f32 %v5516, %v5517
        %5564 = vmax.xlane.f32.xlu0 %v5563
        %v5565 = vpop.xlane.xlu0 %5564
        %v5566 = vsub.f32 %v5486, %v5520
        %v5567 = vsub.f32 %v5487, %v5520
        %v5568 = vsub.f32 %v5488, %v5523
        %v5569 = vsub.f32 %v5489, %v5523
        %v5570 = vsub.f32 %v5490, %v5526
        %v5571 = vsub.f32 %v5491, %v5526
        %v5572 = vsub.f32 %v5492, %v5529
        %v5573 = vsub.f32 %v5493, %v5529
        %v5574 = vsub.f32 %v5494, %v5532
        %v5575 = vsub.f32 %v5495, %v5532
        %v5576 = vsub.f32 %v5496, %v5535
        %v5577 = vsub.f32 %v5497, %v5535
        %v5578 = vsub.f32 %v5498, %v5538
        %v5579 = vsub.f32 %v5499, %v5538
        %v5580 = vsub.f32 %v5500, %v5541
        %v5581 = vsub.f32 %v5501, %v5541
        %v5582 = vsub.f32 %v5502, %v5544
        %v5583 = vsub.f32 %v5503, %v5544
        %v5584 = vsub.f32 %v5504, %v5547
        %v5585 = vsub.f32 %v5505, %v5547
        %v5586 = vsub.f32 %v5506, %v5550
        %v5587 = vsub.f32 %v5507, %v5550
        %v5588 = vsub.f32 %v5508, %v5553
        %v5589 = vsub.f32 %v5509, %v5553
        %v5590 = vsub.f32 %v5510, %v5556
        %v5591 = vsub.f32 %v5511, %v5556
        %v5592 = vsub.f32 %v5512, %v5559
        %v5593 = vsub.f32 %v5513, %v5559
        %v5594 = vsub.f32 %v5514, %v5562
        %v5595 = vsub.f32 %v5515, %v5562
        %v5596 = vsub.f32 %v5516, %v5565
        %v5597 = vsub.f32 %v5517, %v5565
        %v5598 = vmul.f32 %v5566, 1.442695
        %v5599 = vpow.pop %v5598
        %v5600 = vmul.f32 %v5567, 1.442695
        %v5601 = vpow.pop %v5600
        %v5602 = vmul.f32 %v5568, 1.442695
        %v5603 = vpow.pop %v5602
        %v5604 = vmul.f32 %v5569, 1.442695
        %v5605 = vpow.pop %v5604
        %v5606 = vmul.f32 %v5570, 1.442695
        %v5607 = vpow.pop %v5606
        %v5608 = vmul.f32 %v5571, 1.442695
        %v5609 = vpow.pop %v5608
        %v5610 = vmul.f32 %v5572, 1.442695
        %v5611 = vpow.pop %v5610
        %v5612 = vmul.f32 %v5573, 1.442695
        %v5613 = vpow.pop %v5612
        %v5614 = vmul.f32 %v5574, 1.442695
        %v5615 = vpow.pop %v5614
        %v5616 = vmul.f32 %v5575, 1.442695
        %v5617 = vpow.pop %v5616
        %v5618 = vmul.f32 %v5576, 1.442695
        %v5619 = vpow.pop %v5618
        %v5620 = vmul.f32 %v5577, 1.442695
        %v5621 = vpow.pop %v5620
        %v5622 = vmul.f32 %v5578, 1.442695
        %v5623 = vpow.pop %v5622
        %v5624 = vmul.f32 %v5579, 1.442695
        %v5625 = vpow.pop %v5624
        %v5626 = vmul.f32 %v5580, 1.442695
        %v5627 = vpow.pop %v5626
        %v5628 = vmul.f32 %v5581, 1.442695
        %v5629 = vpow.pop %v5628
        %v5630 = vmul.f32 %v5582, 1.442695
        %v5631 = vpow.pop %v5630
        %v5632 = vmul.f32 %v5583, 1.442695
        %v5633 = vpow.pop %v5632
        %v5634 = vmul.f32 %v5584, 1.442695
        %v5635 = vpow.pop %v5634
        %v5636 = vmul.f32 %v5585, 1.442695
        %v5637 = vpow.pop %v5636
        %v5638 = vmul.f32 %v5586, 1.442695
        %v5639 = vpow.pop %v5638
        %v5640 = vmul.f32 %v5587, 1.442695
        %v5641 = vpow.pop %v5640
        %v5642 = vmul.f32 %v5588, 1.442695
        %v5643 = vpow.pop %v5642
        %v5644 = vmul.f32 %v5589, 1.442695
        %v5645 = vpow.pop %v5644
        %v5646 = vmul.f32 %v5590, 1.442695
        %v5647 = vpow.pop %v5646
        %v5648 = vmul.f32 %v5591, 1.442695
        %v5649 = vpow.pop %v5648
        %v5650 = vmul.f32 %v5592, 1.442695
        %v5651 = vpow.pop %v5650
        %v5652 = vmul.f32 %v5593, 1.442695
        %v5653 = vpow.pop %v5652
        %v5654 = vmul.f32 %v5594, 1.442695
        %v5655 = vpow.pop %v5654
        %v5656 = vmul.f32 %v5595, 1.442695
        %v5657 = vpow.pop %v5656
        %v5658 = vmul.f32 %v5596, 1.442695
        %v5659 = vpow.pop %v5658
        %v5660 = vmul.f32 %v5597, 1.442695
        %v5661 = vpow.pop %v5660
        %v5662 = vadd.f32 %v5599, %v5601
        %5663 = vadd.xlane.f32.xlu0 %v5662
        %v5664 = vpop.xlane.xlu0 %5663
        %v5665 = vadd.f32 %v5603, %v5605
        %5666 = vadd.xlane.f32.xlu0 %v5665
        %v5667 = vpop.xlane.xlu0 %5666
        %v5668 = vadd.f32 %v5607, %v5609
        %5669 = vadd.xlane.f32.xlu0 %v5668
        %v5670 = vpop.xlane.xlu0 %5669
        %v5671 = vadd.f32 %v5611, %v5613
        %5672 = vadd.xlane.f32.xlu0 %v5671
        %v5673 = vpop.xlane.xlu0 %5672
        %v5674 = vadd.f32 %v5615, %v5617
        %5675 = vadd.xlane.f32.xlu0 %v5674
        %v5676 = vpop.xlane.xlu0 %5675
        %v5677 = vadd.f32 %v5619, %v5621
        %5678 = vadd.xlane.f32.xlu0 %v5677
        %v5679 = vpop.xlane.xlu0 %5678
        %v5680 = vadd.f32 %v5623, %v5625
        %5681 = vadd.xlane.f32.xlu0 %v5680
        %v5682 = vpop.xlane.xlu0 %5681
        %v5683 = vadd.f32 %v5627, %v5629
        %5684 = vadd.xlane.f32.xlu0 %v5683
        %v5685 = vpop.xlane.xlu0 %5684
        %v5686 = vadd.f32 %v5631, %v5633
        %5687 = vadd.xlane.f32.xlu0 %v5686
        %v5688 = vpop.xlane.xlu0 %5687
        %v5689 = vadd.f32 %v5635, %v5637
        %5690 = vadd.xlane.f32.xlu0 %v5689
        %v5691 = vpop.xlane.xlu0 %5690
        %v5692 = vadd.f32 %v5639, %v5641
        %5693 = vadd.xlane.f32.xlu0 %v5692
        %v5694 = vpop.xlane.xlu0 %5693
        %v5695 = vadd.f32 %v5643, %v5645
        %5696 = vadd.xlane.f32.xlu0 %v5695
        %v5697 = vpop.xlane.xlu0 %5696
        %v5698 = vadd.f32 %v5647, %v5649
        %5699 = vadd.xlane.f32.xlu0 %v5698
        %v5700 = vpop.xlane.xlu0 %5699
        %v5701 = vadd.f32 %v5651, %v5653
        %5702 = vadd.xlane.f32.xlu0 %v5701
        %v5703 = vpop.xlane.xlu0 %5702
        %v5704 = vadd.f32 %v5655, %v5657
        %5705 = vadd.xlane.f32.xlu0 %v5704
        %v5706 = vpop.xlane.xlu0 %5705
        %v5707 = vadd.f32 %v5659, %v5661
        %5708 = vadd.xlane.f32.xlu0 %v5707
        %v5709 = vpop.xlane.xlu0 %5708
        %v5710 = vrcp.pop %v5664
        %v5711 = vrcp.pop %v5667
        %v5712 = vrcp.pop %v5670
        %v5713 = vrcp.pop %v5673
        %v5714 = vrcp.pop %v5676
        %v5715 = vrcp.pop %v5679
        %v5716 = vrcp.pop %v5682
        %v5717 = vrcp.pop %v5685
        %v5718 = vrcp.pop %v5688
        %v5719 = vrcp.pop %v5691
        %v5720 = vrcp.pop %v5694
        %v5721 = vrcp.pop %v5697
        %v5722 = vrcp.pop %v5700
        %v5723 = vrcp.pop %v5703
        %v5724 = vrcp.pop %v5706
        %v5725 = vrcp.pop %v5709
        %v5726 = vmul.f32 %v5599, %v5710
        %v5727 = vmul.f32 %v5601, %v5710
        %v5728 = vmul.f32 %v5603, %v5711
        %v5729 = vmul.f32 %v5605, %v5711
        %v5730 = vmul.f32 %v5607, %v5712
        %v5731 = vmul.f32 %v5609, %v5712
        %v5732 = vmul.f32 %v5611, %v5713
        %v5733 = vmul.f32 %v5613, %v5713
        %v5734 = vmul.f32 %v5615, %v5714
        %v5735 = vmul.f32 %v5617, %v5714
        %v5736 = vmul.f32 %v5619, %v5715
        %v5737 = vmul.f32 %v5621, %v5715
        %v5738 = vmul.f32 %v5623, %v5716
        %v5739 = vmul.f32 %v5625, %v5716
        %v5740 = vmul.f32 %v5627, %v5717
        %v5741 = vmul.f32 %v5629, %v5717
        %v5742 = vmul.f32 %v5631, %v5718
        %v5743 = vmul.f32 %v5633, %v5718
        %v5744 = vmul.f32 %v5635, %v5719
        %v5745 = vmul.f32 %v5637, %v5719
        %v5746 = vmul.f32 %v5639, %v5720
        %v5747 = vmul.f32 %v5641, %v5720
        %v5748 = vmul.f32 %v5643, %v5721
        %v5749 = vmul.f32 %v5645, %v5721
        %v5750 = vmul.f32 %v5647, %v5722
        %v5751 = vmul.f32 %v5649, %v5722
        %v5752 = vmul.f32 %v5651, %v5723
        %v5753 = vmul.f32 %v5653, %v5723
        %v5754 = vmul.f32 %v5655, %v5724
        %v5755 = vmul.f32 %v5657, %v5724
        %v5756 = vmul.f32 %v5659, %v5725
        %v5757 = vmul.f32 %v5661, %v5725
        %v5758 = vpack.c.bf16 %v5728, %v5726
        %v5759 = vpack.c.bf16 %v5729, %v5727
        %v5760 = vpack.c.bf16 %v5732, %v5730
        %v5761 = vpack.c.bf16 %v5733, %v5731
        %v5762 = vpack.c.bf16 %v5736, %v5734
        %v5763 = vpack.c.bf16 %v5737, %v5735
        %v5764 = vpack.c.bf16 %v5740, %v5738
        %v5765 = vpack.c.bf16 %v5741, %v5739
        %v5766 = vpack.c.bf16 %v5744, %v5742
        %v5767 = vpack.c.bf16 %v5745, %v5743
        %v5768 = vpack.c.bf16 %v5748, %v5746
        %v5769 = vpack.c.bf16 %v5749, %v5747
        %v5770 = vpack.c.bf16 %v5752, %v5750
        %v5771 = vpack.c.bf16 %v5753, %v5751
        %v5772 = vpack.c.bf16 %v5756, %v5754
        %v5773 = vpack.c.bf16 %v5757, %v5755
        %5774 = vrot.lane.b32.xlu0 %v3631, 32
        %v5775 = vpop.permute.xlu0 %5774
        %5776 = vrot.lane.b32.xlu0 %v3632, 32
        %v5777 = vpop.permute.xlu0 %5776
        %5778 = vrot.lane.b32.xlu0 %v3633, 32
        %v5779 = vpop.permute.xlu0 %5778
        %5780 = vrot.lane.b32.xlu0 %v3634, 32
        %v5781 = vpop.permute.xlu0 %5780
        %5782 = vrot.lane.b32.xlu0 %v3635, 32
        %v5783 = vpop.permute.xlu0 %5782
        %5784 = vrot.lane.b32.xlu0 %v3636, 32
        %v5785 = vpop.permute.xlu0 %5784
        %5786 = vrot.lane.b32.xlu0 %v3637, 32
        %v5787 = vpop.permute.xlu0 %5786
        %5788 = vrot.lane.b32.xlu0 %v3638, 32
        %v5789 = vpop.permute.xlu0 %5788
        %5798 = vmatpush.bf16.msra.mxu0 %v2786
        %5799 = vmatpush.bf16.msra.mxu0 %v2784
        %5800 = vmatpush.bf16.msra.mxu0 %v2782
        %5801 = vmatpush.bf16.msra.mxu0 %v2780
        %5802 = vmatpush.bf16.msra.mxu0 %v2778
        %5803 = vmatpush.bf16.msra.mxu0 %v2776
        %5804 = vmatpush.bf16.msra.mxu0 %v2774
        %5805 = vmatpush.bf16.msra.mxu0 %v2772
        %5806 = vmatmul.bf16.gmra.mxu0 %v5758
        %v5807 = vpop.f32.mrf.mxu0
        %v5808 = vadd.f32 0.0, %v5807
        %v5809 = vpop.f32.mrf.mxu0
        %v5810 = vadd.f32 0.0, %v5809
        %5811 = vmatmul.bf16.gmra.mxu0 %v5760
        %v5812 = vpop.f32.mrf.mxu0
        %v5813 = vadd.f32 0.0, %v5812
        %v5814 = vpop.f32.mrf.mxu0
        %v5815 = vadd.f32 0.0, %v5814
        %5816 = vmatmul.bf16.gmra.mxu0 %v5762
        %v5817 = vpop.f32.mrf.mxu0
        %v5818 = vadd.f32 0.0, %v5817
        %v5819 = vpop.f32.mrf.mxu0
        %v5820 = vadd.f32 0.0, %v5819
        %5821 = vmatmul.bf16.gmra.mxu0 %v5764
        %v5822 = vpop.f32.mrf.mxu0
        %v5823 = vadd.f32 0.0, %v5822
        %v5824 = vpop.f32.mrf.mxu0
        %v5825 = vadd.f32 0.0, %v5824
        %5826 = vmatmul.bf16.gmra.mxu0 %v5766
        %v5827 = vpop.f32.mrf.mxu0
        %v5828 = vadd.f32 0.0, %v5827
        %v5829 = vpop.f32.mrf.mxu0
        %v5830 = vadd.f32 0.0, %v5829
        %5831 = vmatmul.bf16.gmra.mxu0 %v5768
        %v5832 = vpop.f32.mrf.mxu0
        %v5833 = vadd.f32 0.0, %v5832
        %v5834 = vpop.f32.mrf.mxu0
        %v5835 = vadd.f32 0.0, %v5834
        %5836 = vmatmul.bf16.gmra.mxu0 %v5770
        %v5837 = vpop.f32.mrf.mxu0
        %v5838 = vadd.f32 0.0, %v5837
        %v5839 = vpop.f32.mrf.mxu0
        %v5840 = vadd.f32 0.0, %v5839
        %5841 = vmatmul.bf16.gmra.mxu0 %v5772
        %v5842 = vpop.f32.mrf.mxu0
        %v5843 = vadd.f32 0.0, %v5842
        %v5844 = vpop.f32.mrf.mxu0
        %v5845 = vadd.f32 0.0, %v5844
        %5846 = vdwg.mxu0
        %5847 = vmatpush.bf16.msra.mxu0 %v5789
        %5848 = vmatpush.bf16.msra.mxu0 %v5787
        %5849 = vmatpush.bf16.msra.mxu0 %v5785
        %5850 = vmatpush.bf16.msra.mxu0 %v5783
        %5851 = vmatpush.bf16.msra.mxu0 %v5781
        %5852 = vmatpush.bf16.msra.mxu0 %v5779
        %5853 = vmatpush.bf16.msra.mxu0 %v5777
        %5854 = vmatpush.bf16.msra.mxu0 %v5775
        %5855 = vmatmul.bf16.gmra.mxu0 %v5759
        %v5856 = vpop.f32.mrf.mxu0
        %v5857 = vadd.f32 %v5808, %v5856
        %v5858 = vpop.f32.mrf.mxu0
        %v5859 = vadd.f32 %v5810, %v5858
        %5860 = vmatmul.bf16.gmra.mxu0 %v5761
        %v5861 = vpop.f32.mrf.mxu0
        %v5862 = vadd.f32 %v5813, %v5861
        %v5863 = vpop.f32.mrf.mxu0
        %v5864 = vadd.f32 %v5815, %v5863
        %5865 = vmatmul.bf16.gmra.mxu0 %v5763
        %v5866 = vpop.f32.mrf.mxu0
        %v5867 = vadd.f32 %v5818, %v5866
        %v5868 = vpop.f32.mrf.mxu0
        %v5869 = vadd.f32 %v5820, %v5868
        %5870 = vmatmul.bf16.gmra.mxu0 %v5765
        %v5871 = vpop.f32.mrf.mxu0
        %v5872 = vadd.f32 %v5823, %v5871
        %v5873 = vpop.f32.mrf.mxu0
        %v5874 = vadd.f32 %v5825, %v5873
        %5875 = vmatmul.bf16.gmra.mxu0 %v5767
        %v5876 = vpop.f32.mrf.mxu0
        %v5877 = vadd.f32 %v5828, %v5876
        %v5878 = vpop.f32.mrf.mxu0
        %v5879 = vadd.f32 %v5830, %v5878
        %5880 = vmatmul.bf16.gmra.mxu0 %v5769
        %v5881 = vpop.f32.mrf.mxu0
        %v5882 = vadd.f32 %v5833, %v5881
        %v5883 = vpop.f32.mrf.mxu0
        %v5884 = vadd.f32 %v5835, %v5883
        %5885 = vmatmul.bf16.gmra.mxu0 %v5771
        %v5886 = vpop.f32.mrf.mxu0
        %v5887 = vadd.f32 %v5838, %v5886
        %v5888 = vpop.f32.mrf.mxu0
        %v5889 = vadd.f32 %v5840, %v5888
        %5890 = vmatmul.bf16.gmra.mxu0 %v5773
        %v5891 = vpop.f32.mrf.mxu0
        %v5892 = vadd.f32 %v5843, %v5891
        %v5893 = vpop.f32.mrf.mxu0
        %v5894 = vadd.f32 %v5845, %v5893
        %5895 = vdwg.mxu0
        %v5896 = vld [vmem:[#allocation2] sm:$0xff]
        %v5897 = vld [vmem:[#allocation2 + $0x8] sm:$0xff]
        %v5898 = vld [vmem:[#allocation2 + $0x10] sm:$0xff]
        %v5899 = vld [vmem:[#allocation2 + $0x18] sm:$0xff]
        %v5900 = vld [vmem:[#allocation2 + $0x20] sm:$0xff]
        %v5901 = vld [vmem:[#allocation2 + $0x28] sm:$0xff]
        %v5902 = vld [vmem:[#allocation2 + $0x30] sm:$0xff]
        %v5903 = vld [vmem:[#allocation2 + $0x38] sm:$0xff]
        %v5904 = vld [vmem:[#allocation2 + $0x40] sm:$0xff]
        %v5905 = vld [vmem:[#allocation2 + $0x48] sm:$0xff]
        %v5906 = vld [vmem:[#allocation2 + $0x50] sm:$0xff]
        %v5907 = vld [vmem:[#allocation2 + $0x58] sm:$0xff]
        %v5908 = vld [vmem:[#allocation2 + $0x60] sm:$0xff]
        %v5909 = vld [vmem:[#allocation2 + $0x68] sm:$0xff]
        %v5910 = vld [vmem:[#allocation2 + $0x70] sm:$0xff]
        %v5911 = vld [vmem:[#allocation2 + $0x78] sm:$0xff]
        %v5912 = vpack.c.bf16 %v5859, %v5857
        %v5913 = vpack.c.bf16 %v5864, %v5862
        %v5914 = vpack.c.bf16 %v5869, %v5867
        %v5915 = vpack.c.bf16 %v5874, %v5872
        %v5916 = vpack.c.bf16 %v5879, %v5877
        %v5917 = vpack.c.bf16 %v5884, %v5882
        %v5918 = vpack.c.bf16 %v5889, %v5887
        %v5919 = vpack.c.bf16 %v5894, %v5892
        %v5921 = vsel %vm932, %v5912, 0
        %v5924 = vsel %vm932, %v5913, 0
        %v5927 = vsel %vm932, %v5914, 0
        %v5930 = vsel %vm932, %v5915, 0
        %v5933 = vsel %vm932, %v5916, 0
        %v5936 = vsel %vm932, %v5917, 0
        %v5939 = vsel %vm932, %v5918, 0
        %v5942 = vsel %vm932, %v5919, 0
        %5944 = vmatpush.bf16.msra.mxu0 0
        %5945 = vmatpush.bf16.msra.mxu0 0
        %5946 = vmatpush.bf16.msra.mxu0 0
        %5947 = vmatpush.bf16.msra.mxu0 0
        %5948 = vmatpush.bf16.msra.mxu0 0
        %5949 = vmatpush.bf16.msra.mxu0 0
        %5950 = vmatpush.bf16.msra.mxu0 %v2877
        %5951 = vmatpush.bf16.msra.mxu0 %v2876
        %5952 = vmatmul.bf16.gmra.mxu0 %v5921
        %v5953 = vpop.f32.mrf.mxu0
        %v5954 = vadd.f32 0.0, %v5953
        %v5955 = vpop.f32.mrf.mxu0
        %v5956 = vadd.f32 0.0, %v5955
        %5957 = vmatmul.bf16.gmra.mxu0 %v5924
        %v5958 = vpop.f32.mrf.mxu0
        %v5959 = vadd.f32 0.0, %v5958
        %v5960 = vpop.f32.mrf.mxu0
        %v5961 = vadd.f32 0.0, %v5960
        %5962 = vmatmul.bf16.gmra.mxu0 %v5927
        %v5963 = vpop.f32.mrf.mxu0
        %v5964 = vadd.f32 0.0, %v5963
        %v5965 = vpop.f32.mrf.mxu0
        %v5966 = vadd.f32 0.0, %v5965
        %5967 = vmatmul.bf16.gmra.mxu0 %v5930
        %v5968 = vpop.f32.mrf.mxu0
        %v5969 = vadd.f32 0.0, %v5968
        %v5970 = vpop.f32.mrf.mxu0
        %v5971 = vadd.f32 0.0, %v5970
        %5972 = vmatmul.bf16.gmra.mxu0 %v5933
        %v5973 = vpop.f32.mrf.mxu0
        %v5974 = vadd.f32 0.0, %v5973
        %v5975 = vpop.f32.mrf.mxu0
        %v5976 = vadd.f32 0.0, %v5975
        %5977 = vmatmul.bf16.gmra.mxu0 %v5936
        %v5978 = vpop.f32.mrf.mxu0
        %v5979 = vadd.f32 0.0, %v5978
        %v5980 = vpop.f32.mrf.mxu0
        %v5981 = vadd.f32 0.0, %v5980
        %5982 = vmatmul.bf16.gmra.mxu0 %v5939
        %v5983 = vpop.f32.mrf.mxu0
        %v5984 = vadd.f32 0.0, %v5983
        %v5985 = vpop.f32.mrf.mxu0
        %v5986 = vadd.f32 0.0, %v5985
        %5987 = vmatmul.bf16.gmra.mxu0 %v5942
        %v5988 = vpop.f32.mrf.mxu0
        %v5989 = vadd.f32 0.0, %v5988
        %v5990 = vpop.f32.mrf.mxu0
        %v5991 = vadd.f32 0.0, %v5990
        %5992 = vdwg.mxu0
        %v5993 = vadd.f32 %v5896, %v5954
        %v5994 = vadd.f32 %v5897, %v5956
        %v5995 = vadd.f32 %v5898, %v5959
        %v5996 = vadd.f32 %v5899, %v5961
        %v5997 = vadd.f32 %v5900, %v5964
        %v5998 = vadd.f32 %v5901, %v5966
        %v5999 = vadd.f32 %v5902, %v5969
        %v6000 = vadd.f32 %v5903, %v5971
        %v6001 = vadd.f32 %v5904, %v5974
        %v6002 = vadd.f32 %v5905, %v5976
        %v6003 = vadd.f32 %v5906, %v5979
        %v6004 = vadd.f32 %v5907, %v5981
        %v6005 = vadd.f32 %v5908, %v5984
        %v6006 = vadd.f32 %v5909, %v5986
        %v6007 = vadd.f32 %v5910, %v5989
        %v6008 = vadd.f32 %v5911, %v5991
        %6009 = vst [vmem:[#allocation2] sm:$0xff] %v5993
        %6010 = vst [vmem:[#allocation2 + $0x8] sm:$0xff] %v5994
        %6011 = vst [vmem:[#allocation2 + $0x10] sm:$0xff] %v5995
        %6012 = vst [vmem:[#allocation2 + $0x18] sm:$0xff] %v5996
        %6013 = vst [vmem:[#allocation2 + $0x20] sm:$0xff] %v5997
        %6014 = vst [vmem:[#allocation2 + $0x28] sm:$0xff] %v5998
        %6015 = vst [vmem:[#allocation2 + $0x30] sm:$0xff] %v5999
        %6016 = vst [vmem:[#allocation2 + $0x38] sm:$0xff] %v6000
        %6017 = vst [vmem:[#allocation2 + $0x40] sm:$0xff] %v6001
        %6018 = vst [vmem:[#allocation2 + $0x48] sm:$0xff] %v6002
        %6019 = vst [vmem:[#allocation2 + $0x50] sm:$0xff] %v6003
        %6020 = vst [vmem:[#allocation2 + $0x58] sm:$0xff] %v6004
        %6021 = vst [vmem:[#allocation2 + $0x60] sm:$0xff] %v6005
        %6022 = vst [vmem:[#allocation2 + $0x68] sm:$0xff] %v6006
        %6023 = vst [vmem:[#allocation2 + $0x70] sm:$0xff] %v6007
        %6024 = vst [vmem:[#allocation2 + $0x78] sm:$0xff] %v6008
        %v6025 = vld [vmem:[#allocation2] sm:$0xff]
        %v6026 = vld [vmem:[#allocation2 + $0x8] sm:$0xff]
        %v6027 = vld [vmem:[#allocation2 + $0x10] sm:$0xff]
        %v6028 = vld [vmem:[#allocation2 + $0x18] sm:$0xff]
        %v6029 = vld [vmem:[#allocation2 + $0x20] sm:$0xff]
        %v6030 = vld [vmem:[#allocation2 + $0x28] sm:$0xff]
        %v6031 = vld [vmem:[#allocation2 + $0x30] sm:$0xff]
        %v6032 = vld [vmem:[#allocation2 + $0x38] sm:$0xff]
        %v6033 = vld [vmem:[#allocation2 + $0x40] sm:$0xff]
        %v6034 = vld [vmem:[#allocation2 + $0x48] sm:$0xff]
        %v6035 = vld [vmem:[#allocation2 + $0x50] sm:$0xff]
        %v6036 = vld [vmem:[#allocation2 + $0x58] sm:$0xff]
        %v6037 = vld [vmem:[#allocation2 + $0x60] sm:$0xff]
        %v6038 = vld [vmem:[#allocation2 + $0x68] sm:$0xff]
        %v6039 = vld [vmem:[#allocation2 + $0x70] sm:$0xff]
        %v6040 = vld [vmem:[#allocation2 + $0x78] sm:$0xff]
        %v6041 = vadd.f32 %v6025, %v3002
        %v6042 = vadd.f32 %v6026, %v3002
        %v6043 = vadd.f32 %v6027, %v3002
        %v6044 = vadd.f32 %v6028, %v3002
        %v6045 = vadd.f32 %v6029, %v3002
        %v6046 = vadd.f32 %v6030, %v3002
        %v6047 = vadd.f32 %v6031, %v3002
        %v6048 = vadd.f32 %v6032, %v3002
        %v6049 = vadd.f32 %v6033, %v3002
        %v6050 = vadd.f32 %v6034, %v3002
        %v6051 = vadd.f32 %v6035, %v3002
        %v6052 = vadd.f32 %v6036, %v3002
        %v6053 = vadd.f32 %v6037, %v3002
        %v6054 = vadd.f32 %v6038, %v3002
        %v6055 = vadd.f32 %v6039, %v3002
        %v6056 = vadd.f32 %v6040, %v3002
        %6057 = vst [vmem:[%s190 + $0x80] sm:$0xff] %v6041
        %6058 = vst [vmem:[%s190 + $0x88] sm:$0xff] %v6042
        %6059 = vst [vmem:[%s190 + $0x90] sm:$0xff] %v6043
        %6060 = vst [vmem:[%s190 + $0x98] sm:$0xff] %v6044
        %6061 = vst [vmem:[%s190 + $0xa0] sm:$0xff] %v6045
        %6062 = vst [vmem:[%s190 + $0xa8] sm:$0xff] %v6046
        %6063 = vst [vmem:[%s190 + $0xb0] sm:$0xff] %v6047
        %6064 = vst [vmem:[%s190 + $0xb8] sm:$0xff] %v6048
        %6065 = vst [vmem:[%s190 + $0xc0] sm:$0xff] %v6049
        %6066 = vst [vmem:[%s190 + $0xc8] sm:$0xff] %v6050
        %6067 = vst [vmem:[%s190 + $0xd0] sm:$0xff] %v6051
        %6068 = vst [vmem:[%s190 + $0xd8] sm:$0xff] %v6052
        %6069 = vst [vmem:[%s190 + $0xe0] sm:$0xff] %v6053
        %6070 = vst [vmem:[%s190 + $0xe8] sm:$0xff] %v6054
        %6071 = vst [vmem:[%s190 + $0xf0] sm:$0xff] %v6055
        %6072 = vst [vmem:[%s190 + $0xf8] sm:$0xff] %v6056
        %s6073 = sand.u32 %s115, 1
        %s6074 = scalar_lea.sflag [#allocation4], %s6073
        %s6075 = sand.u32 %s115, 1
        %s6076 = smul.addr %s6075, 256
        %s6077 = scalar_lea.vmem [#allocation3], %s6076
        // Predicated region
        $region37: #{multihead_forward.1} parent=35 // pred_check
          %p6078 = pneg %p125
        $region38: #{multihead_forward.1} parent=35 // pred_check_branch
          %6080 = sbr.rel (%p6078) target = $region40
        $region39: #{multihead_forward.1} parent=35 // pred_region
          %6082 = vsyncadd %s6074, 0
          %s6083 = smul.addr %s18, 32
          %s6084 = smul.addr %s6083, 8
          %s6085 = scalar_lea.hbm %s4, %s6084
          %s6086 = sshll.u32 %s6077, 4
          %s6087 = int_to_ptr.vmem [resolvable:$true] %s6086
          %s6088 = sshll.u32 %s6085, 4
          %s6089 = int_to_ptr.hbm [resolvable:$true] %s6088
          %6094 = dma.vmem_to_hbm [thread:$0]  %s6087, 4096, %s6089, %s6074, 128, 128, 8
        $region40: #{multihead_forward.1} parent=35 // pred_fallthru
          _
      $region36: #{multihead_forward.1} parent=5 // pred_fallthru
        _
      %p6095 = scmp.le.s32.totalorder 2, %s13
      // Predicated region
      $region41: #{multihead_forward.1} parent=5 // pred_check
        %p6096 = pneg %p6095
      $region42: #{multihead_forward.1} parent=5 // pred_check_branch
        %6098 = sbr.rel (%p6096) target = $region44
      $region43: #{multihead_forward.1} parent=5 // pred_region
        %s6099 = ssub.s32 %s13, 2
        // Predicated region
        $region45: #{multihead_forward.1} parent=43 // pred_check
          %p6100 = pneg %p131
        $region46: #{multihead_forward.1} parent=43 // pred_check_branch
          %6102 = sbr.rel (%p6100) target = $region48
        $region47: #{multihead_forward.1} parent=43 // pred_region
          %s6103 = sand.u32 %s116, 1
          %s6104 = scalar_lea.sflag [#allocation4], %s6103
          %s6105 = sand.u32 %s116, 1
          %s6106 = smul.addr %s6105, 256
          %s6107 = scalar_lea.vmem [#allocation3], %s6106
          %6109 = dma.done %s6104, 4096
        $region48: #{multihead_forward.1} parent=43 // pred_fallthru
          _
      $region44: #{multihead_forward.1} parent=5 // pred_fallthru
        _
    $region6: #{multihead_forward.1} parent=1 // loop_footer
      %s17 = sadd.s32 1, %s13
    $region7: #{multihead_forward.1} parent=1 // loop_footer_branch
      %12 = sbr.rel target = $region3
    $region8: #{multihead_forward.1} parent=1 // loop_exit
      _
    %6110 = vsyncpa [#allocation4], 1
    %s6111 = scalar_lea.sflag [#allocation4], 1
    %6112 = vsyncpa %s6111, 1

</llo_original>
